<compile_context>
chip_gen: v7x
topology: tpu7x:2x2x1
jax: 0.10.0
libtpu: 0.0.40
codegen_flags: <defaults>
</compile_context>

<pallas_src>
import functools

import jax
import jax.numpy as jnp
from jax import lax
from jax.experimental import pallas as pl
from jax.experimental.pallas import tpu as pltpu


def mha_kernel(x_ref, wq_ref, wk_ref, wv_ref, wo_ref, o_ref, acc_ref, *,
               head_num, compute_dtype):
    """Fused QKV projection + per-head attention + output projection.

    x_ref  : (Bb, T, E)    input tokens for Bb batch rows
    wq_ref : (H, E, D)     per-head Q weights, sqrt(head_dim) scale pre-folded
    wk_ref : (H, E, D)
    wv_ref : (H, E, D)
    wo_ref : (H, D, E)     per-head rows of Wout.T
    o_ref  : (Bb, T, E)
    acc_ref: (T, E) f32    VMEM scratch accumulator (fused output projection)
    """
    block_b = x_ref.shape[0]

    for b in range(block_b):                       # static unroll over batch rows
        x = x_ref[b].astype(compute_dtype)         # (T, E)
        acc_ref[...] = jnp.zeros_like(acc_ref)

        for h in range(head_num):                  # static unroll over heads
            # Per-head projections; wq_ref[h] is a free static ref slice.
            q = jnp.dot(x, wq_ref[h], preferred_element_type=jnp.float32)  # (T, D)
            k = jnp.dot(x, wk_ref[h], preferred_element_type=jnp.float32)  # (T, D)
            v = jnp.dot(x, wv_ref[h], preferred_element_type=jnp.float32)  # (T, D)

            # energy = q @ k^T via dot_general NT form (scale already folded in q).
            energy = lax.dot_general(
                q.astype(compute_dtype), k.astype(compute_dtype),
                dimension_numbers=(((1,), (1,)), ((), ())),
                preferred_element_type=jnp.float32)                        # (T, T)

            # TODO(synk): optional `mask` (masked_fill with -inf) not implemented;
            #             the reference forward is exercised with mask=None.

            # Numerically-stable softmax in f32; denominator on the EUP.
            energy = energy - jnp.max(energy, axis=-1, keepdims=True)
            p = jnp.exp(energy)
            attn = p * pl.reciprocal(jnp.sum(p, axis=-1, keepdims=True), approx=True)

            ctx = jnp.dot(attn.astype(compute_dtype), v.astype(compute_dtype),
                          preferred_element_type=jnp.float32)              # (T, D)

            # Fused output projection: lane-dense (T, E) accumulation per head.
            acc_ref[...] += jnp.dot(ctx.astype(compute_dtype), wo_ref[h],
                                    preferred_element_type=jnp.float32)

        o_ref[b] = acc_ref[...].astype(o_ref.dtype)


def prepare_weights(w_qkv, w_out, head_num, dtype=jnp.bfloat16):
    """Permute torch-style weights into per-head MXU-friendly slabs.

    w_qkv: (3E, E) torch nn.Linear weight; output feature row f decomposes as
           f = d*3*H + k*H + h  (rearrange 'b t (d k h) -> k b h t d').
    w_out: (E, E) torch nn.Linear weight; consumes ctx features f = h*D + d.

    Returns (wq, wk, wv, wo):
      wq, wk, wv : (H, E, D)  (module's sqrt(head_dim) scale folded into wq)
      wo         : (H, D, E)  (per-head rows of Wout.T)
    """
    three_e, E = w_qkv.shape
    assert three_e == 3 * E and E % head_num == 0
    D = E // head_num
    scale = float(D) ** 0.5                     # the module MULTIPLIES energy by dk

    w = w_qkv.reshape(D, 3, head_num, E)        # [d, k, h, e]
    w = jnp.transpose(w, (1, 2, 3, 0))          # [k, h, e, d]
    wq = w[0] * scale                           # fold scale into Q weights (in f32)
    wk = w[1]
    wv = w[2]
    wo = w_out.T.reshape(head_num, D, E)        # [h, d, e]
    return (wq.astype(dtype), wk.astype(dtype), wv.astype(dtype), wo.astype(dtype))


def _pick_block_b(B, T):
    # Fold several batch rows into one grid step when T is small so each step does
    # meaningful work (per-grid-step pipeline overhead ~0.35 us).  Keep it a divisor
    # of B and bounded so the unrolled kernel body stays small.
    cap = int(max(1, min(8, 256 // max(T, 1))))
    bb = min(B, cap)
    while B % bb:
        bb -= 1
    return bb


def multi_head_attention(x, w_qkv, w_out, head_num, *,
                         compute_dtype=jnp.bfloat16, block_b=None):
    """x: (B, T, E); w_qkv: (3E, E) torch-style; w_out: (E, E) torch-style."""
    B, T, E = x.shape
    assert E % head_num == 0
    D = E // head_num
    H = head_num

    wq, wk, wv, wo = prepare_weights(w_qkv, w_out, head_num, dtype=compute_dtype)

    if block_b is None:
        block_b = _pick_block_b(B, T)
    assert B % block_b == 0

    kernel = functools.partial(mha_kernel, head_num=H, compute_dtype=compute_dtype)

    return pl.pallas_call(
        kernel,
        out_shape=jax.ShapeDtypeStruct((B, T, E), x.dtype),
        grid=(B // block_b,),
        in_specs=[
            pl.BlockSpec((block_b, T, E), lambda i: (i, 0, 0)),
            # Weights are grid-invariant (constant index_map) -> fetched once.
            pl.BlockSpec((H, E, D), lambda i: (0, 0, 0)),
            pl.BlockSpec((H, E, D), lambda i: (0, 0, 0)),
            pl.BlockSpec((H, E, D), lambda i: (0, 0, 0)),
            pl.BlockSpec((H, D, E), lambda i: (0, 0, 0)),
        ],
        out_specs=pl.BlockSpec((block_b, T, E), lambda i: (i, 0, 0)),
        scratch_shapes=[pltpu.VMEM((T, E), jnp.float32)],
        compiler_params=pltpu.CompilerParams(
            dimension_semantics=("parallel",)),
    )(x, wq, wk, wv, wo)


def reference_mha(x, w_qkv, w_out, head_num):
    """Pure-JAX f32 transcription of the PyTorch forward (mask=None)."""
    B, T, E = x.shape
    D = E // head_num
    hp = lax.Precision.HIGHEST
    qkv = jnp.einsum("bte,fe->btf", x, w_qkv, precision=hp)        # (B, T, 3E)
    qkv = qkv.reshape(B, T, D, 3, head_num)                        # b t (d k h)
    qkv = jnp.transpose(qkv, (3, 0, 4, 1, 2))                      # k b h t d
    q, k, v = qkv[0], qkv[1], qkv[2]
    energy = jnp.einsum("bhid,bhjd->bhij", q, k, precision=hp) * (D ** 0.5)
    attn = jax.nn.softmax(energy, axis=-1)
    ctx = jnp.einsum("bhij,bhjd->bhid", attn, v, precision=hp)
    ctx = jnp.transpose(ctx, (0, 2, 1, 3)).reshape(B, T, E)        # b t (h d)
    return jnp.einsum("bte,fe->btf", ctx, w_out, precision=hp)


def reference_mha_prepared(x, wq, wk, wv, wo, compute_dtype):
    """Same math as the kernel, in plain JAX, on already-prepared weights.

    Used to (a) validate the weight permutation / scale folding in f32 and
    (b) validate the kernel at matched (bf16-operand, f32-accumulate) precision.
    """
    hp = lax.Precision.HIGHEST
    xc = x.astype(compute_dtype)
    q = jnp.einsum("bte,hed->bhtd", xc, wq,
                   preferred_element_type=jnp.float32, precision=hp)
    k = jnp.einsum("bte,hed->bhtd", xc, wk,
                   preferred_element_type=jnp.float32, precision=hp)
    v = jnp.einsum("bte,hed->bhtd", xc, wv,
                   preferred_element_type=jnp.float32, precision=hp)
    e = jnp.einsum("bhid,bhjd->bhij", q.astype(compute_dtype), k.astype(compute_dtype),
                   preferred_element_type=jnp.float32, precision=hp)
    a = jax.nn.softmax(e, axis=-1)
    ctx = jnp.einsum("bhij,bhjd->bhid", a.astype(compute_dtype), v.astype(compute_dtype),
                     preferred_element_type=jnp.float32, precision=hp)
    out = jnp.einsum("bhtd,hde->bte", ctx.astype(compute_dtype), wo,
                     preferred_element_type=jnp.float32, precision=hp)
    return out.astype(x.dtype)


if __name__ == "__main__":
    B, T, E, H = 2, 8, 32, 4  # batch, tokens, embedding_dim, head_num

    key = jax.random.PRNGKey(0)
    kx, kq, ko = jax.random.split(key, 3)

    x = jax.random.normal(kx, (B, T, E), dtype=jnp.float32)
    # Deterministic synthetic parameters (torch nn.Linear weight shapes).
    w_qkv = jax.random.normal(kq, (3 * E, E), dtype=jnp.float32) * (1.0 / E ** 0.5)
    w_out = jax.random.normal(ko, (E, E), dtype=jnp.float32) * (1.0 / E ** 0.5)

    out = multi_head_attention(x, w_qkv, w_out, H)
    out = jax.block_until_ready(out)
    assert out.shape == (B, T, E)

    # (1) Validate the weight permutation / scale folding exactly (f32 end-to-end).
    wq32, wk32, wv32, wo32 = prepare_weights(w_qkv, w_out, H, dtype=jnp.float32)
    ref_module = reference_mha(x, w_qkv, w_out, H)
    ref_prep32 = reference_mha_prepared(x, wq32, wk32, wv32, wo32, jnp.float32)
    assert jnp.allclose(ref_prep32, ref_module, atol=1e-4, rtol=1e-4), \
        "weight-prep mismatch vs module semantics"

    # (2) Validate the kernel at matched matmul precision (bf16 operands, f32 accum).
    #     (The module multiplies energy by sqrt(head_dim), so logits are large and a
    #     direct bf16-vs-f32 comparison would be dominated by precision, not bugs.)
    wqb, wkb, wvb, wob = prepare_weights(w_qkv, w_out, H, dtype=jnp.bfloat16)
    ref_bf16 = reference_mha_prepared(x, wqb, wkb, wvb, wob, jnp.bfloat16)
    assert jnp.allclose(out, ref_bf16, atol=2e-2, rtol=2e-2), "kernel mismatch"

    print("KERNEL_OK")
</pallas_src>

<mosaic_0001>
module attributes {stable_mosaic.version = 11 : i64} {
  func.func @mha_kernel(%arg0: i32, %arg1: memref<2x8x32xf32, #tpu.memory_space<vmem>>, %arg2: memref<4x32x8xbf16, #tpu.memory_space<vmem>>, %arg3: memref<4x32x8xbf16, #tpu.memory_space<vmem>>, %arg4: memref<4x32x8xbf16, #tpu.memory_space<vmem>>, %arg5: memref<4x8x32xbf16, #tpu.memory_space<vmem>>, %arg6: memref<2x8x32xf32, #tpu.memory_space<vmem>>, %arg7: memref<8x32xf32, #tpu.memory_space<vmem>>) attributes {dimension_semantics = [#tpu.dimension_semantics<parallel>], iteration_bounds = array<i64: 1>, scalar_prefetch = 0 : i64, scratch_operands = 1 : i64, tpu.core_type = #tpu.core_type<tc>, window_params = [{transform_indices = @transform_0, window_bounds = array<i64: 2, 8, 32>}, {pipeline_mode = #tpu.pipeline_mode<synchronous>, transform_indices = @transform_1, window_bounds = array<i64: 4, 32, 8>}, {pipeline_mode = #tpu.pipeline_mode<synchronous>, transform_indices = @transform_2, window_bounds = array<i64: 4, 32, 8>}, {pipeline_mode = #tpu.pipeline_mode<synchronous>, transform_indices = @transform_3, window_bounds = array<i64: 4, 32, 8>}, {pipeline_mode = #tpu.pipeline_mode<synchronous>, transform_indices = @transform_4, window_bounds = array<i64: 4, 8, 32>}, {transform_indices = @transform_5, window_bounds = array<i64: 2, 8, 32>}]} {
    %c0 = arith.constant 0 : index
    %c0_0 = arith.constant 0 : index
    %c0_1 = arith.constant 0 : index
    %0 = vector.load %arg1[%c0, %c0_0, %c0_1] : memref<2x8x32xf32, #tpu.memory_space<vmem>>, vector<1x8x32xf32>
    %1 = vector.shape_cast %0 : vector<1x8x32xf32> to vector<8x32xf32>
    %2 = arith.truncf %1 : vector<8x32xf32> to vector<8x32xbf16>
    %cst = arith.constant 0.000000e+00 : f32
    %3 = vector.broadcast %cst : f32 to vector<8x32xf32>
    %c0_2 = arith.constant 0 : index
    %c0_3 = arith.constant 0 : index
    %4 = vector.load %arg7[%c0_2, %c0_3] : memref<8x32xf32, #tpu.memory_space<vmem>>, vector<8x32xf32>
    tpu.vector_store %arg7[%c0_2, %c0_3], %3 {strides = array<i32>} : memref<8x32xf32, #tpu.memory_space<vmem>>, vector<8x32xf32>,
    %c0_4 = arith.constant 0 : index
    %c0_5 = arith.constant 0 : index
    %c0_6 = arith.constant 0 : index
    %5 = vector.load %arg2[%c0_4, %c0_5, %c0_6] : memref<4x32x8xbf16, #tpu.memory_space<vmem>>, vector<1x32x8xbf16>
    %6 = vector.shape_cast %5 : vector<1x32x8xbf16> to vector<32x8xbf16>
    %cst_7 = arith.constant dense<0.000000e+00> : vector<8x8xf32>
    %7 = tpu.matmul %2, %6, %cst_7 {dimension_numbers = #tpu.dot_dimension_numbers<[1], [0], [0], [1], [0, 0, 1, 1], [], []>} : vector<8x32xbf16>, vector<32x8xbf16>, vector<8x8xf32> -> vector<8x8xf32>
    %c0_8 = arith.constant 0 : index
    %c0_9 = arith.constant 0 : index
    %c0_10 = arith.constant 0 : index
    %8 = vector.load %arg3[%c0_8, %c0_9, %c0_10] : memref<4x32x8xbf16, #tpu.memory_space<vmem>>, vector<1x32x8xbf16>
    %9 = vector.shape_cast %8 : vector<1x32x8xbf16> to vector<32x8xbf16>
    %cst_11 = arith.constant dense<0.000000e+00> : vector<8x8xf32>
    %10 = tpu.matmul %2, %9, %cst_11 {dimension_numbers = #tpu.dot_dimension_numbers<[1], [0], [0], [1], [0, 0, 1, 1], [], []>} : vector<8x32xbf16>, vector<32x8xbf16>, vector<8x8xf32> -> vector<8x8xf32>
    %c0_12 = arith.constant 0 : index
    %c0_13 = arith.constant 0 : index
    %c0_14 = arith.constant 0 : index
    %11 = vector.load %arg4[%c0_12, %c0_13, %c0_14] : memref<4x32x8xbf16, #tpu.memory_space<vmem>>, vector<1x32x8xbf16>
    %12 = vector.shape_cast %11 : vector<1x32x8xbf16> to vector<32x8xbf16>
    %cst_15 = arith.constant dense<0.000000e+00> : vector<8x8xf32>
    %13 = tpu.matmul %2, %12, %cst_15 {dimension_numbers = #tpu.dot_dimension_numbers<[1], [0], [0], [1], [0, 0, 1, 1], [], []>} : vector<8x32xbf16>, vector<32x8xbf16>, vector<8x8xf32> -> vector<8x8xf32>
    %14 = arith.truncf %7 : vector<8x8xf32> to vector<8x8xbf16>
    %15 = arith.truncf %10 : vector<8x8xf32> to vector<8x8xbf16>
    %cst_16 = arith.constant dense<0.000000e+00> : vector<8x8xf32>
    %16 = tpu.matmul %14, %15, %cst_16 {dimension_numbers = #tpu.dot_dimension_numbers<[1], [1], [0], [0], [0, 0, 1, 0], [], []>} : vector<8x8xbf16>, vector<8x8xbf16>, vector<8x8xf32> -> vector<8x8xf32>
    %cst_17 = arith.constant dense<0xFF800000> : vector<8xf32>
    %17 = vector.multi_reduction <maximumf>, %16, %cst_17 [1] : vector<8x8xf32> to vector<8xf32>
    %18 = vector.shape_cast %17 : vector<8xf32> to vector<8x1xf32>
    %19 = vector.broadcast %18 : vector<8x1xf32> to vector<8x8xf32>
    %20 = arith.subf %16, %19 : vector<8x8xf32>
    %21 = math.exp %20 : vector<8x8xf32>
    %cst_18 = arith.constant dense<0.000000e+00> : vector<8xf32>
    %22 = vector.multi_reduction <add>, %21, %cst_18 [1] : vector<8x8xf32> to vector<8xf32>
    %23 = vector.shape_cast %22 : vector<8xf32> to vector<8x1xf32>
    %24 = tpu.reciprocal %23 {approx = true} : vector<8x1xf32> -> vector<8x1xf32>
    %25 = vector.broadcast %24 : vector<8x1xf32> to vector<8x8xf32>
    %26 = arith.mulf %21, %25 : vector<8x8xf32>
    %27 = arith.truncf %26 : vector<8x8xf32> to vector<8x8xbf16>
    %28 = arith.truncf %13 : vector<8x8xf32> to vector<8x8xbf16>
    %cst_19 = arith.constant dense<0.000000e+00> : vector<8x8xf32>
    %29 = tpu.matmul %27, %28, %cst_19 {dimension_numbers = #tpu.dot_dimension_numbers<[1], [0], [0], [1], [0, 0, 1, 1], [], []>} : vector<8x8xbf16>, vector<8x8xbf16>, vector<8x8xf32> -> vector<8x8xf32>
    %c0_20 = arith.constant 0 : index
    %c0_21 = arith.constant 0 : index
    %30 = vector.load %arg7[%c0_20, %c0_21] : memref<8x32xf32, #tpu.memory_space<vmem>>, vector<8x32xf32>
    %31 = arith.truncf %29 : vector<8x8xf32> to vector<8x8xbf16>
    %c0_22 = arith.constant 0 : index
    %c0_23 = arith.constant 0 : index
    %c0_24 = arith.constant 0 : index
    %32 = vector.load %arg5[%c0_22, %c0_23, %c0_24] : memref<4x8x32xbf16, #tpu.memory_space<vmem>>, vector<1x8x32xbf16>
    %33 = vector.shape_cast %32 : vector<1x8x32xbf16> to vector<8x32xbf16>
    %cst_25 = arith.constant dense<0.000000e+00> : vector<8x32xf32>
    %34 = tpu.matmul %31, %33, %cst_25 {dimension_numbers = #tpu.dot_dimension_numbers<[1], [0], [0], [1], [0, 0, 1, 1], [], []>} : vector<8x8xbf16>, vector<8x32xbf16>, vector<8x32xf32> -> vector<8x32xf32>
    %35 = arith.addf %30, %34 : vector<8x32xf32>
    %c0_26 = arith.constant 0 : index
    %c0_27 = arith.constant 0 : index
    %36 = vector.load %arg7[%c0_26, %c0_27] : memref<8x32xf32, #tpu.memory_space<vmem>>, vector<8x32xf32>
    tpu.vector_store %arg7[%c0_26, %c0_27], %35 {strides = array<i32>} : memref<8x32xf32, #tpu.memory_space<vmem>>, vector<8x32xf32>,
    %c1 = arith.constant 1 : index
    %c0_28 = arith.constant 0 : index
    %c0_29 = arith.constant 0 : index
    %37 = vector.load %arg2[%c1, %c0_28, %c0_29] : memref<4x32x8xbf16, #tpu.memory_space<vmem>>, vector<1x32x8xbf16>
    %38 = vector.shape_cast %37 : vector<1x32x8xbf16> to vector<32x8xbf16>
    %cst_30 = arith.constant dense<0.000000e+00> : vector<8x8xf32>
    %39 = tpu.matmul %2, %38, %cst_30 {dimension_numbers = #tpu.dot_dimension_numbers<[1], [0], [0], [1], [0, 0, 1, 1], [], []>} : vector<8x32xbf16>, vector<32x8xbf16>, vector<8x8xf32> -> vector<8x8xf32>
    %c1_31 = arith.constant 1 : index
    %c0_32 = arith.constant 0 : index
    %c0_33 = arith.constant 0 : index
    %40 = vector.load %arg3[%c1_31, %c0_32, %c0_33] : memref<4x32x8xbf16, #tpu.memory_space<vmem>>, vector<1x32x8xbf16>
    %41 = vector.shape_cast %40 : vector<1x32x8xbf16> to vector<32x8xbf16>
    %cst_34 = arith.constant dense<0.000000e+00> : vector<8x8xf32>
    %42 = tpu.matmul %2, %41, %cst_34 {dimension_numbers = #tpu.dot_dimension_numbers<[1], [0], [0], [1], [0, 0, 1, 1], [], []>} : vector<8x32xbf16>, vector<32x8xbf16>, vector<8x8xf32> -> vector<8x8xf32>
    %c1_35 = arith.constant 1 : index
    %c0_36 = arith.constant 0 : index
    %c0_37 = arith.constant 0 : index
    %43 = vector.load %arg4[%c1_35, %c0_36, %c0_37] : memref<4x32x8xbf16, #tpu.memory_space<vmem>>, vector<1x32x8xbf16>
    %44 = vector.shape_cast %43 : vector<1x32x8xbf16> to vector<32x8xbf16>
    %cst_38 = arith.constant dense<0.000000e+00> : vector<8x8xf32>
    %45 = tpu.matmul %2, %44, %cst_38 {dimension_numbers = #tpu.dot_dimension_numbers<[1], [0], [0], [1], [0, 0, 1, 1], [], []>} : vector<8x32xbf16>, vector<32x8xbf16>, vector<8x8xf32> -> vector<8x8xf32>
    %46 = arith.truncf %39 : vector<8x8xf32> to vector<8x8xbf16>
    %47 = arith.truncf %42 : vector<8x8xf32> to vector<8x8xbf16>
    %cst_39 = arith.constant dense<0.000000e+00> : vector<8x8xf32>
    %48 = tpu.matmul %46, %47, %cst_39 {dimension_numbers = #tpu.dot_dimension_numbers<[1], [1], [0], [0], [0, 0, 1, 0], [], []>} : vector<8x8xbf16>, vector<8x8xbf16>, vector<8x8xf32> -> vector<8x8xf32>
    %cst_40 = arith.constant dense<0xFF800000> : vector<8xf32>
    %49 = vector.multi_reduction <maximumf>, %48, %cst_40 [1] : vector<8x8xf32> to vector<8xf32>
    %50 = vector.shape_cast %49 : vector<8xf32> to vector<8x1xf32>
    %51 = vector.broadcast %50 : vector<8x1xf32> to vector<8x8xf32>
    %52 = arith.subf %48, %51 : vector<8x8xf32>
    %53 = math.exp %52 : vector<8x8xf32>
    %cst_41 = arith.constant dense<0.000000e+00> : vector<8xf32>
    %54 = vector.multi_reduction <add>, %53, %cst_41 [1] : vector<8x8xf32> to vector<8xf32>
    %55 = vector.shape_cast %54 : vector<8xf32> to vector<8x1xf32>
    %56 = tpu.reciprocal %55 {approx = true} : vector<8x1xf32> -> vector<8x1xf32>
    %57 = vector.broadcast %56 : vector<8x1xf32> to vector<8x8xf32>
    %58 = arith.mulf %53, %57 : vector<8x8xf32>
    %59 = arith.truncf %58 : vector<8x8xf32> to vector<8x8xbf16>
    %60 = arith.truncf %45 : vector<8x8xf32> to vector<8x8xbf16>
    %cst_42 = arith.constant dense<0.000000e+00> : vector<8x8xf32>
    %61 = tpu.matmul %59, %60, %cst_42 {dimension_numbers = #tpu.dot_dimension_numbers<[1], [0], [0], [1], [0, 0, 1, 1], [], []>} : vector<8x8xbf16>, vector<8x8xbf16>, vector<8x8xf32> -> vector<8x8xf32>
    %c0_43 = arith.constant 0 : index
    %c0_44 = arith.constant 0 : index
    %62 = vector.load %arg7[%c0_43, %c0_44] : memref<8x32xf32, #tpu.memory_space<vmem>>, vector<8x32xf32>
    %63 = arith.truncf %61 : vector<8x8xf32> to vector<8x8xbf16>
    %c1_45 = arith.constant 1 : index
    %c0_46 = arith.constant 0 : index
    %c0_47 = arith.constant 0 : index
    %64 = vector.load %arg5[%c1_45, %c0_46, %c0_47] : memref<4x8x32xbf16, #tpu.memory_space<vmem>>, vector<1x8x32xbf16>
    %65 = vector.shape_cast %64 : vector<1x8x32xbf16> to vector<8x32xbf16>
    %cst_48 = arith.constant dense<0.000000e+00> : vector<8x32xf32>
    %66 = tpu.matmul %63, %65, %cst_48 {dimension_numbers = #tpu.dot_dimension_numbers<[1], [0], [0], [1], [0, 0, 1, 1], [], []>} : vector<8x8xbf16>, vector<8x32xbf16>, vector<8x32xf32> -> vector<8x32xf32>
    %67 = arith.addf %62, %66 : vector<8x32xf32>
    %c0_49 = arith.constant 0 : index
    %c0_50 = arith.constant 0 : index
    %68 = vector.load %arg7[%c0_49, %c0_50] : memref<8x32xf32, #tpu.memory_space<vmem>>, vector<8x32xf32>
    tpu.vector_store %arg7[%c0_49, %c0_50], %67 {strides = array<i32>} : memref<8x32xf32, #tpu.memory_space<vmem>>, vector<8x32xf32>,
    %c2 = arith.constant 2 : index
    %c0_51 = arith.constant 0 : index
    %c0_52 = arith.constant 0 : index
    %69 = vector.load %arg2[%c2, %c0_51, %c0_52] : memref<4x32x8xbf16, #tpu.memory_space<vmem>>, vector<1x32x8xbf16>
    %70 = vector.shape_cast %69 : vector<1x32x8xbf16> to vector<32x8xbf16>
    %cst_53 = arith.constant dense<0.000000e+00> : vector<8x8xf32>
    %71 = tpu.matmul %2, %70, %cst_53 {dimension_numbers = #tpu.dot_dimension_numbers<[1], [0], [0], [1], [0, 0, 1, 1], [], []>} : vector<8x32xbf16>, vector<32x8xbf16>, vector<8x8xf32> -> vector<8x8xf32>
    %c2_54 = arith.constant 2 : index
    %c0_55 = arith.constant 0 : index
    %c0_56 = arith.constant 0 : index
    %72 = vector.load %arg3[%c2_54, %c0_55, %c0_56] : memref<4x32x8xbf16, #tpu.memory_space<vmem>>, vector<1x32x8xbf16>
    %73 = vector.shape_cast %72 : vector<1x32x8xbf16> to vector<32x8xbf16>
    %cst_57 = arith.constant dense<0.000000e+00> : vector<8x8xf32>
    %74 = tpu.matmul %2, %73, %cst_57 {dimension_numbers = #tpu.dot_dimension_numbers<[1], [0], [0], [1], [0, 0, 1, 1], [], []>} : vector<8x32xbf16>, vector<32x8xbf16>, vector<8x8xf32> -> vector<8x8xf32>
    %c2_58 = arith.constant 2 : index
    %c0_59 = arith.constant 0 : index
    %c0_60 = arith.constant 0 : index
    %75 = vector.load %arg4[%c2_58, %c0_59, %c0_60] : memref<4x32x8xbf16, #tpu.memory_space<vmem>>, vector<1x32x8xbf16>
    %76 = vector.shape_cast %75 : vector<1x32x8xbf16> to vector<32x8xbf16>
    %cst_61 = arith.constant dense<0.000000e+00> : vector<8x8xf32>
    %77 = tpu.matmul %2, %76, %cst_61 {dimension_numbers = #tpu.dot_dimension_numbers<[1], [0], [0], [1], [0, 0, 1, 1], [], []>} : vector<8x32xbf16>, vector<32x8xbf16>, vector<8x8xf32> -> vector<8x8xf32>
    %78 = arith.truncf %71 : vector<8x8xf32> to vector<8x8xbf16>
    %79 = arith.truncf %74 : vector<8x8xf32> to vector<8x8xbf16>
    %cst_62 = arith.constant dense<0.000000e+00> : vector<8x8xf32>
    %80 = tpu.matmul %78, %79, %cst_62 {dimension_numbers = #tpu.dot_dimension_numbers<[1], [1], [0], [0], [0, 0, 1, 0], [], []>} : vector<8x8xbf16>, vector<8x8xbf16>, vector<8x8xf32> -> vector<8x8xf32>
    %cst_63 = arith.constant dense<0xFF800000> : vector<8xf32>
    %81 = vector.multi_reduction <maximumf>, %80, %cst_63 [1] : vector<8x8xf32> to vector<8xf32>
    %82 = vector.shape_cast %81 : vector<8xf32> to vector<8x1xf32>
    %83 = vector.broadcast %82 : vector<8x1xf32> to vector<8x8xf32>
    %84 = arith.subf %80, %83 : vector<8x8xf32>
    %85 = math.exp %84 : vector<8x8xf32>
    %cst_64 = arith.constant dense<0.000000e+00> : vector<8xf32>
    %86 = vector.multi_reduction <add>, %85, %cst_64 [1] : vector<8x8xf32> to vector<8xf32>
    %87 = vector.shape_cast %86 : vector<8xf32> to vector<8x1xf32>
    %88 = tpu.reciprocal %87 {approx = true} : vector<8x1xf32> -> vector<8x1xf32>
    %89 = vector.broadcast %88 : vector<8x1xf32> to vector<8x8xf32>
    %90 = arith.mulf %85, %89 : vector<8x8xf32>
    %91 = arith.truncf %90 : vector<8x8xf32> to vector<8x8xbf16>
    %92 = arith.truncf %77 : vector<8x8xf32> to vector<8x8xbf16>
    %cst_65 = arith.constant dense<0.000000e+00> : vector<8x8xf32>
    %93 = tpu.matmul %91, %92, %cst_65 {dimension_numbers = #tpu.dot_dimension_numbers<[1], [0], [0], [1], [0, 0, 1, 1], [], []>} : vector<8x8xbf16>, vector<8x8xbf16>, vector<8x8xf32> -> vector<8x8xf32>
    %c0_66 = arith.constant 0 : index
    %c0_67 = arith.constant 0 : index
    %94 = vector.load %arg7[%c0_66, %c0_67] : memref<8x32xf32, #tpu.memory_space<vmem>>, vector<8x32xf32>
    %95 = arith.truncf %93 : vector<8x8xf32> to vector<8x8xbf16>
    %c2_68 = arith.constant 2 : index
    %c0_69 = arith.constant 0 : index
    %c0_70 = arith.constant 0 : index
    %96 = vector.load %arg5[%c2_68, %c0_69, %c0_70] : memref<4x8x32xbf16, #tpu.memory_space<vmem>>, vector<1x8x32xbf16>
    %97 = vector.shape_cast %96 : vector<1x8x32xbf16> to vector<8x32xbf16>
    %cst_71 = arith.constant dense<0.000000e+00> : vector<8x32xf32>
    %98 = tpu.matmul %95, %97, %cst_71 {dimension_numbers = #tpu.dot_dimension_numbers<[1], [0], [0], [1], [0, 0, 1, 1], [], []>} : vector<8x8xbf16>, vector<8x32xbf16>, vector<8x32xf32> -> vector<8x32xf32>
    %99 = arith.addf %94, %98 : vector<8x32xf32>
    %c0_72 = arith.constant 0 : index
    %c0_73 = arith.constant 0 : index
    %100 = vector.load %arg7[%c0_72, %c0_73] : memref<8x32xf32, #tpu.memory_space<vmem>>, vector<8x32xf32>
    tpu.vector_store %arg7[%c0_72, %c0_73], %99 {strides = array<i32>} : memref<8x32xf32, #tpu.memory_space<vmem>>, vector<8x32xf32>,
    %c3 = arith.constant 3 : index
    %c0_74 = arith.constant 0 : index
    %c0_75 = arith.constant 0 : index
    %101 = vector.load %arg2[%c3, %c0_74, %c0_75] : memref<4x32x8xbf16, #tpu.memory_space<vmem>>, vector<1x32x8xbf16>
    %102 = vector.shape_cast %101 : vector<1x32x8xbf16> to vector<32x8xbf16>
    %cst_76 = arith.constant dense<0.000000e+00> : vector<8x8xf32>
    %103 = tpu.matmul %2, %102, %cst_76 {dimension_numbers = #tpu.dot_dimension_numbers<[1], [0], [0], [1], [0, 0, 1, 1], [], []>} : vector<8x32xbf16>, vector<32x8xbf16>, vector<8x8xf32> -> vector<8x8xf32>
    %c3_77 = arith.constant 3 : index
    %c0_78 = arith.constant 0 : index
    %c0_79 = arith.constant 0 : index
    %104 = vector.load %arg3[%c3_77, %c0_78, %c0_79] : memref<4x32x8xbf16, #tpu.memory_space<vmem>>, vector<1x32x8xbf16>
    %105 = vector.shape_cast %104 : vector<1x32x8xbf16> to vector<32x8xbf16>
    %cst_80 = arith.constant dense<0.000000e+00> : vector<8x8xf32>
    %106 = tpu.matmul %2, %105, %cst_80 {dimension_numbers = #tpu.dot_dimension_numbers<[1], [0], [0], [1], [0, 0, 1, 1], [], []>} : vector<8x32xbf16>, vector<32x8xbf16>, vector<8x8xf32> -> vector<8x8xf32>
    %c3_81 = arith.constant 3 : index
    %c0_82 = arith.constant 0 : index
    %c0_83 = arith.constant 0 : index
    %107 = vector.load %arg4[%c3_81, %c0_82, %c0_83] : memref<4x32x8xbf16, #tpu.memory_space<vmem>>, vector<1x32x8xbf16>
    %108 = vector.shape_cast %107 : vector<1x32x8xbf16> to vector<32x8xbf16>
    %cst_84 = arith.constant dense<0.000000e+00> : vector<8x8xf32>
    %109 = tpu.matmul %2, %108, %cst_84 {dimension_numbers = #tpu.dot_dimension_numbers<[1], [0], [0], [1], [0, 0, 1, 1], [], []>} : vector<8x32xbf16>, vector<32x8xbf16>, vector<8x8xf32> -> vector<8x8xf32>
    %110 = arith.truncf %103 : vector<8x8xf32> to vector<8x8xbf16>
    %111 = arith.truncf %106 : vector<8x8xf32> to vector<8x8xbf16>
    %cst_85 = arith.constant dense<0.000000e+00> : vector<8x8xf32>
    %112 = tpu.matmul %110, %111, %cst_85 {dimension_numbers = #tpu.dot_dimension_numbers<[1], [1], [0], [0], [0, 0, 1, 0], [], []>} : vector<8x8xbf16>, vector<8x8xbf16>, vector<8x8xf32> -> vector<8x8xf32>
    %cst_86 = arith.constant dense<0xFF800000> : vector<8xf32>
    %113 = vector.multi_reduction <maximumf>, %112, %cst_86 [1] : vector<8x8xf32> to vector<8xf32>
    %114 = vector.shape_cast %113 : vector<8xf32> to vector<8x1xf32>
    %115 = vector.broadcast %114 : vector<8x1xf32> to vector<8x8xf32>
    %116 = arith.subf %112, %115 : vector<8x8xf32>
    %117 = math.exp %116 : vector<8x8xf32>
    %cst_87 = arith.constant dense<0.000000e+00> : vector<8xf32>
    %118 = vector.multi_reduction <add>, %117, %cst_87 [1] : vector<8x8xf32> to vector<8xf32>
    %119 = vector.shape_cast %118 : vector<8xf32> to vector<8x1xf32>
    %120 = tpu.reciprocal %119 {approx = true} : vector<8x1xf32> -> vector<8x1xf32>
    %121 = vector.broadcast %120 : vector<8x1xf32> to vector<8x8xf32>
    %122 = arith.mulf %117, %121 : vector<8x8xf32>
    %123 = arith.truncf %122 : vector<8x8xf32> to vector<8x8xbf16>
    %124 = arith.truncf %109 : vector<8x8xf32> to vector<8x8xbf16>
    %cst_88 = arith.constant dense<0.000000e+00> : vector<8x8xf32>
    %125 = tpu.matmul %123, %124, %cst_88 {dimension_numbers = #tpu.dot_dimension_numbers<[1], [0], [0], [1], [0, 0, 1, 1], [], []>} : vector<8x8xbf16>, vector<8x8xbf16>, vector<8x8xf32> -> vector<8x8xf32>
    %c0_89 = arith.constant 0 : index
    %c0_90 = arith.constant 0 : index
    %126 = vector.load %arg7[%c0_89, %c0_90] : memref<8x32xf32, #tpu.memory_space<vmem>>, vector<8x32xf32>
    %127 = arith.truncf %125 : vector<8x8xf32> to vector<8x8xbf16>
    %c3_91 = arith.constant 3 : index
    %c0_92 = arith.constant 0 : index
    %c0_93 = arith.constant 0 : index
    %128 = vector.load %arg5[%c3_91, %c0_92, %c0_93] : memref<4x8x32xbf16, #tpu.memory_space<vmem>>, vector<1x8x32xbf16>
    %129 = vector.shape_cast %128 : vector<1x8x32xbf16> to vector<8x32xbf16>
    %cst_94 = arith.constant dense<0.000000e+00> : vector<8x32xf32>
    %130 = tpu.matmul %127, %129, %cst_94 {dimension_numbers = #tpu.dot_dimension_numbers<[1], [0], [0], [1], [0, 0, 1, 1], [], []>} : vector<8x8xbf16>, vector<8x32xbf16>, vector<8x32xf32> -> vector<8x32xf32>
    %131 = arith.addf %126, %130 : vector<8x32xf32>
    %c0_95 = arith.constant 0 : index
    %c0_96 = arith.constant 0 : index
    %132 = vector.load %arg7[%c0_95, %c0_96] : memref<8x32xf32, #tpu.memory_space<vmem>>, vector<8x32xf32>
    tpu.vector_store %arg7[%c0_95, %c0_96], %131 {strides = array<i32>} : memref<8x32xf32, #tpu.memory_space<vmem>>, vector<8x32xf32>,
    %c0_97 = arith.constant 0 : index
    %c0_98 = arith.constant 0 : index
    %133 = vector.load %arg7[%c0_97, %c0_98] : memref<8x32xf32, #tpu.memory_space<vmem>>, vector<8x32xf32>
    %c0_99 = arith.constant 0 : index
    %c0_100 = arith.constant 0 : index
    %c0_101 = arith.constant 0 : index
    %134 = vector.load %arg6[%c0_99, %c0_100, %c0_101] : memref<2x8x32xf32, #tpu.memory_space<vmem>>, vector<1x8x32xf32>
    %135 = vector.shape_cast %134 : vector<1x8x32xf32> to vector<8x32xf32>
    %136 = vector.shape_cast %133 : vector<8x32xf32> to vector<1x8x32xf32>
    tpu.vector_store %arg6[%c0_99, %c0_100, %c0_101], %136 {strides = array<i32>} : memref<2x8x32xf32, #tpu.memory_space<vmem>>, vector<1x8x32xf32>,
    %c1_102 = arith.constant 1 : index
    %c0_103 = arith.constant 0 : index
    %c0_104 = arith.constant 0 : index
    %137 = vector.load %arg1[%c1_102, %c0_103, %c0_104] : memref<2x8x32xf32, #tpu.memory_space<vmem>>, vector<1x8x32xf32>
    %138 = vector.shape_cast %137 : vector<1x8x32xf32> to vector<8x32xf32>
    %139 = arith.truncf %138 : vector<8x32xf32> to vector<8x32xbf16>
    %cst_105 = arith.constant 0.000000e+00 : f32
    %140 = vector.broadcast %cst_105 : f32 to vector<8x32xf32>
    %c0_106 = arith.constant 0 : index
    %c0_107 = arith.constant 0 : index
    %141 = vector.load %arg7[%c0_106, %c0_107] : memref<8x32xf32, #tpu.memory_space<vmem>>, vector<8x32xf32>
    tpu.vector_store %arg7[%c0_106, %c0_107], %140 {strides = array<i32>} : memref<8x32xf32, #tpu.memory_space<vmem>>, vector<8x32xf32>,
    %c0_108 = arith.constant 0 : index
    %c0_109 = arith.constant 0 : index
    %c0_110 = arith.constant 0 : index
    %142 = vector.load %arg2[%c0_108, %c0_109, %c0_110] : memref<4x32x8xbf16, #tpu.memory_space<vmem>>, vector<1x32x8xbf16>
    %143 = vector.shape_cast %142 : vector<1x32x8xbf16> to vector<32x8xbf16>
    %cst_111 = arith.constant dense<0.000000e+00> : vector<8x8xf32>
    %144 = tpu.matmul %139, %143, %cst_111 {dimension_numbers = #tpu.dot_dimension_numbers<[1], [0], [0], [1], [0, 0, 1, 1], [], []>} : vector<8x32xbf16>, vector<32x8xbf16>, vector<8x8xf32> -> vector<8x8xf32>
    %c0_112 = arith.constant 0 : index
    %c0_113 = arith.constant 0 : index
    %c0_114 = arith.constant 0 : index
    %145 = vector.load %arg3[%c0_112, %c0_113, %c0_114] : memref<4x32x8xbf16, #tpu.memory_space<vmem>>, vector<1x32x8xbf16>
    %146 = vector.shape_cast %145 : vector<1x32x8xbf16> to vector<32x8xbf16>
    %cst_115 = arith.constant dense<0.000000e+00> : vector<8x8xf32>
    %147 = tpu.matmul %139, %146, %cst_115 {dimension_numbers = #tpu.dot_dimension_numbers<[1], [0], [0], [1], [0, 0, 1, 1], [], []>} : vector<8x32xbf16>, vector<32x8xbf16>, vector<8x8xf32> -> vector<8x8xf32>
    %c0_116 = arith.constant 0 : index
    %c0_117 = arith.constant 0 : index
    %c0_118 = arith.constant 0 : index
    %148 = vector.load %arg4[%c0_116, %c0_117, %c0_118] : memref<4x32x8xbf16, #tpu.memory_space<vmem>>, vector<1x32x8xbf16>
    %149 = vector.shape_cast %148 : vector<1x32x8xbf16> to vector<32x8xbf16>
    %cst_119 = arith.constant dense<0.000000e+00> : vector<8x8xf32>
    %150 = tpu.matmul %139, %149, %cst_119 {dimension_numbers = #tpu.dot_dimension_numbers<[1], [0], [0], [1], [0, 0, 1, 1], [], []>} : vector<8x32xbf16>, vector<32x8xbf16>, vector<8x8xf32> -> vector<8x8xf32>
    %151 = arith.truncf %144 : vector<8x8xf32> to vector<8x8xbf16>
    %152 = arith.truncf %147 : vector<8x8xf32> to vector<8x8xbf16>
    %cst_120 = arith.constant dense<0.000000e+00> : vector<8x8xf32>
    %153 = tpu.matmul %151, %152, %cst_120 {dimension_numbers = #tpu.dot_dimension_numbers<[1], [1], [0], [0], [0, 0, 1, 0], [], []>} : vector<8x8xbf16>, vector<8x8xbf16>, vector<8x8xf32> -> vector<8x8xf32>
    %cst_121 = arith.constant dense<0xFF800000> : vector<8xf32>
    %154 = vector.multi_reduction <maximumf>, %153, %cst_121 [1] : vector<8x8xf32> to vector<8xf32>
    %155 = vector.shape_cast %154 : vector<8xf32> to vector<8x1xf32>
    %156 = vector.broadcast %155 : vector<8x1xf32> to vector<8x8xf32>
    %157 = arith.subf %153, %156 : vector<8x8xf32>
    %158 = math.exp %157 : vector<8x8xf32>
    %cst_122 = arith.constant dense<0.000000e+00> : vector<8xf32>
    %159 = vector.multi_reduction <add>, %158, %cst_122 [1] : vector<8x8xf32> to vector<8xf32>
    %160 = vector.shape_cast %159 : vector<8xf32> to vector<8x1xf32>
    %161 = tpu.reciprocal %160 {approx = true} : vector<8x1xf32> -> vector<8x1xf32>
    %162 = vector.broadcast %161 : vector<8x1xf32> to vector<8x8xf32>
    %163 = arith.mulf %158, %162 : vector<8x8xf32>
    %164 = arith.truncf %163 : vector<8x8xf32> to vector<8x8xbf16>
    %165 = arith.truncf %150 : vector<8x8xf32> to vector<8x8xbf16>
    %cst_123 = arith.constant dense<0.000000e+00> : vector<8x8xf32>
    %166 = tpu.matmul %164, %165, %cst_123 {dimension_numbers = #tpu.dot_dimension_numbers<[1], [0], [0], [1], [0, 0, 1, 1], [], []>} : vector<8x8xbf16>, vector<8x8xbf16>, vector<8x8xf32> -> vector<8x8xf32>
    %c0_124 = arith.constant 0 : index
    %c0_125 = arith.constant 0 : index
    %167 = vector.load %arg7[%c0_124, %c0_125] : memref<8x32xf32, #tpu.memory_space<vmem>>, vector<8x32xf32>
    %168 = arith.truncf %166 : vector<8x8xf32> to vector<8x8xbf16>
    %c0_126 = arith.constant 0 : index
    %c0_127 = arith.constant 0 : index
    %c0_128 = arith.constant 0 : index
    %169 = vector.load %arg5[%c0_126, %c0_127, %c0_128] : memref<4x8x32xbf16, #tpu.memory_space<vmem>>, vector<1x8x32xbf16>
    %170 = vector.shape_cast %169 : vector<1x8x32xbf16> to vector<8x32xbf16>
    %cst_129 = arith.constant dense<0.000000e+00> : vector<8x32xf32>
    %171 = tpu.matmul %168, %170, %cst_129 {dimension_numbers = #tpu.dot_dimension_numbers<[1], [0], [0], [1], [0, 0, 1, 1], [], []>} : vector<8x8xbf16>, vector<8x32xbf16>, vector<8x32xf32> -> vector<8x32xf32>
    %172 = arith.addf %167, %171 : vector<8x32xf32>
    %c0_130 = arith.constant 0 : index
    %c0_131 = arith.constant 0 : index
    %173 = vector.load %arg7[%c0_130, %c0_131] : memref<8x32xf32, #tpu.memory_space<vmem>>, vector<8x32xf32>
    tpu.vector_store %arg7[%c0_130, %c0_131], %172 {strides = array<i32>} : memref<8x32xf32, #tpu.memory_space<vmem>>, vector<8x32xf32>,
    %c1_132 = arith.constant 1 : index
    %c0_133 = arith.constant 0 : index
    %c0_134 = arith.constant 0 : index
    %174 = vector.load %arg2[%c1_132, %c0_133, %c0_134] : memref<4x32x8xbf16, #tpu.memory_space<vmem>>, vector<1x32x8xbf16>
    %175 = vector.shape_cast %174 : vector<1x32x8xbf16> to vector<32x8xbf16>
    %cst_135 = arith.constant dense<0.000000e+00> : vector<8x8xf32>
    %176 = tpu.matmul %139, %175, %cst_135 {dimension_numbers = #tpu.dot_dimension_numbers<[1], [0], [0], [1], [0, 0, 1, 1], [], []>} : vector<8x32xbf16>, vector<32x8xbf16>, vector<8x8xf32> -> vector<8x8xf32>
    %c1_136 = arith.constant 1 : index
    %c0_137 = arith.constant 0 : index
    %c0_138 = arith.constant 0 : index
    %177 = vector.load %arg3[%c1_136, %c0_137, %c0_138] : memref<4x32x8xbf16, #tpu.memory_space<vmem>>, vector<1x32x8xbf16>
    %178 = vector.shape_cast %177 : vector<1x32x8xbf16> to vector<32x8xbf16>
    %cst_139 = arith.constant dense<0.000000e+00> : vector<8x8xf32>
    %179 = tpu.matmul %139, %178, %cst_139 {dimension_numbers = #tpu.dot_dimension_numbers<[1], [0], [0], [1], [0, 0, 1, 1], [], []>} : vector<8x32xbf16>, vector<32x8xbf16>, vector<8x8xf32> -> vector<8x8xf32>
    %c1_140 = arith.constant 1 : index
    %c0_141 = arith.constant 0 : index
    %c0_142 = arith.constant 0 : index
    %180 = vector.load %arg4[%c1_140, %c0_141, %c0_142] : memref<4x32x8xbf16, #tpu.memory_space<vmem>>, vector<1x32x8xbf16>
    %181 = vector.shape_cast %180 : vector<1x32x8xbf16> to vector<32x8xbf16>
    %cst_143 = arith.constant dense<0.000000e+00> : vector<8x8xf32>
    %182 = tpu.matmul %139, %181, %cst_143 {dimension_numbers = #tpu.dot_dimension_numbers<[1], [0], [0], [1], [0, 0, 1, 1], [], []>} : vector<8x32xbf16>, vector<32x8xbf16>, vector<8x8xf32> -> vector<8x8xf32>
    %183 = arith.truncf %176 : vector<8x8xf32> to vector<8x8xbf16>
    %184 = arith.truncf %179 : vector<8x8xf32> to vector<8x8xbf16>
    %cst_144 = arith.constant dense<0.000000e+00> : vector<8x8xf32>
    %185 = tpu.matmul %183, %184, %cst_144 {dimension_numbers = #tpu.dot_dimension_numbers<[1], [1], [0], [0], [0, 0, 1, 0], [], []>} : vector<8x8xbf16>, vector<8x8xbf16>, vector<8x8xf32> -> vector<8x8xf32>
    %cst_145 = arith.constant dense<0xFF800000> : vector<8xf32>
    %186 = vector.multi_reduction <maximumf>, %185, %cst_145 [1] : vector<8x8xf32> to vector<8xf32>
    %187 = vector.shape_cast %186 : vector<8xf32> to vector<8x1xf32>
    %188 = vector.broadcast %187 : vector<8x1xf32> to vector<8x8xf32>
    %189 = arith.subf %185, %188 : vector<8x8xf32>
    %190 = math.exp %189 : vector<8x8xf32>
    %cst_146 = arith.constant dense<0.000000e+00> : vector<8xf32>
    %191 = vector.multi_reduction <add>, %190, %cst_146 [1] : vector<8x8xf32> to vector<8xf32>
    %192 = vector.shape_cast %191 : vector<8xf32> to vector<8x1xf32>
    %193 = tpu.reciprocal %192 {approx = true} : vector<8x1xf32> -> vector<8x1xf32>
    %194 = vector.broadcast %193 : vector<8x1xf32> to vector<8x8xf32>
    %195 = arith.mulf %190, %194 : vector<8x8xf32>
    %196 = arith.truncf %195 : vector<8x8xf32> to vector<8x8xbf16>
    %197 = arith.truncf %182 : vector<8x8xf32> to vector<8x8xbf16>
    %cst_147 = arith.constant dense<0.000000e+00> : vector<8x8xf32>
    %198 = tpu.matmul %196, %197, %cst_147 {dimension_numbers = #tpu.dot_dimension_numbers<[1], [0], [0], [1], [0, 0, 1, 1], [], []>} : vector<8x8xbf16>, vector<8x8xbf16>, vector<8x8xf32> -> vector<8x8xf32>
    %c0_148 = arith.constant 0 : index
    %c0_149 = arith.constant 0 : index
    %199 = vector.load %arg7[%c0_148, %c0_149] : memref<8x32xf32, #tpu.memory_space<vmem>>, vector<8x32xf32>
    %200 = arith.truncf %198 : vector<8x8xf32> to vector<8x8xbf16>
    %c1_150 = arith.constant 1 : index
    %c0_151 = arith.constant 0 : index
    %c0_152 = arith.constant 0 : index
    %201 = vector.load %arg5[%c1_150, %c0_151, %c0_152] : memref<4x8x32xbf16, #tpu.memory_space<vmem>>, vector<1x8x32xbf16>
    %202 = vector.shape_cast %201 : vector<1x8x32xbf16> to vector<8x32xbf16>
    %cst_153 = arith.constant dense<0.000000e+00> : vector<8x32xf32>
    %203 = tpu.matmul %200, %202, %cst_153 {dimension_numbers = #tpu.dot_dimension_numbers<[1], [0], [0], [1], [0, 0, 1, 1], [], []>} : vector<8x8xbf16>, vector<8x32xbf16>, vector<8x32xf32> -> vector<8x32xf32>
    %204 = arith.addf %199, %203 : vector<8x32xf32>
    %c0_154 = arith.constant 0 : index
    %c0_155 = arith.constant 0 : index
    %205 = vector.load %arg7[%c0_154, %c0_155] : memref<8x32xf32, #tpu.memory_space<vmem>>, vector<8x32xf32>
    tpu.vector_store %arg7[%c0_154, %c0_155], %204 {strides = array<i32>} : memref<8x32xf32, #tpu.memory_space<vmem>>, vector<8x32xf32>,
    %c2_156 = arith.constant 2 : index
    %c0_157 = arith.constant 0 : index
    %c0_158 = arith.constant 0 : index
    %206 = vector.load %arg2[%c2_156, %c0_157, %c0_158] : memref<4x32x8xbf16, #tpu.memory_space<vmem>>, vector<1x32x8xbf16>
    %207 = vector.shape_cast %206 : vector<1x32x8xbf16> to vector<32x8xbf16>
    %cst_159 = arith.constant dense<0.000000e+00> : vector<8x8xf32>
    %208 = tpu.matmul %139, %207, %cst_159 {dimension_numbers = #tpu.dot_dimension_numbers<[1], [0], [0], [1], [0, 0, 1, 1], [], []>} : vector<8x32xbf16>, vector<32x8xbf16>, vector<8x8xf32> -> vector<8x8xf32>
    %c2_160 = arith.constant 2 : index
    %c0_161 = arith.constant 0 : index
    %c0_162 = arith.constant 0 : index
    %209 = vector.load %arg3[%c2_160, %c0_161, %c0_162] : memref<4x32x8xbf16, #tpu.memory_space<vmem>>, vector<1x32x8xbf16>
    %210 = vector.shape_cast %209 : vector<1x32x8xbf16> to vector<32x8xbf16>
    %cst_163 = arith.constant dense<0.000000e+00> : vector<8x8xf32>
    %211 = tpu.matmul %139, %210, %cst_163 {dimension_numbers = #tpu.dot_dimension_numbers<[1], [0], [0], [1], [0, 0, 1, 1], [], []>} : vector<8x32xbf16>, vector<32x8xbf16>, vector<8x8xf32> -> vector<8x8xf32>
    %c2_164 = arith.constant 2 : index
    %c0_165 = arith.constant 0 : index
    %c0_166 = arith.constant 0 : index
    %212 = vector.load %arg4[%c2_164, %c0_165, %c0_166] : memref<4x32x8xbf16, #tpu.memory_space<vmem>>, vector<1x32x8xbf16>
    %213 = vector.shape_cast %212 : vector<1x32x8xbf16> to vector<32x8xbf16>
    %cst_167 = arith.constant dense<0.000000e+00> : vector<8x8xf32>
    %214 = tpu.matmul %139, %213, %cst_167 {dimension_numbers = #tpu.dot_dimension_numbers<[1], [0], [0], [1], [0, 0, 1, 1], [], []>} : vector<8x32xbf16>, vector<32x8xbf16>, vector<8x8xf32> -> vector<8x8xf32>
    %215 = arith.truncf %208 : vector<8x8xf32> to vector<8x8xbf16>
    %216 = arith.truncf %211 : vector<8x8xf32> to vector<8x8xbf16>
    %cst_168 = arith.constant dense<0.000000e+00> : vector<8x8xf32>
    %217 = tpu.matmul %215, %216, %cst_168 {dimension_numbers = #tpu.dot_dimension_numbers<[1], [1], [0], [0], [0, 0, 1, 0], [], []>} : vector<8x8xbf16>, vector<8x8xbf16>, vector<8x8xf32> -> vector<8x8xf32>
    %cst_169 = arith.constant dense<0xFF800000> : vector<8xf32>
    %218 = vector.multi_reduction <maximumf>, %217, %cst_169 [1] : vector<8x8xf32> to vector<8xf32>
    %219 = vector.shape_cast %218 : vector<8xf32> to vector<8x1xf32>
    %220 = vector.broadcast %219 : vector<8x1xf32> to vector<8x8xf32>
    %221 = arith.subf %217, %220 : vector<8x8xf32>
    %222 = math.exp %221 : vector<8x8xf32>
    %cst_170 = arith.constant dense<0.000000e+00> : vector<8xf32>
    %223 = vector.multi_reduction <add>, %222, %cst_170 [1] : vector<8x8xf32> to vector<8xf32>
    %224 = vector.shape_cast %223 : vector<8xf32> to vector<8x1xf32>
    %225 = tpu.reciprocal %224 {approx = true} : vector<8x1xf32> -> vector<8x1xf32>
    %226 = vector.broadcast %225 : vector<8x1xf32> to vector<8x8xf32>
    %227 = arith.mulf %222, %226 : vector<8x8xf32>
    %228 = arith.truncf %227 : vector<8x8xf32> to vector<8x8xbf16>
    %229 = arith.truncf %214 : vector<8x8xf32> to vector<8x8xbf16>
    %cst_171 = arith.constant dense<0.000000e+00> : vector<8x8xf32>
    %230 = tpu.matmul %228, %229, %cst_171 {dimension_numbers = #tpu.dot_dimension_numbers<[1], [0], [0], [1], [0, 0, 1, 1], [], []>} : vector<8x8xbf16>, vector<8x8xbf16>, vector<8x8xf32> -> vector<8x8xf32>
    %c0_172 = arith.constant 0 : index
    %c0_173 = arith.constant 0 : index
    %231 = vector.load %arg7[%c0_172, %c0_173] : memref<8x32xf32, #tpu.memory_space<vmem>>, vector<8x32xf32>
    %232 = arith.truncf %230 : vector<8x8xf32> to vector<8x8xbf16>
    %c2_174 = arith.constant 2 : index
    %c0_175 = arith.constant 0 : index
    %c0_176 = arith.constant 0 : index
    %233 = vector.load %arg5[%c2_174, %c0_175, %c0_176] : memref<4x8x32xbf16, #tpu.memory_space<vmem>>, vector<1x8x32xbf16>
    %234 = vector.shape_cast %233 : vector<1x8x32xbf16> to vector<8x32xbf16>
    %cst_177 = arith.constant dense<0.000000e+00> : vector<8x32xf32>
    %235 = tpu.matmul %232, %234, %cst_177 {dimension_numbers = #tpu.dot_dimension_numbers<[1], [0], [0], [1], [0, 0, 1, 1], [], []>} : vector<8x8xbf16>, vector<8x32xbf16>, vector<8x32xf32> -> vector<8x32xf32>
    %236 = arith.addf %231, %235 : vector<8x32xf32>
    %c0_178 = arith.constant 0 : index
    %c0_179 = arith.constant 0 : index
    %237 = vector.load %arg7[%c0_178, %c0_179] : memref<8x32xf32, #tpu.memory_space<vmem>>, vector<8x32xf32>
    tpu.vector_store %arg7[%c0_178, %c0_179], %236 {strides = array<i32>} : memref<8x32xf32, #tpu.memory_space<vmem>>, vector<8x32xf32>,
    %c3_180 = arith.constant 3 : index
    %c0_181 = arith.constant 0 : index
    %c0_182 = arith.constant 0 : index
    %238 = vector.load %arg2[%c3_180, %c0_181, %c0_182] : memref<4x32x8xbf16, #tpu.memory_space<vmem>>, vector<1x32x8xbf16>
    %239 = vector.shape_cast %238 : vector<1x32x8xbf16> to vector<32x8xbf16>
    %cst_183 = arith.constant dense<0.000000e+00> : vector<8x8xf32>
    %240 = tpu.matmul %139, %239, %cst_183 {dimension_numbers = #tpu.dot_dimension_numbers<[1], [0], [0], [1], [0, 0, 1, 1], [], []>} : vector<8x32xbf16>, vector<32x8xbf16>, vector<8x8xf32> -> vector<8x8xf32>
    %c3_184 = arith.constant 3 : index
    %c0_185 = arith.constant 0 : index
    %c0_186 = arith.constant 0 : index
    %241 = vector.load %arg3[%c3_184, %c0_185, %c0_186] : memref<4x32x8xbf16, #tpu.memory_space<vmem>>, vector<1x32x8xbf16>
    %242 = vector.shape_cast %241 : vector<1x32x8xbf16> to vector<32x8xbf16>
    %cst_187 = arith.constant dense<0.000000e+00> : vector<8x8xf32>
    %243 = tpu.matmul %139, %242, %cst_187 {dimension_numbers = #tpu.dot_dimension_numbers<[1], [0], [0], [1], [0, 0, 1, 1], [], []>} : vector<8x32xbf16>, vector<32x8xbf16>, vector<8x8xf32> -> vector<8x8xf32>
    %c3_188 = arith.constant 3 : index
    %c0_189 = arith.constant 0 : index
    %c0_190 = arith.constant 0 : index
    %244 = vector.load %arg4[%c3_188, %c0_189, %c0_190] : memref<4x32x8xbf16, #tpu.memory_space<vmem>>, vector<1x32x8xbf16>
    %245 = vector.shape_cast %244 : vector<1x32x8xbf16> to vector<32x8xbf16>
    %cst_191 = arith.constant dense<0.000000e+00> : vector<8x8xf32>
    %246 = tpu.matmul %139, %245, %cst_191 {dimension_numbers = #tpu.dot_dimension_numbers<[1], [0], [0], [1], [0, 0, 1, 1], [], []>} : vector<8x32xbf16>, vector<32x8xbf16>, vector<8x8xf32> -> vector<8x8xf32>
    %247 = arith.truncf %240 : vector<8x8xf32> to vector<8x8xbf16>
    %248 = arith.truncf %243 : vector<8x8xf32> to vector<8x8xbf16>
    %cst_192 = arith.constant dense<0.000000e+00> : vector<8x8xf32>
    %249 = tpu.matmul %247, %248, %cst_192 {dimension_numbers = #tpu.dot_dimension_numbers<[1], [1], [0], [0], [0, 0, 1, 0], [], []>} : vector<8x8xbf16>, vector<8x8xbf16>, vector<8x8xf32> -> vector<8x8xf32>
    %cst_193 = arith.constant dense<0xFF800000> : vector<8xf32>
    %250 = vector.multi_reduction <maximumf>, %249, %cst_193 [1] : vector<8x8xf32> to vector<8xf32>
    %251 = vector.shape_cast %250 : vector<8xf32> to vector<8x1xf32>
    %252 = vector.broadcast %251 : vector<8x1xf32> to vector<8x8xf32>
    %253 = arith.subf %249, %252 : vector<8x8xf32>
    %254 = math.exp %253 : vector<8x8xf32>
    %cst_194 = arith.constant dense<0.000000e+00> : vector<8xf32>
    %255 = vector.multi_reduction <add>, %254, %cst_194 [1] : vector<8x8xf32> to vector<8xf32>
    %256 = vector.shape_cast %255 : vector<8xf32> to vector<8x1xf32>
    %257 = tpu.reciprocal %256 {approx = true} : vector<8x1xf32> -> vector<8x1xf32>
    %258 = vector.broadcast %257 : vector<8x1xf32> to vector<8x8xf32>
    %259 = arith.mulf %254, %258 : vector<8x8xf32>
    %260 = arith.truncf %259 : vector<8x8xf32> to vector<8x8xbf16>
    %261 = arith.truncf %246 : vector<8x8xf32> to vector<8x8xbf16>
    %cst_195 = arith.constant dense<0.000000e+00> : vector<8x8xf32>
    %262 = tpu.matmul %260, %261, %cst_195 {dimension_numbers = #tpu.dot_dimension_numbers<[1], [0], [0], [1], [0, 0, 1, 1], [], []>} : vector<8x8xbf16>, vector<8x8xbf16>, vector<8x8xf32> -> vector<8x8xf32>
    %c0_196 = arith.constant 0 : index
    %c0_197 = arith.constant 0 : index
    %263 = vector.load %arg7[%c0_196, %c0_197] : memref<8x32xf32, #tpu.memory_space<vmem>>, vector<8x32xf32>
    %264 = arith.truncf %262 : vector<8x8xf32> to vector<8x8xbf16>
    %c3_198 = arith.constant 3 : index
    %c0_199 = arith.constant 0 : index
    %c0_200 = arith.constant 0 : index
    %265 = vector.load %arg5[%c3_198, %c0_199, %c0_200] : memref<4x8x32xbf16, #tpu.memory_space<vmem>>, vector<1x8x32xbf16>
    %266 = vector.shape_cast %265 : vector<1x8x32xbf16> to vector<8x32xbf16>
    %cst_201 = arith.constant dense<0.000000e+00> : vector<8x32xf32>
    %267 = tpu.matmul %264, %266, %cst_201 {dimension_numbers = #tpu.dot_dimension_numbers<[1], [0], [0], [1], [0, 0, 1, 1], [], []>} : vector<8x8xbf16>, vector<8x32xbf16>, vector<8x32xf32> -> vector<8x32xf32>
    %268 = arith.addf %263, %267 : vector<8x32xf32>
    %c0_202 = arith.constant 0 : index
    %c0_203 = arith.constant 0 : index
    %269 = vector.load %arg7[%c0_202, %c0_203] : memref<8x32xf32, #tpu.memory_space<vmem>>, vector<8x32xf32>
    tpu.vector_store %arg7[%c0_202, %c0_203], %268 {strides = array<i32>} : memref<8x32xf32, #tpu.memory_space<vmem>>, vector<8x32xf32>,
    %c0_204 = arith.constant 0 : index
    %c0_205 = arith.constant 0 : index
    %270 = vector.load %arg7[%c0_204, %c0_205] : memref<8x32xf32, #tpu.memory_space<vmem>>, vector<8x32xf32>
    %c1_206 = arith.constant 1 : index
    %c0_207 = arith.constant 0 : index
    %c0_208 = arith.constant 0 : index
    %271 = vector.load %arg6[%c1_206, %c0_207, %c0_208] : memref<2x8x32xf32, #tpu.memory_space<vmem>>, vector<1x8x32xf32>
    %272 = vector.shape_cast %271 : vector<1x8x32xf32> to vector<8x32xf32>
    %273 = vector.shape_cast %270 : vector<8x32xf32> to vector<1x8x32xf32>
    tpu.vector_store %arg6[%c1_206, %c0_207, %c0_208], %273 {strides = array<i32>} : memref<2x8x32xf32, #tpu.memory_space<vmem>>, vector<1x8x32xf32>,
    return
  }
  func.func @transform_0(%arg0: i32) -> (i32, i32, i32) {
    %c0_i32 = arith.constant 0 : i32
    %c0_i32_0 = arith.constant 0 : i32
    %c0_i32_1 = arith.constant 0 : i32
    return %arg0, %c0_i32, %c0_i32_0 : i32, i32, i32
  }
  func.func @transform_1(%arg0: i32) -> (i32, i32, i32) {
    %c0_i32 = arith.constant 0 : i32
    %c0_i32_0 = arith.constant 0 : i32
    %c0_i32_1 = arith.constant 0 : i32
    %c0_i32_2 = arith.constant 0 : i32
    return %c0_i32, %c0_i32_0, %c0_i32_1 : i32, i32, i32
  }
  func.func @transform_2(%arg0: i32) -> (i32, i32, i32) {
    %c0_i32 = arith.constant 0 : i32
    %c0_i32_0 = arith.constant 0 : i32
    %c0_i32_1 = arith.constant 0 : i32
    %c0_i32_2 = arith.constant 0 : i32
    return %c0_i32, %c0_i32_0, %c0_i32_1 : i32, i32, i32
  }
  func.func @transform_3(%arg0: i32) -> (i32, i32, i32) {
    %c0_i32 = arith.constant 0 : i32
    %c0_i32_0 = arith.constant 0 : i32
    %c0_i32_1 = arith.constant 0 : i32
    %c0_i32_2 = arith.constant 0 : i32
    return %c0_i32, %c0_i32_0, %c0_i32_1 : i32, i32, i32
  }
  func.func @transform_4(%arg0: i32) -> (i32, i32, i32) {
    %c0_i32 = arith.constant 0 : i32
    %c0_i32_0 = arith.constant 0 : i32
    %c0_i32_1 = arith.constant 0 : i32
    %c0_i32_2 = arith.constant 0 : i32
    return %c0_i32, %c0_i32_0, %c0_i32_1 : i32, i32, i32
  }
  func.func @transform_5(%arg0: i32) -> (i32, i32, i32) {
    %c0_i32 = arith.constant 0 : i32
    %c0_i32_0 = arith.constant 0 : i32
    %c0_i32_1 = arith.constant 0 : i32
    return %arg0, %c0_i32, %c0_i32_0 : i32, i32, i32
  }
}

</mosaic_0001>

<llo_original>
// kernel: tpu_custom_call.1
$region0: #{tpu_custom_call.1}
  #allocation0 [shape = 'u32[]', space=smem, size = 0x4, offset = 0x4, fixed_abs, tag = 'smem constant byte address 0x4 - core index']
  #allocation1 [shape = 'u32[144,128]{1,0:T(1,128)}', space=vmem, size = 0x12000, scoped, tag = 'internal scratch']
  #allocation2 [shape = 'f32[8,32]{1,0:T(8,128)}', space=vmem, size = 0x1000, scoped, tag = 'scratch operand']
  %s0 = inlined_call_operand.vmem [shape: f32[2,8,32], index: 0, kind: input, shape index: {}]
  %s1 = inlined_call_operand.vmem [shape: bf16[4,32,8], index: 1, kind: input, shape index: {}]
  %s2 = inlined_call_operand.vmem [shape: bf16[4,32,8], index: 2, kind: input, shape index: {}]
  %s3 = inlined_call_operand.vmem [shape: bf16[4,32,8], index: 3, kind: input, shape index: {}]
  %s4 = inlined_call_operand.vmem [shape: bf16[4,8,32], index: 4, kind: input, shape index: {}]
  %s5 = inlined_call_operand.hbm [shape: f32[2,8,32], index: 5, kind: output, shape index: {}]
  %s6 = sld [smem:[#allocation0]]
  $region30: #{tpu_custom_call.1} parent=0
    _
  %s8 = ssub.s32 1, %s6
  %s9 = scalar_select 0, %s8, %s6
  $region1: #{tpu_custom_call.1} parent=0
    #allocation3 [shape = 'u8[8192]{0}', space=vmem, size = 0x2000, scoped, tag = 'output window, operand 0, single buffered']
    #allocation4 [shape = 's32[1]{0}', space=sflag, size = 0x4, scoped, tag = 'scoped memory for tpu_custom_call.1']
    %10 = vsyncpa [#allocation4], 0
    // Predicated region
    $region2: #{tpu_custom_call.1} parent=1 // pred_check
      _
    $region3: #{tpu_custom_call.1} parent=1 // pred_check_branch
      %12 = sbr.rel (0) target = $region5
    $region4: #{tpu_custom_call.1} parent=1 // pred_region
      _
    $region5: #{tpu_custom_call.1} parent=1 // pred_fallthru
      _
    // Predicated region
    $region6: #{tpu_custom_call.1} parent=1 // pred_check
      _
    $region7: #{tpu_custom_call.1} parent=1 // pred_check_branch
      %14 = sbr.rel (0) target = $region9
    $region8: #{tpu_custom_call.1} parent=1 // pred_region
      _
    $region9: #{tpu_custom_call.1} parent=1 // pred_fallthru
      _
    // Predicated region
    $region10: #{tpu_custom_call.1} parent=1 // pred_check
      _
    $region11: #{tpu_custom_call.1} parent=1 // pred_check_branch
      %16 = sbr.rel (0) target = $region13
    $region12: #{tpu_custom_call.1} parent=1 // pred_region
      _
    $region13: #{tpu_custom_call.1} parent=1 // pred_fallthru
      _
    // Predicated region
    $region14: #{tpu_custom_call.1} parent=1 // pred_check
      _
    $region15: #{tpu_custom_call.1} parent=1 // pred_check_branch
      %18 = sbr.rel (0) target = $region17
    $region16: #{tpu_custom_call.1} parent=1 // pred_region
      _
    $region17: #{tpu_custom_call.1} parent=1 // pred_fallthru
      _
    // Predicated region
    $region18: #{tpu_custom_call.1} parent=1 // pred_check
      _
    $region19: #{tpu_custom_call.1} parent=1 // pred_check_branch
      %20 = sbr.rel (0) target = $region21
    $region20: #{tpu_custom_call.1} parent=1 // pred_region
      _
    $region21: #{tpu_custom_call.1} parent=1 // pred_fallthru
      _
    %v22 = vld [vmem:[%s0] sm:$0xff]
    %v23 = vpack.c.bf16 %v22, %v22
    %vm24 = vcmask 261120
    %25 = vst.msk [vmem:[#allocation2] sm:$0xff] %vm24, 0.0
    %v26 = vld [vmem:[%s1] sm:$0xf]
    %v27 = vld [vmem:[%s1 + $0x4] sm:$0xf]
    %v28 = vld [vmem:[%s1 + $0x8] sm:$0xf]
    %v29 = vld [vmem:[%s1 + $0xc] sm:$0xf]
    %v34 = vunpack.c.l.b16 %v26
    %v35 = vunpack.c.l.b16 %v27
    %v36 = vunpack.c.l.b16 %v28
    %v37 = vunpack.c.l.b16 %v29
    %v38 = vpack.c.b16 %v35, %v34
    %v39 = vpack.c.b16 %v37, %v36
    %v43 = vsel %vm24, %v23, 0
    %45 = vmatprep.subr.bf16.mxu0 0
    %46 = vmatpush1.bf16.msra.mxu0 %v38
    %47 = vmatprep.subr.bf16.mxu0 0
    %48 = vmatpush1.bf16.msra.mxu0 %v39
    %49 = vmatprep.subr.bf16.mxu0 0
    %50 = vmatpush1.bf16.msra.mxu0 0
    %51 = vmatprep.subr.bf16.mxu0 0
    %52 = vmatpush1.bf16.msra.mxu0 0
    %53 = vmatprep.subr.bf16.mxu0 0
    %54 = vmatpush1.bf16.msra.mxu0 0
    %55 = vmatprep.subr.bf16.mxu0 0
    %56 = vmatpush1.bf16.msra.mxu0 0
    %57 = vmatprep.subr.bf16.mxu0 0
    %58 = vmatpush1.bf16.msra.mxu0 0
    %59 = vmatprep.subr.bf16.mxu0 0
    %60 = vmatpush1.bf16.msra.mxu0 0
    %61 = vmatprep.subr.bf16.mxu0 0
    %62 = vmatpush1.bf16.msra.mxu0 0
    %63 = vmatprep.subr.bf16.mxu0 0
    %64 = vmatpush1.bf16.msra.mxu0 0
    %65 = vmatprep.subr.bf16.mxu0 0
    %66 = vmatpush1.bf16.msra.mxu0 0
    %67 = vmatprep.subr.bf16.mxu0 0
    %68 = vmatpush1.bf16.msra.mxu0 0
    %69 = vmatprep.subr.bf16.mxu0 0
    %70 = vmatpush1.bf16.msra.mxu0 0
    %71 = vmatprep.subr.bf16.mxu0 0
    %72 = vmatpush1.bf16.msra.mxu0 0
    %73 = vmatprep.subr.bf16.mxu0 0
    %74 = vmatpush1.bf16.msra.mxu0 0
    %75 = vmatprep.subr.bf16.mxu0 0
    %76 = vmatpush1.bf16.msra.mxu0 0
    %77 = vmatprep.mubr.bf16.mxu0 0
    %78 = vmatmul.mubr.bf16.gmra.mrb[0].mxu0 %v43
    %v79 = vpop.f32.mrb[0].mxu0
    %v80 = vadd.f32 0.0, %v79
    %v81 = vpop.f32.mrb[0].mxu0
    %v82 = vpop.f32.mrb[0].mxu0
    %v83 = vpop.f32.mrb[0].mxu0
    %84 = vdwg.mxu0
    %v85 = vld [vmem:[%s2] sm:$0xf]
    %v86 = vld [vmem:[%s2 + $0x4] sm:$0xf]
    %v87 = vld [vmem:[%s2 + $0x8] sm:$0xf]
    %v88 = vld [vmem:[%s2 + $0xc] sm:$0xf]
    %v93 = vunpack.c.l.b16 %v85
    %v94 = vunpack.c.l.b16 %v86
    %v95 = vunpack.c.l.b16 %v87
    %v96 = vunpack.c.l.b16 %v88
    %v97 = vpack.c.b16 %v94, %v93
    %v98 = vpack.c.b16 %v96, %v95
    %101 = vmatprep.subr.bf16.mxu0 0
    %102 = vmatpush1.bf16.msra.mxu0 %v97
    %103 = vmatprep.subr.bf16.mxu0 0
    %104 = vmatpush1.bf16.msra.mxu0 %v98
    %105 = vmatprep.subr.bf16.mxu0 0
    %106 = vmatpush1.bf16.msra.mxu0 0
    %107 = vmatprep.subr.bf16.mxu0 0
    %108 = vmatpush1.bf16.msra.mxu0 0
    %109 = vmatprep.subr.bf16.mxu0 0
    %110 = vmatpush1.bf16.msra.mxu0 0
    %111 = vmatprep.subr.bf16.mxu0 0
    %112 = vmatpush1.bf16.msra.mxu0 0
    %113 = vmatprep.subr.bf16.mxu0 0
    %114 = vmatpush1.bf16.msra.mxu0 0
    %115 = vmatprep.subr.bf16.mxu0 0
    %116 = vmatpush1.bf16.msra.mxu0 0
    %117 = vmatprep.subr.bf16.mxu0 0
    %118 = vmatpush1.bf16.msra.mxu0 0
    %119 = vmatprep.subr.bf16.mxu0 0
    %120 = vmatpush1.bf16.msra.mxu0 0
    %121 = vmatprep.subr.bf16.mxu0 0
    %122 = vmatpush1.bf16.msra.mxu0 0
    %123 = vmatprep.subr.bf16.mxu0 0
    %124 = vmatpush1.bf16.msra.mxu0 0
    %125 = vmatprep.subr.bf16.mxu0 0
    %126 = vmatpush1.bf16.msra.mxu0 0
    %127 = vmatprep.subr.bf16.mxu0 0
    %128 = vmatpush1.bf16.msra.mxu0 0
    %129 = vmatprep.subr.bf16.mxu0 0
    %130 = vmatpush1.bf16.msra.mxu0 0
    %131 = vmatprep.subr.bf16.mxu0 0
    %132 = vmatpush1.bf16.msra.mxu0 0
    %133 = vmatprep.mubr.bf16.mxu0 0
    %134 = vmatmul.mubr.bf16.gmra.mrb[0].mxu0 %v43
    %v135 = vpop.f32.mrb[0].mxu0
    %v136 = vadd.f32 0.0, %v135
    %v137 = vpop.f32.mrb[0].mxu0
    %v138 = vpop.f32.mrb[0].mxu0
    %v139 = vpop.f32.mrb[0].mxu0
    %140 = vdwg.mxu0
    %v141 = vld [vmem:[%s3] sm:$0xf]
    %v142 = vld [vmem:[%s3 + $0x4] sm:$0xf]
    %v143 = vld [vmem:[%s3 + $0x8] sm:$0xf]
    %v144 = vld [vmem:[%s3 + $0xc] sm:$0xf]
    %v149 = vunpack.c.l.b16 %v141
    %v150 = vunpack.c.l.b16 %v142
    %v151 = vunpack.c.l.b16 %v143
    %v152 = vunpack.c.l.b16 %v144
    %v153 = vpack.c.b16 %v150, %v149
    %v154 = vpack.c.b16 %v152, %v151
    %157 = vmatprep.subr.bf16.mxu0 0
    %158 = vmatpush1.bf16.msra.mxu0 %v153
    %159 = vmatprep.subr.bf16.mxu0 0
    %160 = vmatpush1.bf16.msra.mxu0 %v154
    %161 = vmatprep.subr.bf16.mxu0 0
    %162 = vmatpush1.bf16.msra.mxu0 0
    %163 = vmatprep.subr.bf16.mxu0 0
    %164 = vmatpush1.bf16.msra.mxu0 0
    %165 = vmatprep.subr.bf16.mxu0 0
    %166 = vmatpush1.bf16.msra.mxu0 0
    %167 = vmatprep.subr.bf16.mxu0 0
    %168 = vmatpush1.bf16.msra.mxu0 0
    %169 = vmatprep.subr.bf16.mxu0 0
    %170 = vmatpush1.bf16.msra.mxu0 0
    %171 = vmatprep.subr.bf16.mxu0 0
    %172 = vmatpush1.bf16.msra.mxu0 0
    %173 = vmatprep.subr.bf16.mxu0 0
    %174 = vmatpush1.bf16.msra.mxu0 0
    %175 = vmatprep.subr.bf16.mxu0 0
    %176 = vmatpush1.bf16.msra.mxu0 0
    %177 = vmatprep.subr.bf16.mxu0 0
    %178 = vmatpush1.bf16.msra.mxu0 0
    %179 = vmatprep.subr.bf16.mxu0 0
    %180 = vmatpush1.bf16.msra.mxu0 0
    %181 = vmatprep.subr.bf16.mxu0 0
    %182 = vmatpush1.bf16.msra.mxu0 0
    %183 = vmatprep.subr.bf16.mxu0 0
    %184 = vmatpush1.bf16.msra.mxu0 0
    %185 = vmatprep.subr.bf16.mxu0 0
    %186 = vmatpush1.bf16.msra.mxu0 0
    %187 = vmatprep.subr.bf16.mxu0 0
    %188 = vmatpush1.bf16.msra.mxu0 0
    %189 = vmatprep.mubr.bf16.mxu0 0
    %190 = vmatmul.mubr.bf16.gmra.mrb[0].mxu0 %v43
    %v191 = vpop.f32.mrb[0].mxu0
    %v192 = vadd.f32 0.0, %v191
    %v193 = vpop.f32.mrb[0].mxu0
    %v194 = vpop.f32.mrb[0].mxu0
    %v195 = vpop.f32.mrb[0].mxu0
    %196 = vdwg.mxu0
    %v197 = vpack.c.bf16 %v80, %v80
    %v198 = vpack.c.bf16 %v136, %v136
    %vm199 = vcmask 64512
    %v201 = vsel %vm199, %v197, 0
    %v204 = vsel %vm199, %v198, 0
    %206 = vmatprep.subr.bf16.mxu0 0
    %207 = vmatpush1.bf16.xpose.msra.mxu0 %v204
    %208 = vmatprep.subr.bf16.mxu0 0
    %209 = vmatpush1.bf16.xpose.msra.mxu0 0
    %210 = vmatprep.subr.bf16.mxu0 0
    %211 = vmatpush1.bf16.xpose.msra.mxu0 0
    %212 = vmatprep.subr.bf16.mxu0 0
    %213 = vmatpush1.bf16.xpose.msra.mxu0 0
    %214 = vmatprep.subr.bf16.mxu0 0
    %215 = vmatpush1.bf16.xpose.msra.mxu0 0
    %216 = vmatprep.subr.bf16.mxu0 0
    %217 = vmatpush1.bf16.xpose.msra.mxu0 0
    %218 = vmatprep.subr.bf16.mxu0 0
    %219 = vmatpush1.bf16.xpose.msra.mxu0 0
    %220 = vmatprep.subr.bf16.mxu0 0
    %221 = vmatpush1.bf16.xpose.msra.mxu0 0
    %222 = vmatprep.subr.bf16.mxu0 0
    %223 = vmatpush1.bf16.xpose.msra.mxu0 0
    %224 = vmatprep.subr.bf16.mxu0 0
    %225 = vmatpush1.bf16.xpose.msra.mxu0 0
    %226 = vmatprep.subr.bf16.mxu0 0
    %227 = vmatpush1.bf16.xpose.msra.mxu0 0
    %228 = vmatprep.subr.bf16.mxu0 0
    %229 = vmatpush1.bf16.xpose.msra.mxu0 0
    %230 = vmatprep.subr.bf16.mxu0 0
    %231 = vmatpush1.bf16.xpose.msra.mxu0 0
    %232 = vmatprep.subr.bf16.mxu0 0
    %233 = vmatpush1.bf16.xpose.msra.mxu0 0
    %234 = vmatprep.subr.bf16.mxu0 0
    %235 = vmatpush1.bf16.xpose.msra.mxu0 0
    %236 = vmatprep.subr.bf16.mxu0 0
    %237 = vmatpush1.bf16.xpose.msra.mxu0 0
    %238 = vmatprep.mubr.bf16.mxu0 0
    %239 = vmatmul.mubr.bf16.gmra.mrb[0].mxu0 %v201
    %v240 = vpop.f32.mrb[0].mxu0
    %v241 = vadd.f32 0.0, %v240
    %v242 = vpop.f32.mrb[0].mxu0
    %v243 = vpop.f32.mrb[0].mxu0
    %v244 = vpop.f32.mrb[0].mxu0
    %245 = vdwg.mxu0
    %v246 = vsel %vm199, %v241, -inf
    %247 = vmax.xlane.f32.xlu0 %v246
    %v248 = vpop.xlane.xlu0 %247
    %v249 = vsub.f32 %v241, %v248
    %v250 = vmul.f32 %v249, 1.442695
    %v251 = vpow.pop %v250
    %v252 = vsel %vm199, %v251, 0.0
    %253 = vadd.xlane.f32.xlu0 %v252
    %v254 = vpop.xlane.xlu0 %253
    %v255 = vrcp.pop %v254
    %v256 = vmul.f32 %v251, %v255
    %v257 = vpack.c.bf16 %v256, %v256
    %v258 = vpack.c.bf16 %v192, %v192
    %v260 = vsel %vm199, %v257, 0
    %vm262 = vcmask 1043456
    %v264 = vsel %vm262, %v258, 0
    %266 = vmatprep.subr.bf16.mxu0 0
    %267 = vmatpush1.bf16.msra.mxu0 %v264
    %268 = vmatprep.subr.bf16.mxu0 0
    %269 = vmatpush1.bf16.msra.mxu0 0
    %270 = vmatprep.subr.bf16.mxu0 0
    %271 = vmatpush1.bf16.msra.mxu0 0
    %272 = vmatprep.subr.bf16.mxu0 0
    %273 = vmatpush1.bf16.msra.mxu0 0
    %274 = vmatprep.subr.bf16.mxu0 0
    %275 = vmatpush1.bf16.msra.mxu0 0
    %276 = vmatprep.subr.bf16.mxu0 0
    %277 = vmatpush1.bf16.msra.mxu0 0
    %278 = vmatprep.subr.bf16.mxu0 0
    %279 = vmatpush1.bf16.msra.mxu0 0
    %280 = vmatprep.subr.bf16.mxu0 0
    %281 = vmatpush1.bf16.msra.mxu0 0
    %282 = vmatprep.subr.bf16.mxu0 0
    %283 = vmatpush1.bf16.msra.mxu0 0
    %284 = vmatprep.subr.bf16.mxu0 0
    %285 = vmatpush1.bf16.msra.mxu0 0
    %286 = vmatprep.subr.bf16.mxu0 0
    %287 = vmatpush1.bf16.msra.mxu0 0
    %288 = vmatprep.subr.bf16.mxu0 0
    %289 = vmatpush1.bf16.msra.mxu0 0
    %290 = vmatprep.subr.bf16.mxu0 0
    %291 = vmatpush1.bf16.msra.mxu0 0
    %292 = vmatprep.subr.bf16.mxu0 0
    %293 = vmatpush1.bf16.msra.mxu0 0
    %294 = vmatprep.subr.bf16.mxu0 0
    %295 = vmatpush1.bf16.msra.mxu0 0
    %296 = vmatprep.subr.bf16.mxu0 0
    %297 = vmatpush1.bf16.msra.mxu0 0
    %298 = vmatprep.mubr.bf16.mxu0 0
    %299 = vmatmul.mubr.bf16.gmra.mrb[0].mxu0 %v260
    %v300 = vpop.f32.mrb[0].mxu0
    %v301 = vadd.f32 0.0, %v300
    %v302 = vpop.f32.mrb[0].mxu0
    %v303 = vpop.f32.mrb[0].mxu0
    %v304 = vpop.f32.mrb[0].mxu0
    %305 = vdwg.mxu0
    %v306 = vld [vmem:[#allocation2] sm:$0xff]
    %v307 = vpack.c.bf16 %v301, %v301
    %v308 = vld [vmem:[%s4] sm:$0xf]
    %v310 = vsel %vm199, %v307, 0
    %v313 = vsel %vm262, %v308, 0
    %315 = vmatprep.subr.bf16.mxu0 0
    %316 = vmatpush1.bf16.msra.mxu0 %v313
    %317 = vmatprep.subr.bf16.mxu0 0
    %318 = vmatpush1.bf16.msra.mxu0 0
    %319 = vmatprep.subr.bf16.mxu0 0
    %320 = vmatpush1.bf16.msra.mxu0 0
    %321 = vmatprep.subr.bf16.mxu0 0
    %322 = vmatpush1.bf16.msra.mxu0 0
    %323 = vmatprep.subr.bf16.mxu0 0
    %324 = vmatpush1.bf16.msra.mxu0 0
    %325 = vmatprep.subr.bf16.mxu0 0
    %326 = vmatpush1.bf16.msra.mxu0 0
    %327 = vmatprep.subr.bf16.mxu0 0
    %328 = vmatpush1.bf16.msra.mxu0 0
    %329 = vmatprep.subr.bf16.mxu0 0
    %330 = vmatpush1.bf16.msra.mxu0 0
    %331 = vmatprep.subr.bf16.mxu0 0
    %332 = vmatpush1.bf16.msra.mxu0 0
    %333 = vmatprep.subr.bf16.mxu0 0
    %334 = vmatpush1.bf16.msra.mxu0 0
    %335 = vmatprep.subr.bf16.mxu0 0
    %336 = vmatpush1.bf16.msra.mxu0 0
    %337 = vmatprep.subr.bf16.mxu0 0
    %338 = vmatpush1.bf16.msra.mxu0 0
    %339 = vmatprep.subr.bf16.mxu0 0
    %340 = vmatpush1.bf16.msra.mxu0 0
    %341 = vmatprep.subr.bf16.mxu0 0
    %342 = vmatpush1.bf16.msra.mxu0 0
    %343 = vmatprep.subr.bf16.mxu0 0
    %344 = vmatpush1.bf16.msra.mxu0 0
    %345 = vmatprep.subr.bf16.mxu0 0
    %346 = vmatpush1.bf16.msra.mxu0 0
    %347 = vmatprep.mubr.bf16.mxu0 0
    %348 = vmatmul.mubr.bf16.gmra.mrb[0].mxu0 %v310
    %v349 = vpop.f32.mrb[0].mxu0
    %v350 = vadd.f32 0.0, %v349
    %v351 = vpop.f32.mrb[0].mxu0
    %v352 = vpop.f32.mrb[0].mxu0
    %v353 = vpop.f32.mrb[0].mxu0
    %354 = vdwg.mxu0
    %v355 = vadd.f32 %v306, %v350
    %356 = vst.msk [vmem:[#allocation2] sm:$0xff] %vm24, %v355
    %s357 = scalar_lea.vmem %s1, 16
    %v358 = vld [vmem:[%s357] sm:$0xf]
    %v359 = vld [vmem:[%s357 + $0x4] sm:$0xf]
    %v360 = vld [vmem:[%s357 + $0x8] sm:$0xf]
    %v361 = vld [vmem:[%s357 + $0xc] sm:$0xf]
    %v366 = vunpack.c.l.b16 %v358
    %v367 = vunpack.c.l.b16 %v359
    %v368 = vunpack.c.l.b16 %v360
    %v369 = vunpack.c.l.b16 %v361
    %v370 = vpack.c.b16 %v367, %v366
    %v371 = vpack.c.b16 %v369, %v368
    %374 = vmatprep.subr.bf16.mxu0 0
    %375 = vmatpush1.bf16.msra.mxu0 %v370
    %376 = vmatprep.subr.bf16.mxu0 0
    %377 = vmatpush1.bf16.msra.mxu0 %v371
    %378 = vmatprep.subr.bf16.mxu0 0
    %379 = vmatpush1.bf16.msra.mxu0 0
    %380 = vmatprep.subr.bf16.mxu0 0
    %381 = vmatpush1.bf16.msra.mxu0 0
    %382 = vmatprep.subr.bf16.mxu0 0
    %383 = vmatpush1.bf16.msra.mxu0 0
    %384 = vmatprep.subr.bf16.mxu0 0
    %385 = vmatpush1.bf16.msra.mxu0 0
    %386 = vmatprep.subr.bf16.mxu0 0
    %387 = vmatpush1.bf16.msra.mxu0 0
    %388 = vmatprep.subr.bf16.mxu0 0
    %389 = vmatpush1.bf16.msra.mxu0 0
    %390 = vmatprep.subr.bf16.mxu0 0
    %391 = vmatpush1.bf16.msra.mxu0 0
    %392 = vmatprep.subr.bf16.mxu0 0
    %393 = vmatpush1.bf16.msra.mxu0 0
    %394 = vmatprep.subr.bf16.mxu0 0
    %395 = vmatpush1.bf16.msra.mxu0 0
    %396 = vmatprep.subr.bf16.mxu0 0
    %397 = vmatpush1.bf16.msra.mxu0 0
    %398 = vmatprep.subr.bf16.mxu0 0
    %399 = vmatpush1.bf16.msra.mxu0 0
    %400 = vmatprep.subr.bf16.mxu0 0
    %401 = vmatpush1.bf16.msra.mxu0 0
    %402 = vmatprep.subr.bf16.mxu0 0
    %403 = vmatpush1.bf16.msra.mxu0 0
    %404 = vmatprep.subr.bf16.mxu0 0
    %405 = vmatpush1.bf16.msra.mxu0 0
    %406 = vmatprep.mubr.bf16.mxu0 0
    %407 = vmatmul.mubr.bf16.gmra.mrb[0].mxu0 %v43
    %v408 = vpop.f32.mrb[0].mxu0
    %v409 = vadd.f32 0.0, %v408
    %v410 = vpop.f32.mrb[0].mxu0
    %v411 = vpop.f32.mrb[0].mxu0
    %v412 = vpop.f32.mrb[0].mxu0
    %413 = vdwg.mxu0
    %s414 = scalar_lea.vmem %s2, 16
    %v415 = vld [vmem:[%s414] sm:$0xf]
    %v416 = vld [vmem:[%s414 + $0x4] sm:$0xf]
    %v417 = vld [vmem:[%s414 + $0x8] sm:$0xf]
    %v418 = vld [vmem:[%s414 + $0xc] sm:$0xf]
    %v423 = vunpack.c.l.b16 %v415
    %v424 = vunpack.c.l.b16 %v416
    %v425 = vunpack.c.l.b16 %v417
    %v426 = vunpack.c.l.b16 %v418
    %v427 = vpack.c.b16 %v424, %v423
    %v428 = vpack.c.b16 %v426, %v425
    %431 = vmatprep.subr.bf16.mxu0 0
    %432 = vmatpush1.bf16.msra.mxu0 %v427
    %433 = vmatprep.subr.bf16.mxu0 0
    %434 = vmatpush1.bf16.msra.mxu0 %v428
    %435 = vmatprep.subr.bf16.mxu0 0
    %436 = vmatpush1.bf16.msra.mxu0 0
    %437 = vmatprep.subr.bf16.mxu0 0
    %438 = vmatpush1.bf16.msra.mxu0 0
    %439 = vmatprep.subr.bf16.mxu0 0
    %440 = vmatpush1.bf16.msra.mxu0 0
    %441 = vmatprep.subr.bf16.mxu0 0
    %442 = vmatpush1.bf16.msra.mxu0 0
    %443 = vmatprep.subr.bf16.mxu0 0
    %444 = vmatpush1.bf16.msra.mxu0 0
    %445 = vmatprep.subr.bf16.mxu0 0
    %446 = vmatpush1.bf16.msra.mxu0 0
    %447 = vmatprep.subr.bf16.mxu0 0
    %448 = vmatpush1.bf16.msra.mxu0 0
    %449 = vmatprep.subr.bf16.mxu0 0
    %450 = vmatpush1.bf16.msra.mxu0 0
    %451 = vmatprep.subr.bf16.mxu0 0
    %452 = vmatpush1.bf16.msra.mxu0 0
    %453 = vmatprep.subr.bf16.mxu0 0
    %454 = vmatpush1.bf16.msra.mxu0 0
    %455 = vmatprep.subr.bf16.mxu0 0
    %456 = vmatpush1.bf16.msra.mxu0 0
    %457 = vmatprep.subr.bf16.mxu0 0
    %458 = vmatpush1.bf16.msra.mxu0 0
    %459 = vmatprep.subr.bf16.mxu0 0
    %460 = vmatpush1.bf16.msra.mxu0 0
    %461 = vmatprep.subr.bf16.mxu0 0
    %462 = vmatpush1.bf16.msra.mxu0 0
    %463 = vmatprep.mubr.bf16.mxu0 0
    %464 = vmatmul.mubr.bf16.gmra.mrb[0].mxu0 %v43
    %v465 = vpop.f32.mrb[0].mxu0
    %v466 = vadd.f32 0.0, %v465
    %v467 = vpop.f32.mrb[0].mxu0
    %v468 = vpop.f32.mrb[0].mxu0
    %v469 = vpop.f32.mrb[0].mxu0
    %470 = vdwg.mxu0
    %s471 = scalar_lea.vmem %s3, 16
    %v472 = vld [vmem:[%s471] sm:$0xf]
    %v473 = vld [vmem:[%s471 + $0x4] sm:$0xf]
    %v474 = vld [vmem:[%s471 + $0x8] sm:$0xf]
    %v475 = vld [vmem:[%s471 + $0xc] sm:$0xf]
    %v480 = vunpack.c.l.b16 %v472
    %v481 = vunpack.c.l.b16 %v473
    %v482 = vunpack.c.l.b16 %v474
    %v483 = vunpack.c.l.b16 %v475
    %v484 = vpack.c.b16 %v481, %v480
    %v485 = vpack.c.b16 %v483, %v482
    %488 = vmatprep.subr.bf16.mxu0 0
    %489 = vmatpush1.bf16.msra.mxu0 %v484
    %490 = vmatprep.subr.bf16.mxu0 0
    %491 = vmatpush1.bf16.msra.mxu0 %v485
    %492 = vmatprep.subr.bf16.mxu0 0
    %493 = vmatpush1.bf16.msra.mxu0 0
    %494 = vmatprep.subr.bf16.mxu0 0
    %495 = vmatpush1.bf16.msra.mxu0 0
    %496 = vmatprep.subr.bf16.mxu0 0
    %497 = vmatpush1.bf16.msra.mxu0 0
    %498 = vmatprep.subr.bf16.mxu0 0
    %499 = vmatpush1.bf16.msra.mxu0 0
    %500 = vmatprep.subr.bf16.mxu0 0
    %501 = vmatpush1.bf16.msra.mxu0 0
    %502 = vmatprep.subr.bf16.mxu0 0
    %503 = vmatpush1.bf16.msra.mxu0 0
    %504 = vmatprep.subr.bf16.mxu0 0
    %505 = vmatpush1.bf16.msra.mxu0 0
    %506 = vmatprep.subr.bf16.mxu0 0
    %507 = vmatpush1.bf16.msra.mxu0 0
    %508 = vmatprep.subr.bf16.mxu0 0
    %509 = vmatpush1.bf16.msra.mxu0 0
    %510 = vmatprep.subr.bf16.mxu0 0
    %511 = vmatpush1.bf16.msra.mxu0 0
    %512 = vmatprep.subr.bf16.mxu0 0
    %513 = vmatpush1.bf16.msra.mxu0 0
    %514 = vmatprep.subr.bf16.mxu0 0
    %515 = vmatpush1.bf16.msra.mxu0 0
    %516 = vmatprep.subr.bf16.mxu0 0
    %517 = vmatpush1.bf16.msra.mxu0 0
    %518 = vmatprep.subr.bf16.mxu0 0
    %519 = vmatpush1.bf16.msra.mxu0 0
    %520 = vmatprep.mubr.bf16.mxu0 0
    %521 = vmatmul.mubr.bf16.gmra.mrb[0].mxu0 %v43
    %v522 = vpop.f32.mrb[0].mxu0
    %v523 = vadd.f32 0.0, %v522
    %v524 = vpop.f32.mrb[0].mxu0
    %v525 = vpop.f32.mrb[0].mxu0
    %v526 = vpop.f32.mrb[0].mxu0
    %527 = vdwg.mxu0
    %v528 = vpack.c.bf16 %v409, %v409
    %v529 = vpack.c.bf16 %v466, %v466
    %v531 = vsel %vm199, %v528, 0
    %v534 = vsel %vm199, %v529, 0
    %536 = vmatprep.subr.bf16.mxu0 0
    %537 = vmatpush1.bf16.xpose.msra.mxu0 %v534
    %538 = vmatprep.subr.bf16.mxu0 0
    %539 = vmatpush1.bf16.xpose.msra.mxu0 0
    %540 = vmatprep.subr.bf16.mxu0 0
    %541 = vmatpush1.bf16.xpose.msra.mxu0 0
    %542 = vmatprep.subr.bf16.mxu0 0
    %543 = vmatpush1.bf16.xpose.msra.mxu0 0
    %544 = vmatprep.subr.bf16.mxu0 0
    %545 = vmatpush1.bf16.xpose.msra.mxu0 0
    %546 = vmatprep.subr.bf16.mxu0 0
    %547 = vmatpush1.bf16.xpose.msra.mxu0 0
    %548 = vmatprep.subr.bf16.mxu0 0
    %549 = vmatpush1.bf16.xpose.msra.mxu0 0
    %550 = vmatprep.subr.bf16.mxu0 0
    %551 = vmatpush1.bf16.xpose.msra.mxu0 0
    %552 = vmatprep.subr.bf16.mxu0 0
    %553 = vmatpush1.bf16.xpose.msra.mxu0 0
    %554 = vmatprep.subr.bf16.mxu0 0
    %555 = vmatpush1.bf16.xpose.msra.mxu0 0
    %556 = vmatprep.subr.bf16.mxu0 0
    %557 = vmatpush1.bf16.xpose.msra.mxu0 0
    %558 = vmatprep.subr.bf16.mxu0 0
    %559 = vmatpush1.bf16.xpose.msra.mxu0 0
    %560 = vmatprep.subr.bf16.mxu0 0
    %561 = vmatpush1.bf16.xpose.msra.mxu0 0
    %562 = vmatprep.subr.bf16.mxu0 0
    %563 = vmatpush1.bf16.xpose.msra.mxu0 0
    %564 = vmatprep.subr.bf16.mxu0 0
    %565 = vmatpush1.bf16.xpose.msra.mxu0 0
    %566 = vmatprep.subr.bf16.mxu0 0
    %567 = vmatpush1.bf16.xpose.msra.mxu0 0
    %568 = vmatprep.mubr.bf16.mxu0 0
    %569 = vmatmul.mubr.bf16.gmra.mrb[0].mxu0 %v531
    %v570 = vpop.f32.mrb[0].mxu0
    %v571 = vadd.f32 0.0, %v570
    %v572 = vpop.f32.mrb[0].mxu0
    %v573 = vpop.f32.mrb[0].mxu0
    %v574 = vpop.f32.mrb[0].mxu0
    %575 = vdwg.mxu0
    %v576 = vsel %vm199, %v571, -inf
    %577 = vmax.xlane.f32.xlu0 %v576
    %v578 = vpop.xlane.xlu0 %577
    %v579 = vsub.f32 %v571, %v578
    %v580 = vmul.f32 %v579, 1.442695
    %v581 = vpow.pop %v580
    %v582 = vsel %vm199, %v581, 0.0
    %583 = vadd.xlane.f32.xlu0 %v582
    %v584 = vpop.xlane.xlu0 %583
    %v585 = vrcp.pop %v584
    %v586 = vmul.f32 %v581, %v585
    %v587 = vpack.c.bf16 %v586, %v586
    %v588 = vpack.c.bf16 %v523, %v523
    %v590 = vsel %vm199, %v587, 0
    %v593 = vsel %vm262, %v588, 0
    %595 = vmatprep.subr.bf16.mxu0 0
    %596 = vmatpush1.bf16.msra.mxu0 %v593
    %597 = vmatprep.subr.bf16.mxu0 0
    %598 = vmatpush1.bf16.msra.mxu0 0
    %599 = vmatprep.subr.bf16.mxu0 0
    %600 = vmatpush1.bf16.msra.mxu0 0
    %601 = vmatprep.subr.bf16.mxu0 0
    %602 = vmatpush1.bf16.msra.mxu0 0
    %603 = vmatprep.subr.bf16.mxu0 0
    %604 = vmatpush1.bf16.msra.mxu0 0
    %605 = vmatprep.subr.bf16.mxu0 0
    %606 = vmatpush1.bf16.msra.mxu0 0
    %607 = vmatprep.subr.bf16.mxu0 0
    %608 = vmatpush1.bf16.msra.mxu0 0
    %609 = vmatprep.subr.bf16.mxu0 0
    %610 = vmatpush1.bf16.msra.mxu0 0
    %611 = vmatprep.subr.bf16.mxu0 0
    %612 = vmatpush1.bf16.msra.mxu0 0
    %613 = vmatprep.subr.bf16.mxu0 0
    %614 = vmatpush1.bf16.msra.mxu0 0
    %615 = vmatprep.subr.bf16.mxu0 0
    %616 = vmatpush1.bf16.msra.mxu0 0
    %617 = vmatprep.subr.bf16.mxu0 0
    %618 = vmatpush1.bf16.msra.mxu0 0
    %619 = vmatprep.subr.bf16.mxu0 0
    %620 = vmatpush1.bf16.msra.mxu0 0
    %621 = vmatprep.subr.bf16.mxu0 0
    %622 = vmatpush1.bf16.msra.mxu0 0
    %623 = vmatprep.subr.bf16.mxu0 0
    %624 = vmatpush1.bf16.msra.mxu0 0
    %625 = vmatprep.subr.bf16.mxu0 0
    %626 = vmatpush1.bf16.msra.mxu0 0
    %627 = vmatprep.mubr.bf16.mxu0 0
    %628 = vmatmul.mubr.bf16.gmra.mrb[0].mxu0 %v590
    %v629 = vpop.f32.mrb[0].mxu0
    %v630 = vadd.f32 0.0, %v629
    %v631 = vpop.f32.mrb[0].mxu0
    %v632 = vpop.f32.mrb[0].mxu0
    %v633 = vpop.f32.mrb[0].mxu0
    %634 = vdwg.mxu0
    %v635 = vld [vmem:[#allocation2] sm:$0xff]
    %v636 = vpack.c.bf16 %v630, %v630
    %s637 = scalar_lea.vmem %s4, 4
    %v638 = vld [vmem:[%s637] sm:$0xf]
    %v640 = vsel %vm199, %v636, 0
    %v643 = vsel %vm262, %v638, 0
    %645 = vmatprep.subr.bf16.mxu0 0
    %646 = vmatpush1.bf16.msra.mxu0 %v643
    %647 = vmatprep.subr.bf16.mxu0 0
    %648 = vmatpush1.bf16.msra.mxu0 0
    %649 = vmatprep.subr.bf16.mxu0 0
    %650 = vmatpush1.bf16.msra.mxu0 0
    %651 = vmatprep.subr.bf16.mxu0 0
    %652 = vmatpush1.bf16.msra.mxu0 0
    %653 = vmatprep.subr.bf16.mxu0 0
    %654 = vmatpush1.bf16.msra.mxu0 0
    %655 = vmatprep.subr.bf16.mxu0 0
    %656 = vmatpush1.bf16.msra.mxu0 0
    %657 = vmatprep.subr.bf16.mxu0 0
    %658 = vmatpush1.bf16.msra.mxu0 0
    %659 = vmatprep.subr.bf16.mxu0 0
    %660 = vmatpush1.bf16.msra.mxu0 0
    %661 = vmatprep.subr.bf16.mxu0 0
    %662 = vmatpush1.bf16.msra.mxu0 0
    %663 = vmatprep.subr.bf16.mxu0 0
    %664 = vmatpush1.bf16.msra.mxu0 0
    %665 = vmatprep.subr.bf16.mxu0 0
    %666 = vmatpush1.bf16.msra.mxu0 0
    %667 = vmatprep.subr.bf16.mxu0 0
    %668 = vmatpush1.bf16.msra.mxu0 0
    %669 = vmatprep.subr.bf16.mxu0 0
    %670 = vmatpush1.bf16.msra.mxu0 0
    %671 = vmatprep.subr.bf16.mxu0 0
    %672 = vmatpush1.bf16.msra.mxu0 0
    %673 = vmatprep.subr.bf16.mxu0 0
    %674 = vmatpush1.bf16.msra.mxu0 0
    %675 = vmatprep.subr.bf16.mxu0 0
    %676 = vmatpush1.bf16.msra.mxu0 0
    %677 = vmatprep.mubr.bf16.mxu0 0
    %678 = vmatmul.mubr.bf16.gmra.mrb[0].mxu0 %v640
    %v679 = vpop.f32.mrb[0].mxu0
    %v680 = vadd.f32 0.0, %v679
    %v681 = vpop.f32.mrb[0].mxu0
    %v682 = vpop.f32.mrb[0].mxu0
    %v683 = vpop.f32.mrb[0].mxu0
    %684 = vdwg.mxu0
    %v685 = vadd.f32 %v635, %v680
    %686 = vst.msk [vmem:[#allocation2] sm:$0xff] %vm24, %v685
    %s687 = scalar_lea.vmem %s1, 32
    %v688 = vld [vmem:[%s687] sm:$0xf]
    %v689 = vld [vmem:[%s687 + $0x4] sm:$0xf]
    %v690 = vld [vmem:[%s687 + $0x8] sm:$0xf]
    %v691 = vld [vmem:[%s687 + $0xc] sm:$0xf]
    %v696 = vunpack.c.l.b16 %v688
    %v697 = vunpack.c.l.b16 %v689
    %v698 = vunpack.c.l.b16 %v690
    %v699 = vunpack.c.l.b16 %v691
    %v700 = vpack.c.b16 %v697, %v696
    %v701 = vpack.c.b16 %v699, %v698
    %704 = vmatprep.subr.bf16.mxu0 0
    %705 = vmatpush1.bf16.msra.mxu0 %v700
    %706 = vmatprep.subr.bf16.mxu0 0
    %707 = vmatpush1.bf16.msra.mxu0 %v701
    %708 = vmatprep.subr.bf16.mxu0 0
    %709 = vmatpush1.bf16.msra.mxu0 0
    %710 = vmatprep.subr.bf16.mxu0 0
    %711 = vmatpush1.bf16.msra.mxu0 0
    %712 = vmatprep.subr.bf16.mxu0 0
    %713 = vmatpush1.bf16.msra.mxu0 0
    %714 = vmatprep.subr.bf16.mxu0 0
    %715 = vmatpush1.bf16.msra.mxu0 0
    %716 = vmatprep.subr.bf16.mxu0 0
    %717 = vmatpush1.bf16.msra.mxu0 0
    %718 = vmatprep.subr.bf16.mxu0 0
    %719 = vmatpush1.bf16.msra.mxu0 0
    %720 = vmatprep.subr.bf16.mxu0 0
    %721 = vmatpush1.bf16.msra.mxu0 0
    %722 = vmatprep.subr.bf16.mxu0 0
    %723 = vmatpush1.bf16.msra.mxu0 0
    %724 = vmatprep.subr.bf16.mxu0 0
    %725 = vmatpush1.bf16.msra.mxu0 0
    %726 = vmatprep.subr.bf16.mxu0 0
    %727 = vmatpush1.bf16.msra.mxu0 0
    %728 = vmatprep.subr.bf16.mxu0 0
    %729 = vmatpush1.bf16.msra.mxu0 0
    %730 = vmatprep.subr.bf16.mxu0 0
    %731 = vmatpush1.bf16.msra.mxu0 0
    %732 = vmatprep.subr.bf16.mxu0 0
    %733 = vmatpush1.bf16.msra.mxu0 0
    %734 = vmatprep.subr.bf16.mxu0 0
    %735 = vmatpush1.bf16.msra.mxu0 0
    %736 = vmatprep.mubr.bf16.mxu0 0
    %737 = vmatmul.mubr.bf16.gmra.mrb[0].mxu0 %v43
    %v738 = vpop.f32.mrb[0].mxu0
    %v739 = vadd.f32 0.0, %v738
    %v740 = vpop.f32.mrb[0].mxu0
    %v741 = vpop.f32.mrb[0].mxu0
    %v742 = vpop.f32.mrb[0].mxu0
    %743 = vdwg.mxu0
    %s744 = scalar_lea.vmem %s2, 32
    %v745 = vld [vmem:[%s744] sm:$0xf]
    %v746 = vld [vmem:[%s744 + $0x4] sm:$0xf]
    %v747 = vld [vmem:[%s744 + $0x8] sm:$0xf]
    %v748 = vld [vmem:[%s744 + $0xc] sm:$0xf]
    %v753 = vunpack.c.l.b16 %v745
    %v754 = vunpack.c.l.b16 %v746
    %v755 = vunpack.c.l.b16 %v747
    %v756 = vunpack.c.l.b16 %v748
    %v757 = vpack.c.b16 %v754, %v753
    %v758 = vpack.c.b16 %v756, %v755
    %761 = vmatprep.subr.bf16.mxu0 0
    %762 = vmatpush1.bf16.msra.mxu0 %v757
    %763 = vmatprep.subr.bf16.mxu0 0
    %764 = vmatpush1.bf16.msra.mxu0 %v758
    %765 = vmatprep.subr.bf16.mxu0 0
    %766 = vmatpush1.bf16.msra.mxu0 0
    %767 = vmatprep.subr.bf16.mxu0 0
    %768 = vmatpush1.bf16.msra.mxu0 0
    %769 = vmatprep.subr.bf16.mxu0 0
    %770 = vmatpush1.bf16.msra.mxu0 0
    %771 = vmatprep.subr.bf16.mxu0 0
    %772 = vmatpush1.bf16.msra.mxu0 0
    %773 = vmatprep.subr.bf16.mxu0 0
    %774 = vmatpush1.bf16.msra.mxu0 0
    %775 = vmatprep.subr.bf16.mxu0 0
    %776 = vmatpush1.bf16.msra.mxu0 0
    %777 = vmatprep.subr.bf16.mxu0 0
    %778 = vmatpush1.bf16.msra.mxu0 0
    %779 = vmatprep.subr.bf16.mxu0 0
    %780 = vmatpush1.bf16.msra.mxu0 0
    %781 = vmatprep.subr.bf16.mxu0 0
    %782 = vmatpush1.bf16.msra.mxu0 0
    %783 = vmatprep.subr.bf16.mxu0 0
    %784 = vmatpush1.bf16.msra.mxu0 0
    %785 = vmatprep.subr.bf16.mxu0 0
    %786 = vmatpush1.bf16.msra.mxu0 0
    %787 = vmatprep.subr.bf16.mxu0 0
    %788 = vmatpush1.bf16.msra.mxu0 0
    %789 = vmatprep.subr.bf16.mxu0 0
    %790 = vmatpush1.bf16.msra.mxu0 0
    %791 = vmatprep.subr.bf16.mxu0 0
    %792 = vmatpush1.bf16.msra.mxu0 0
    %793 = vmatprep.mubr.bf16.mxu0 0
    %794 = vmatmul.mubr.bf16.gmra.mrb[0].mxu0 %v43
    %v795 = vpop.f32.mrb[0].mxu0
    %v796 = vadd.f32 0.0, %v795
    %v797 = vpop.f32.mrb[0].mxu0
    %v798 = vpop.f32.mrb[0].mxu0
    %v799 = vpop.f32.mrb[0].mxu0
    %800 = vdwg.mxu0
    %s801 = scalar_lea.vmem %s3, 32
    %v802 = vld [vmem:[%s801] sm:$0xf]
    %v803 = vld [vmem:[%s801 + $0x4] sm:$0xf]
    %v804 = vld [vmem:[%s801 + $0x8] sm:$0xf]
    %v805 = vld [vmem:[%s801 + $0xc] sm:$0xf]
    %v810 = vunpack.c.l.b16 %v802
    %v811 = vunpack.c.l.b16 %v803
    %v812 = vunpack.c.l.b16 %v804
    %v813 = vunpack.c.l.b16 %v805
    %v814 = vpack.c.b16 %v811, %v810
    %v815 = vpack.c.b16 %v813, %v812
    %818 = vmatprep.subr.bf16.mxu0 0
    %819 = vmatpush1.bf16.msra.mxu0 %v814
    %820 = vmatprep.subr.bf16.mxu0 0
    %821 = vmatpush1.bf16.msra.mxu0 %v815
    %822 = vmatprep.subr.bf16.mxu0 0
    %823 = vmatpush1.bf16.msra.mxu0 0
    %824 = vmatprep.subr.bf16.mxu0 0
    %825 = vmatpush1.bf16.msra.mxu0 0
    %826 = vmatprep.subr.bf16.mxu0 0
    %827 = vmatpush1.bf16.msra.mxu0 0
    %828 = vmatprep.subr.bf16.mxu0 0
    %829 = vmatpush1.bf16.msra.mxu0 0
    %830 = vmatprep.subr.bf16.mxu0 0
    %831 = vmatpush1.bf16.msra.mxu0 0
    %832 = vmatprep.subr.bf16.mxu0 0
    %833 = vmatpush1.bf16.msra.mxu0 0
    %834 = vmatprep.subr.bf16.mxu0 0
    %835 = vmatpush1.bf16.msra.mxu0 0
    %836 = vmatprep.subr.bf16.mxu0 0
    %837 = vmatpush1.bf16.msra.mxu0 0
    %838 = vmatprep.subr.bf16.mxu0 0
    %839 = vmatpush1.bf16.msra.mxu0 0
    %840 = vmatprep.subr.bf16.mxu0 0
    %841 = vmatpush1.bf16.msra.mxu0 0
    %842 = vmatprep.subr.bf16.mxu0 0
    %843 = vmatpush1.bf16.msra.mxu0 0
    %844 = vmatprep.subr.bf16.mxu0 0
    %845 = vmatpush1.bf16.msra.mxu0 0
    %846 = vmatprep.subr.bf16.mxu0 0
    %847 = vmatpush1.bf16.msra.mxu0 0
    %848 = vmatprep.subr.bf16.mxu0 0
    %849 = vmatpush1.bf16.msra.mxu0 0
    %850 = vmatprep.mubr.bf16.mxu0 0
    %851 = vmatmul.mubr.bf16.gmra.mrb[0].mxu0 %v43
    %v852 = vpop.f32.mrb[0].mxu0
    %v853 = vadd.f32 0.0, %v852
    %v854 = vpop.f32.mrb[0].mxu0
    %v855 = vpop.f32.mrb[0].mxu0
    %v856 = vpop.f32.mrb[0].mxu0
    %857 = vdwg.mxu0
    %v858 = vpack.c.bf16 %v739, %v739
    %v859 = vpack.c.bf16 %v796, %v796
    %v861 = vsel %vm199, %v858, 0
    %v864 = vsel %vm199, %v859, 0
    %866 = vmatprep.subr.bf16.mxu0 0
    %867 = vmatpush1.bf16.xpose.msra.mxu0 %v864
    %868 = vmatprep.subr.bf16.mxu0 0
    %869 = vmatpush1.bf16.xpose.msra.mxu0 0
    %870 = vmatprep.subr.bf16.mxu0 0
    %871 = vmatpush1.bf16.xpose.msra.mxu0 0
    %872 = vmatprep.subr.bf16.mxu0 0
    %873 = vmatpush1.bf16.xpose.msra.mxu0 0
    %874 = vmatprep.subr.bf16.mxu0 0
    %875 = vmatpush1.bf16.xpose.msra.mxu0 0
    %876 = vmatprep.subr.bf16.mxu0 0
    %877 = vmatpush1.bf16.xpose.msra.mxu0 0
    %878 = vmatprep.subr.bf16.mxu0 0
    %879 = vmatpush1.bf16.xpose.msra.mxu0 0
    %880 = vmatprep.subr.bf16.mxu0 0
    %881 = vmatpush1.bf16.xpose.msra.mxu0 0
    %882 = vmatprep.subr.bf16.mxu0 0
    %883 = vmatpush1.bf16.xpose.msra.mxu0 0
    %884 = vmatprep.subr.bf16.mxu0 0
    %885 = vmatpush1.bf16.xpose.msra.mxu0 0
    %886 = vmatprep.subr.bf16.mxu0 0
    %887 = vmatpush1.bf16.xpose.msra.mxu0 0
    %888 = vmatprep.subr.bf16.mxu0 0
    %889 = vmatpush1.bf16.xpose.msra.mxu0 0
    %890 = vmatprep.subr.bf16.mxu0 0
    %891 = vmatpush1.bf16.xpose.msra.mxu0 0
    %892 = vmatprep.subr.bf16.mxu0 0
    %893 = vmatpush1.bf16.xpose.msra.mxu0 0
    %894 = vmatprep.subr.bf16.mxu0 0
    %895 = vmatpush1.bf16.xpose.msra.mxu0 0
    %896 = vmatprep.subr.bf16.mxu0 0
    %897 = vmatpush1.bf16.xpose.msra.mxu0 0
    %898 = vmatprep.mubr.bf16.mxu0 0
    %899 = vmatmul.mubr.bf16.gmra.mrb[0].mxu0 %v861
    %v900 = vpop.f32.mrb[0].mxu0
    %v901 = vadd.f32 0.0, %v900
    %v902 = vpop.f32.mrb[0].mxu0
    %v903 = vpop.f32.mrb[0].mxu0
    %v904 = vpop.f32.mrb[0].mxu0
    %905 = vdwg.mxu0
    %v906 = vsel %vm199, %v901, -inf
    %907 = vmax.xlane.f32.xlu0 %v906
    %v908 = vpop.xlane.xlu0 %907
    %v909 = vsub.f32 %v901, %v908
    %v910 = vmul.f32 %v909, 1.442695
    %v911 = vpow.pop %v910
    %v912 = vsel %vm199, %v911, 0.0
    %913 = vadd.xlane.f32.xlu0 %v912
    %v914 = vpop.xlane.xlu0 %913
    %v915 = vrcp.pop %v914
    %v916 = vmul.f32 %v911, %v915
    %v917 = vpack.c.bf16 %v916, %v916
    %v918 = vpack.c.bf16 %v853, %v853
    %v920 = vsel %vm199, %v917, 0
    %v923 = vsel %vm262, %v918, 0
    %925 = vmatprep.subr.bf16.mxu0 0
    %926 = vmatpush1.bf16.msra.mxu0 %v923
    %927 = vmatprep.subr.bf16.mxu0 0
    %928 = vmatpush1.bf16.msra.mxu0 0
    %929 = vmatprep.subr.bf16.mxu0 0
    %930 = vmatpush1.bf16.msra.mxu0 0
    %931 = vmatprep.subr.bf16.mxu0 0
    %932 = vmatpush1.bf16.msra.mxu0 0
    %933 = vmatprep.subr.bf16.mxu0 0
    %934 = vmatpush1.bf16.msra.mxu0 0
    %935 = vmatprep.subr.bf16.mxu0 0
    %936 = vmatpush1.bf16.msra.mxu0 0
    %937 = vmatprep.subr.bf16.mxu0 0
    %938 = vmatpush1.bf16.msra.mxu0 0
    %939 = vmatprep.subr.bf16.mxu0 0
    %940 = vmatpush1.bf16.msra.mxu0 0
    %941 = vmatprep.subr.bf16.mxu0 0
    %942 = vmatpush1.bf16.msra.mxu0 0
    %943 = vmatprep.subr.bf16.mxu0 0
    %944 = vmatpush1.bf16.msra.mxu0 0
    %945 = vmatprep.subr.bf16.mxu0 0
    %946 = vmatpush1.bf16.msra.mxu0 0
    %947 = vmatprep.subr.bf16.mxu0 0
    %948 = vmatpush1.bf16.msra.mxu0 0
    %949 = vmatprep.subr.bf16.mxu0 0
    %950 = vmatpush1.bf16.msra.mxu0 0
    %951 = vmatprep.subr.bf16.mxu0 0
    %952 = vmatpush1.bf16.msra.mxu0 0
    %953 = vmatprep.subr.bf16.mxu0 0
    %954 = vmatpush1.bf16.msra.mxu0 0
    %955 = vmatprep.subr.bf16.mxu0 0
    %956 = vmatpush1.bf16.msra.mxu0 0
    %957 = vmatprep.mubr.bf16.mxu0 0
    %958 = vmatmul.mubr.bf16.gmra.mrb[0].mxu0 %v920
    %v959 = vpop.f32.mrb[0].mxu0
    %v960 = vadd.f32 0.0, %v959
    %v961 = vpop.f32.mrb[0].mxu0
    %v962 = vpop.f32.mrb[0].mxu0
    %v963 = vpop.f32.mrb[0].mxu0
    %964 = vdwg.mxu0
    %v965 = vld [vmem:[#allocation2] sm:$0xff]
    %v966 = vpack.c.bf16 %v960, %v960
    %s967 = scalar_lea.vmem %s4, 8
    %v968 = vld [vmem:[%s967] sm:$0xf]
    %v970 = vsel %vm199, %v966, 0
    %v973 = vsel %vm262, %v968, 0
    %975 = vmatprep.subr.bf16.mxu0 0
    %976 = vmatpush1.bf16.msra.mxu0 %v973
    %977 = vmatprep.subr.bf16.mxu0 0
    %978 = vmatpush1.bf16.msra.mxu0 0
    %979 = vmatprep.subr.bf16.mxu0 0
    %980 = vmatpush1.bf16.msra.mxu0 0
    %981 = vmatprep.subr.bf16.mxu0 0
    %982 = vmatpush1.bf16.msra.mxu0 0
    %983 = vmatprep.subr.bf16.mxu0 0
    %984 = vmatpush1.bf16.msra.mxu0 0
    %985 = vmatprep.subr.bf16.mxu0 0
    %986 = vmatpush1.bf16.msra.mxu0 0
    %987 = vmatprep.subr.bf16.mxu0 0
    %988 = vmatpush1.bf16.msra.mxu0 0
    %989 = vmatprep.subr.bf16.mxu0 0
    %990 = vmatpush1.bf16.msra.mxu0 0
    %991 = vmatprep.subr.bf16.mxu0 0
    %992 = vmatpush1.bf16.msra.mxu0 0
    %993 = vmatprep.subr.bf16.mxu0 0
    %994 = vmatpush1.bf16.msra.mxu0 0
    %995 = vmatprep.subr.bf16.mxu0 0
    %996 = vmatpush1.bf16.msra.mxu0 0
    %997 = vmatprep.subr.bf16.mxu0 0
    %998 = vmatpush1.bf16.msra.mxu0 0
    %999 = vmatprep.subr.bf16.mxu0 0
    %1000 = vmatpush1.bf16.msra.mxu0 0
    %1001 = vmatprep.subr.bf16.mxu0 0
    %1002 = vmatpush1.bf16.msra.mxu0 0
    %1003 = vmatprep.subr.bf16.mxu0 0
    %1004 = vmatpush1.bf16.msra.mxu0 0
    %1005 = vmatprep.subr.bf16.mxu0 0
    %1006 = vmatpush1.bf16.msra.mxu0 0
    %1007 = vmatprep.mubr.bf16.mxu0 0
    %1008 = vmatmul.mubr.bf16.gmra.mrb[0].mxu0 %v970
    %v1009 = vpop.f32.mrb[0].mxu0
    %v1010 = vadd.f32 0.0, %v1009
    %v1011 = vpop.f32.mrb[0].mxu0
    %v1012 = vpop.f32.mrb[0].mxu0
    %v1013 = vpop.f32.mrb[0].mxu0
    %1014 = vdwg.mxu0
    %v1015 = vadd.f32 %v965, %v1010
    %1016 = vst.msk [vmem:[#allocation2] sm:$0xff] %vm24, %v1015
    %s1017 = scalar_lea.vmem %s1, 48
    %v1018 = vld [vmem:[%s1017] sm:$0xf]
    %v1019 = vld [vmem:[%s1017 + $0x4] sm:$0xf]
    %v1020 = vld [vmem:[%s1017 + $0x8] sm:$0xf]
    %v1021 = vld [vmem:[%s1017 + $0xc] sm:$0xf]
    %v1026 = vunpack.c.l.b16 %v1018
    %v1027 = vunpack.c.l.b16 %v1019
    %v1028 = vunpack.c.l.b16 %v1020
    %v1029 = vunpack.c.l.b16 %v1021
    %v1030 = vpack.c.b16 %v1027, %v1026
    %v1031 = vpack.c.b16 %v1029, %v1028
    %1034 = vmatprep.subr.bf16.mxu0 0
    %1035 = vmatpush1.bf16.msra.mxu0 %v1030
    %1036 = vmatprep.subr.bf16.mxu0 0
    %1037 = vmatpush1.bf16.msra.mxu0 %v1031
    %1038 = vmatprep.subr.bf16.mxu0 0
    %1039 = vmatpush1.bf16.msra.mxu0 0
    %1040 = vmatprep.subr.bf16.mxu0 0
    %1041 = vmatpush1.bf16.msra.mxu0 0
    %1042 = vmatprep.subr.bf16.mxu0 0
    %1043 = vmatpush1.bf16.msra.mxu0 0
    %1044 = vmatprep.subr.bf16.mxu0 0
    %1045 = vmatpush1.bf16.msra.mxu0 0
    %1046 = vmatprep.subr.bf16.mxu0 0
    %1047 = vmatpush1.bf16.msra.mxu0 0
    %1048 = vmatprep.subr.bf16.mxu0 0
    %1049 = vmatpush1.bf16.msra.mxu0 0
    %1050 = vmatprep.subr.bf16.mxu0 0
    %1051 = vmatpush1.bf16.msra.mxu0 0
    %1052 = vmatprep.subr.bf16.mxu0 0
    %1053 = vmatpush1.bf16.msra.mxu0 0
    %1054 = vmatprep.subr.bf16.mxu0 0
    %1055 = vmatpush1.bf16.msra.mxu0 0
    %1056 = vmatprep.subr.bf16.mxu0 0
    %1057 = vmatpush1.bf16.msra.mxu0 0
    %1058 = vmatprep.subr.bf16.mxu0 0
    %1059 = vmatpush1.bf16.msra.mxu0 0
    %1060 = vmatprep.subr.bf16.mxu0 0
    %1061 = vmatpush1.bf16.msra.mxu0 0
    %1062 = vmatprep.subr.bf16.mxu0 0
    %1063 = vmatpush1.bf16.msra.mxu0 0
    %1064 = vmatprep.subr.bf16.mxu0 0
    %1065 = vmatpush1.bf16.msra.mxu0 0
    %1066 = vmatprep.mubr.bf16.mxu0 0
    %1067 = vmatmul.mubr.bf16.gmra.mrb[0].mxu0 %v43
    %v1068 = vpop.f32.mrb[0].mxu0
    %v1069 = vadd.f32 0.0, %v1068
    %v1070 = vpop.f32.mrb[0].mxu0
    %v1071 = vpop.f32.mrb[0].mxu0
    %v1072 = vpop.f32.mrb[0].mxu0
    %1073 = vdwg.mxu0
    %s1074 = scalar_lea.vmem %s2, 48
    %v1075 = vld [vmem:[%s1074] sm:$0xf]
    %v1076 = vld [vmem:[%s1074 + $0x4] sm:$0xf]
    %v1077 = vld [vmem:[%s1074 + $0x8] sm:$0xf]
    %v1078 = vld [vmem:[%s1074 + $0xc] sm:$0xf]
    %v1083 = vunpack.c.l.b16 %v1075
    %v1084 = vunpack.c.l.b16 %v1076
    %v1085 = vunpack.c.l.b16 %v1077
    %v1086 = vunpack.c.l.b16 %v1078
    %v1087 = vpack.c.b16 %v1084, %v1083
    %v1088 = vpack.c.b16 %v1086, %v1085
    %1091 = vmatprep.subr.bf16.mxu0 0
    %1092 = vmatpush1.bf16.msra.mxu0 %v1087
    %1093 = vmatprep.subr.bf16.mxu0 0
    %1094 = vmatpush1.bf16.msra.mxu0 %v1088
    %1095 = vmatprep.subr.bf16.mxu0 0
    %1096 = vmatpush1.bf16.msra.mxu0 0
    %1097 = vmatprep.subr.bf16.mxu0 0
    %1098 = vmatpush1.bf16.msra.mxu0 0
    %1099 = vmatprep.subr.bf16.mxu0 0
    %1100 = vmatpush1.bf16.msra.mxu0 0
    %1101 = vmatprep.subr.bf16.mxu0 0
    %1102 = vmatpush1.bf16.msra.mxu0 0
    %1103 = vmatprep.subr.bf16.mxu0 0
    %1104 = vmatpush1.bf16.msra.mxu0 0
    %1105 = vmatprep.subr.bf16.mxu0 0
    %1106 = vmatpush1.bf16.msra.mxu0 0
    %1107 = vmatprep.subr.bf16.mxu0 0
    %1108 = vmatpush1.bf16.msra.mxu0 0
    %1109 = vmatprep.subr.bf16.mxu0 0
    %1110 = vmatpush1.bf16.msra.mxu0 0
    %1111 = vmatprep.subr.bf16.mxu0 0
    %1112 = vmatpush1.bf16.msra.mxu0 0
    %1113 = vmatprep.subr.bf16.mxu0 0
    %1114 = vmatpush1.bf16.msra.mxu0 0
    %1115 = vmatprep.subr.bf16.mxu0 0
    %1116 = vmatpush1.bf16.msra.mxu0 0
    %1117 = vmatprep.subr.bf16.mxu0 0
    %1118 = vmatpush1.bf16.msra.mxu0 0
    %1119 = vmatprep.subr.bf16.mxu0 0
    %1120 = vmatpush1.bf16.msra.mxu0 0
    %1121 = vmatprep.subr.bf16.mxu0 0
    %1122 = vmatpush1.bf16.msra.mxu0 0
    %1123 = vmatprep.mubr.bf16.mxu0 0
    %1124 = vmatmul.mubr.bf16.gmra.mrb[0].mxu0 %v43
    %v1125 = vpop.f32.mrb[0].mxu0
    %v1126 = vadd.f32 0.0, %v1125
    %v1127 = vpop.f32.mrb[0].mxu0
    %v1128 = vpop.f32.mrb[0].mxu0
    %v1129 = vpop.f32.mrb[0].mxu0
    %1130 = vdwg.mxu0
    %s1131 = scalar_lea.vmem %s3, 48
    %v1132 = vld [vmem:[%s1131] sm:$0xf]
    %v1133 = vld [vmem:[%s1131 + $0x4] sm:$0xf]
    %v1134 = vld [vmem:[%s1131 + $0x8] sm:$0xf]
    %v1135 = vld [vmem:[%s1131 + $0xc] sm:$0xf]
    %v1140 = vunpack.c.l.b16 %v1132
    %v1141 = vunpack.c.l.b16 %v1133
    %v1142 = vunpack.c.l.b16 %v1134
    %v1143 = vunpack.c.l.b16 %v1135
    %v1144 = vpack.c.b16 %v1141, %v1140
    %v1145 = vpack.c.b16 %v1143, %v1142
    %1148 = vmatprep.subr.bf16.mxu0 0
    %1149 = vmatpush1.bf16.msra.mxu0 %v1144
    %1150 = vmatprep.subr.bf16.mxu0 0
    %1151 = vmatpush1.bf16.msra.mxu0 %v1145
    %1152 = vmatprep.subr.bf16.mxu0 0
    %1153 = vmatpush1.bf16.msra.mxu0 0
    %1154 = vmatprep.subr.bf16.mxu0 0
    %1155 = vmatpush1.bf16.msra.mxu0 0
    %1156 = vmatprep.subr.bf16.mxu0 0
    %1157 = vmatpush1.bf16.msra.mxu0 0
    %1158 = vmatprep.subr.bf16.mxu0 0
    %1159 = vmatpush1.bf16.msra.mxu0 0
    %1160 = vmatprep.subr.bf16.mxu0 0
    %1161 = vmatpush1.bf16.msra.mxu0 0
    %1162 = vmatprep.subr.bf16.mxu0 0
    %1163 = vmatpush1.bf16.msra.mxu0 0
    %1164 = vmatprep.subr.bf16.mxu0 0
    %1165 = vmatpush1.bf16.msra.mxu0 0
    %1166 = vmatprep.subr.bf16.mxu0 0
    %1167 = vmatpush1.bf16.msra.mxu0 0
    %1168 = vmatprep.subr.bf16.mxu0 0
    %1169 = vmatpush1.bf16.msra.mxu0 0
    %1170 = vmatprep.subr.bf16.mxu0 0
    %1171 = vmatpush1.bf16.msra.mxu0 0
    %1172 = vmatprep.subr.bf16.mxu0 0
    %1173 = vmatpush1.bf16.msra.mxu0 0
    %1174 = vmatprep.subr.bf16.mxu0 0
    %1175 = vmatpush1.bf16.msra.mxu0 0
    %1176 = vmatprep.subr.bf16.mxu0 0
    %1177 = vmatpush1.bf16.msra.mxu0 0
    %1178 = vmatprep.subr.bf16.mxu0 0
    %1179 = vmatpush1.bf16.msra.mxu0 0
    %1180 = vmatprep.mubr.bf16.mxu0 0
    %1181 = vmatmul.mubr.bf16.gmra.mrb[0].mxu0 %v43
    %v1182 = vpop.f32.mrb[0].mxu0
    %v1183 = vadd.f32 0.0, %v1182
    %v1184 = vpop.f32.mrb[0].mxu0
    %v1185 = vpop.f32.mrb[0].mxu0
    %v1186 = vpop.f32.mrb[0].mxu0
    %1187 = vdwg.mxu0
    %v1188 = vpack.c.bf16 %v1069, %v1069
    %v1189 = vpack.c.bf16 %v1126, %v1126
    %v1191 = vsel %vm199, %v1188, 0
    %v1194 = vsel %vm199, %v1189, 0
    %1196 = vmatprep.subr.bf16.mxu0 0
    %1197 = vmatpush1.bf16.xpose.msra.mxu0 %v1194
    %1198 = vmatprep.subr.bf16.mxu0 0
    %1199 = vmatpush1.bf16.xpose.msra.mxu0 0
    %1200 = vmatprep.subr.bf16.mxu0 0
    %1201 = vmatpush1.bf16.xpose.msra.mxu0 0
    %1202 = vmatprep.subr.bf16.mxu0 0
    %1203 = vmatpush1.bf16.xpose.msra.mxu0 0
    %1204 = vmatprep.subr.bf16.mxu0 0
    %1205 = vmatpush1.bf16.xpose.msra.mxu0 0
    %1206 = vmatprep.subr.bf16.mxu0 0
    %1207 = vmatpush1.bf16.xpose.msra.mxu0 0
    %1208 = vmatprep.subr.bf16.mxu0 0
    %1209 = vmatpush1.bf16.xpose.msra.mxu0 0
    %1210 = vmatprep.subr.bf16.mxu0 0
    %1211 = vmatpush1.bf16.xpose.msra.mxu0 0
    %1212 = vmatprep.subr.bf16.mxu0 0
    %1213 = vmatpush1.bf16.xpose.msra.mxu0 0
    %1214 = vmatprep.subr.bf16.mxu0 0
    %1215 = vmatpush1.bf16.xpose.msra.mxu0 0
    %1216 = vmatprep.subr.bf16.mxu0 0
    %1217 = vmatpush1.bf16.xpose.msra.mxu0 0
    %1218 = vmatprep.subr.bf16.mxu0 0
    %1219 = vmatpush1.bf16.xpose.msra.mxu0 0
    %1220 = vmatprep.subr.bf16.mxu0 0
    %1221 = vmatpush1.bf16.xpose.msra.mxu0 0
    %1222 = vmatprep.subr.bf16.mxu0 0
    %1223 = vmatpush1.bf16.xpose.msra.mxu0 0
    %1224 = vmatprep.subr.bf16.mxu0 0
    %1225 = vmatpush1.bf16.xpose.msra.mxu0 0
    %1226 = vmatprep.subr.bf16.mxu0 0
    %1227 = vmatpush1.bf16.xpose.msra.mxu0 0
    %1228 = vmatprep.mubr.bf16.mxu0 0
    %1229 = vmatmul.mubr.bf16.gmra.mrb[0].mxu0 %v1191
    %v1230 = vpop.f32.mrb[0].mxu0
    %v1231 = vadd.f32 0.0, %v1230
    %v1232 = vpop.f32.mrb[0].mxu0
    %v1233 = vpop.f32.mrb[0].mxu0
    %v1234 = vpop.f32.mrb[0].mxu0
    %1235 = vdwg.mxu0
    %v1236 = vsel %vm199, %v1231, -inf
    %1237 = vmax.xlane.f32.xlu0 %v1236
    %v1238 = vpop.xlane.xlu0 %1237
    %v1239 = vsub.f32 %v1231, %v1238
    %v1240 = vmul.f32 %v1239, 1.442695
    %v1241 = vpow.pop %v1240
    %v1242 = vsel %vm199, %v1241, 0.0
    %1243 = vadd.xlane.f32.xlu0 %v1242
    %v1244 = vpop.xlane.xlu0 %1243
    %v1245 = vrcp.pop %v1244
    %v1246 = vmul.f32 %v1241, %v1245
    %v1247 = vpack.c.bf16 %v1246, %v1246
    %v1248 = vpack.c.bf16 %v1183, %v1183
    %v1250 = vsel %vm199, %v1247, 0
    %v1253 = vsel %vm262, %v1248, 0
    %1255 = vmatprep.subr.bf16.mxu0 0
    %1256 = vmatpush1.bf16.msra.mxu0 %v1253
    %1257 = vmatprep.subr.bf16.mxu0 0
    %1258 = vmatpush1.bf16.msra.mxu0 0
    %1259 = vmatprep.subr.bf16.mxu0 0
    %1260 = vmatpush1.bf16.msra.mxu0 0
    %1261 = vmatprep.subr.bf16.mxu0 0
    %1262 = vmatpush1.bf16.msra.mxu0 0
    %1263 = vmatprep.subr.bf16.mxu0 0
    %1264 = vmatpush1.bf16.msra.mxu0 0
    %1265 = vmatprep.subr.bf16.mxu0 0
    %1266 = vmatpush1.bf16.msra.mxu0 0
    %1267 = vmatprep.subr.bf16.mxu0 0
    %1268 = vmatpush1.bf16.msra.mxu0 0
    %1269 = vmatprep.subr.bf16.mxu0 0
    %1270 = vmatpush1.bf16.msra.mxu0 0
    %1271 = vmatprep.subr.bf16.mxu0 0
    %1272 = vmatpush1.bf16.msra.mxu0 0
    %1273 = vmatprep.subr.bf16.mxu0 0
    %1274 = vmatpush1.bf16.msra.mxu0 0
    %1275 = vmatprep.subr.bf16.mxu0 0
    %1276 = vmatpush1.bf16.msra.mxu0 0
    %1277 = vmatprep.subr.bf16.mxu0 0
    %1278 = vmatpush1.bf16.msra.mxu0 0
    %1279 = vmatprep.subr.bf16.mxu0 0
    %1280 = vmatpush1.bf16.msra.mxu0 0
    %1281 = vmatprep.subr.bf16.mxu0 0
    %1282 = vmatpush1.bf16.msra.mxu0 0
    %1283 = vmatprep.subr.bf16.mxu0 0
    %1284 = vmatpush1.bf16.msra.mxu0 0
    %1285 = vmatprep.subr.bf16.mxu0 0
    %1286 = vmatpush1.bf16.msra.mxu0 0
    %1287 = vmatprep.mubr.bf16.mxu0 0
    %1288 = vmatmul.mubr.bf16.gmra.mrb[0].mxu0 %v1250
    %v1289 = vpop.f32.mrb[0].mxu0
    %v1290 = vadd.f32 0.0, %v1289
    %v1291 = vpop.f32.mrb[0].mxu0
    %v1292 = vpop.f32.mrb[0].mxu0
    %v1293 = vpop.f32.mrb[0].mxu0
    %1294 = vdwg.mxu0
    %v1295 = vld [vmem:[#allocation2] sm:$0xff]
    %v1296 = vpack.c.bf16 %v1290, %v1290
    %s1297 = scalar_lea.vmem %s4, 12
    %v1298 = vld [vmem:[%s1297] sm:$0xf]
    %v1300 = vsel %vm199, %v1296, 0
    %v1303 = vsel %vm262, %v1298, 0
    %1305 = vmatprep.subr.bf16.mxu0 0
    %1306 = vmatpush1.bf16.msra.mxu0 %v1303
    %1307 = vmatprep.subr.bf16.mxu0 0
    %1308 = vmatpush1.bf16.msra.mxu0 0
    %1309 = vmatprep.subr.bf16.mxu0 0
    %1310 = vmatpush1.bf16.msra.mxu0 0
    %1311 = vmatprep.subr.bf16.mxu0 0
    %1312 = vmatpush1.bf16.msra.mxu0 0
    %1313 = vmatprep.subr.bf16.mxu0 0
    %1314 = vmatpush1.bf16.msra.mxu0 0
    %1315 = vmatprep.subr.bf16.mxu0 0
    %1316 = vmatpush1.bf16.msra.mxu0 0
    %1317 = vmatprep.subr.bf16.mxu0 0
    %1318 = vmatpush1.bf16.msra.mxu0 0
    %1319 = vmatprep.subr.bf16.mxu0 0
    %1320 = vmatpush1.bf16.msra.mxu0 0
    %1321 = vmatprep.subr.bf16.mxu0 0
    %1322 = vmatpush1.bf16.msra.mxu0 0
    %1323 = vmatprep.subr.bf16.mxu0 0
    %1324 = vmatpush1.bf16.msra.mxu0 0
    %1325 = vmatprep.subr.bf16.mxu0 0
    %1326 = vmatpush1.bf16.msra.mxu0 0
    %1327 = vmatprep.subr.bf16.mxu0 0
    %1328 = vmatpush1.bf16.msra.mxu0 0
    %1329 = vmatprep.subr.bf16.mxu0 0
    %1330 = vmatpush1.bf16.msra.mxu0 0
    %1331 = vmatprep.subr.bf16.mxu0 0
    %1332 = vmatpush1.bf16.msra.mxu0 0
    %1333 = vmatprep.subr.bf16.mxu0 0
    %1334 = vmatpush1.bf16.msra.mxu0 0
    %1335 = vmatprep.subr.bf16.mxu0 0
    %1336 = vmatpush1.bf16.msra.mxu0 0
    %1337 = vmatprep.mubr.bf16.mxu0 0
    %1338 = vmatmul.mubr.bf16.gmra.mrb[0].mxu0 %v1300
    %v1339 = vpop.f32.mrb[0].mxu0
    %v1340 = vadd.f32 0.0, %v1339
    %v1341 = vpop.f32.mrb[0].mxu0
    %v1342 = vpop.f32.mrb[0].mxu0
    %v1343 = vpop.f32.mrb[0].mxu0
    %1344 = vdwg.mxu0
    %v1345 = vadd.f32 %v1295, %v1340
    %1346 = vst.msk [vmem:[#allocation2] sm:$0xff] %vm24, %v1345
    %v1347 = vld [vmem:[#allocation2] sm:$0xff]
    %1348 = vst.msk [vmem:[#allocation3] sm:$0xff] %vm24, %v1347
    %s1349 = scalar_lea.vmem %s0, 8
    %v1350 = vld [vmem:[%s1349] sm:$0xff]
    %v1351 = vpack.c.bf16 %v1350, %v1350
    %1352 = vst.msk [vmem:[#allocation2] sm:$0xff] %vm24, 0.0
    %v1353 = vld [vmem:[%s1] sm:$0xf]
    %v1354 = vld [vmem:[%s1 + $0x4] sm:$0xf]
    %v1355 = vld [vmem:[%s1 + $0x8] sm:$0xf]
    %v1356 = vld [vmem:[%s1 + $0xc] sm:$0xf]
    %v1361 = vunpack.c.l.b16 %v1353
    %v1362 = vunpack.c.l.b16 %v1354
    %v1363 = vunpack.c.l.b16 %v1355
    %v1364 = vunpack.c.l.b16 %v1356
    %v1365 = vpack.c.b16 %v1362, %v1361
    %v1366 = vpack.c.b16 %v1364, %v1363
    %v1370 = vsel %vm24, %v1351, 0
    %1372 = vmatprep.subr.bf16.mxu0 0
    %1373 = vmatpush1.bf16.msra.mxu0 %v1365
    %1374 = vmatprep.subr.bf16.mxu0 0
    %1375 = vmatpush1.bf16.msra.mxu0 %v1366
    %1376 = vmatprep.subr.bf16.mxu0 0
    %1377 = vmatpush1.bf16.msra.mxu0 0
    %1378 = vmatprep.subr.bf16.mxu0 0
    %1379 = vmatpush1.bf16.msra.mxu0 0
    %1380 = vmatprep.subr.bf16.mxu0 0
    %1381 = vmatpush1.bf16.msra.mxu0 0
    %1382 = vmatprep.subr.bf16.mxu0 0
    %1383 = vmatpush1.bf16.msra.mxu0 0
    %1384 = vmatprep.subr.bf16.mxu0 0
    %1385 = vmatpush1.bf16.msra.mxu0 0
    %1386 = vmatprep.subr.bf16.mxu0 0
    %1387 = vmatpush1.bf16.msra.mxu0 0
    %1388 = vmatprep.subr.bf16.mxu0 0
    %1389 = vmatpush1.bf16.msra.mxu0 0
    %1390 = vmatprep.subr.bf16.mxu0 0
    %1391 = vmatpush1.bf16.msra.mxu0 0
    %1392 = vmatprep.subr.bf16.mxu0 0
    %1393 = vmatpush1.bf16.msra.mxu0 0
    %1394 = vmatprep.subr.bf16.mxu0 0
    %1395 = vmatpush1.bf16.msra.mxu0 0
    %1396 = vmatprep.subr.bf16.mxu0 0
    %1397 = vmatpush1.bf16.msra.mxu0 0
    %1398 = vmatprep.subr.bf16.mxu0 0
    %1399 = vmatpush1.bf16.msra.mxu0 0
    %1400 = vmatprep.subr.bf16.mxu0 0
    %1401 = vmatpush1.bf16.msra.mxu0 0
    %1402 = vmatprep.subr.bf16.mxu0 0
    %1403 = vmatpush1.bf16.msra.mxu0 0
    %1404 = vmatprep.mubr.bf16.mxu0 0
    %1405 = vmatmul.mubr.bf16.gmra.mrb[0].mxu0 %v1370
    %v1406 = vpop.f32.mrb[0].mxu0
    %v1407 = vadd.f32 0.0, %v1406
    %v1408 = vpop.f32.mrb[0].mxu0
    %v1409 = vpop.f32.mrb[0].mxu0
    %v1410 = vpop.f32.mrb[0].mxu0
    %1411 = vdwg.mxu0
    %v1412 = vld [vmem:[%s2] sm:$0xf]
    %v1413 = vld [vmem:[%s2 + $0x4] sm:$0xf]
    %v1414 = vld [vmem:[%s2 + $0x8] sm:$0xf]
    %v1415 = vld [vmem:[%s2 + $0xc] sm:$0xf]
    %v1420 = vunpack.c.l.b16 %v1412
    %v1421 = vunpack.c.l.b16 %v1413
    %v1422 = vunpack.c.l.b16 %v1414
    %v1423 = vunpack.c.l.b16 %v1415
    %v1424 = vpack.c.b16 %v1421, %v1420
    %v1425 = vpack.c.b16 %v1423, %v1422
    %1428 = vmatprep.subr.bf16.mxu0 0
    %1429 = vmatpush1.bf16.msra.mxu0 %v1424
    %1430 = vmatprep.subr.bf16.mxu0 0
    %1431 = vmatpush1.bf16.msra.mxu0 %v1425
    %1432 = vmatprep.subr.bf16.mxu0 0
    %1433 = vmatpush1.bf16.msra.mxu0 0
    %1434 = vmatprep.subr.bf16.mxu0 0
    %1435 = vmatpush1.bf16.msra.mxu0 0
    %1436 = vmatprep.subr.bf16.mxu0 0
    %1437 = vmatpush1.bf16.msra.mxu0 0
    %1438 = vmatprep.subr.bf16.mxu0 0
    %1439 = vmatpush1.bf16.msra.mxu0 0
    %1440 = vmatprep.subr.bf16.mxu0 0
    %1441 = vmatpush1.bf16.msra.mxu0 0
    %1442 = vmatprep.subr.bf16.mxu0 0
    %1443 = vmatpush1.bf16.msra.mxu0 0
    %1444 = vmatprep.subr.bf16.mxu0 0
    %1445 = vmatpush1.bf16.msra.mxu0 0
    %1446 = vmatprep.subr.bf16.mxu0 0
    %1447 = vmatpush1.bf16.msra.mxu0 0
    %1448 = vmatprep.subr.bf16.mxu0 0
    %1449 = vmatpush1.bf16.msra.mxu0 0
    %1450 = vmatprep.subr.bf16.mxu0 0
    %1451 = vmatpush1.bf16.msra.mxu0 0
    %1452 = vmatprep.subr.bf16.mxu0 0
    %1453 = vmatpush1.bf16.msra.mxu0 0
    %1454 = vmatprep.subr.bf16.mxu0 0
    %1455 = vmatpush1.bf16.msra.mxu0 0
    %1456 = vmatprep.subr.bf16.mxu0 0
    %1457 = vmatpush1.bf16.msra.mxu0 0
    %1458 = vmatprep.subr.bf16.mxu0 0
    %1459 = vmatpush1.bf16.msra.mxu0 0
    %1460 = vmatprep.mubr.bf16.mxu0 0
    %1461 = vmatmul.mubr.bf16.gmra.mrb[0].mxu0 %v1370
    %v1462 = vpop.f32.mrb[0].mxu0
    %v1463 = vadd.f32 0.0, %v1462
    %v1464 = vpop.f32.mrb[0].mxu0
    %v1465 = vpop.f32.mrb[0].mxu0
    %v1466 = vpop.f32.mrb[0].mxu0
    %1467 = vdwg.mxu0
    %v1468 = vld [vmem:[%s3] sm:$0xf]
    %v1469 = vld [vmem:[%s3 + $0x4] sm:$0xf]
    %v1470 = vld [vmem:[%s3 + $0x8] sm:$0xf]
    %v1471 = vld [vmem:[%s3 + $0xc] sm:$0xf]
    %v1476 = vunpack.c.l.b16 %v1468
    %v1477 = vunpack.c.l.b16 %v1469
    %v1478 = vunpack.c.l.b16 %v1470
    %v1479 = vunpack.c.l.b16 %v1471
    %v1480 = vpack.c.b16 %v1477, %v1476
    %v1481 = vpack.c.b16 %v1479, %v1478
    %1484 = vmatprep.subr.bf16.mxu0 0
    %1485 = vmatpush1.bf16.msra.mxu0 %v1480
    %1486 = vmatprep.subr.bf16.mxu0 0
    %1487 = vmatpush1.bf16.msra.mxu0 %v1481
    %1488 = vmatprep.subr.bf16.mxu0 0
    %1489 = vmatpush1.bf16.msra.mxu0 0
    %1490 = vmatprep.subr.bf16.mxu0 0
    %1491 = vmatpush1.bf16.msra.mxu0 0
    %1492 = vmatprep.subr.bf16.mxu0 0
    %1493 = vmatpush1.bf16.msra.mxu0 0
    %1494 = vmatprep.subr.bf16.mxu0 0
    %1495 = vmatpush1.bf16.msra.mxu0 0
    %1496 = vmatprep.subr.bf16.mxu0 0
    %1497 = vmatpush1.bf16.msra.mxu0 0
    %1498 = vmatprep.subr.bf16.mxu0 0
    %1499 = vmatpush1.bf16.msra.mxu0 0
    %1500 = vmatprep.subr.bf16.mxu0 0
    %1501 = vmatpush1.bf16.msra.mxu0 0
    %1502 = vmatprep.subr.bf16.mxu0 0
    %1503 = vmatpush1.bf16.msra.mxu0 0
    %1504 = vmatprep.subr.bf16.mxu0 0
    %1505 = vmatpush1.bf16.msra.mxu0 0
    %1506 = vmatprep.subr.bf16.mxu0 0
    %1507 = vmatpush1.bf16.msra.mxu0 0
    %1508 = vmatprep.subr.bf16.mxu0 0
    %1509 = vmatpush1.bf16.msra.mxu0 0
    %1510 = vmatprep.subr.bf16.mxu0 0
    %1511 = vmatpush1.bf16.msra.mxu0 0
    %1512 = vmatprep.subr.bf16.mxu0 0
    %1513 = vmatpush1.bf16.msra.mxu0 0
    %1514 = vmatprep.subr.bf16.mxu0 0
    %1515 = vmatpush1.bf16.msra.mxu0 0
    %1516 = vmatprep.mubr.bf16.mxu0 0
    %1517 = vmatmul.mubr.bf16.gmra.mrb[0].mxu0 %v1370
    %v1518 = vpop.f32.mrb[0].mxu0
    %v1519 = vadd.f32 0.0, %v1518
    %v1520 = vpop.f32.mrb[0].mxu0
    %v1521 = vpop.f32.mrb[0].mxu0
    %v1522 = vpop.f32.mrb[0].mxu0
    %1523 = vdwg.mxu0
    %v1524 = vpack.c.bf16 %v1407, %v1407
    %v1525 = vpack.c.bf16 %v1463, %v1463
    %v1527 = vsel %vm199, %v1524, 0
    %v1530 = vsel %vm199, %v1525, 0
    %1532 = vmatprep.subr.bf16.mxu0 0
    %1533 = vmatpush1.bf16.xpose.msra.mxu0 %v1530
    %1534 = vmatprep.subr.bf16.mxu0 0
    %1535 = vmatpush1.bf16.xpose.msra.mxu0 0
    %1536 = vmatprep.subr.bf16.mxu0 0
    %1537 = vmatpush1.bf16.xpose.msra.mxu0 0
    %1538 = vmatprep.subr.bf16.mxu0 0
    %1539 = vmatpush1.bf16.xpose.msra.mxu0 0
    %1540 = vmatprep.subr.bf16.mxu0 0
    %1541 = vmatpush1.bf16.xpose.msra.mxu0 0
    %1542 = vmatprep.subr.bf16.mxu0 0
    %1543 = vmatpush1.bf16.xpose.msra.mxu0 0
    %1544 = vmatprep.subr.bf16.mxu0 0
    %1545 = vmatpush1.bf16.xpose.msra.mxu0 0
    %1546 = vmatprep.subr.bf16.mxu0 0
    %1547 = vmatpush1.bf16.xpose.msra.mxu0 0
    %1548 = vmatprep.subr.bf16.mxu0 0
    %1549 = vmatpush1.bf16.xpose.msra.mxu0 0
    %1550 = vmatprep.subr.bf16.mxu0 0
    %1551 = vmatpush1.bf16.xpose.msra.mxu0 0
    %1552 = vmatprep.subr.bf16.mxu0 0
    %1553 = vmatpush1.bf16.xpose.msra.mxu0 0
    %1554 = vmatprep.subr.bf16.mxu0 0
    %1555 = vmatpush1.bf16.xpose.msra.mxu0 0
    %1556 = vmatprep.subr.bf16.mxu0 0
    %1557 = vmatpush1.bf16.xpose.msra.mxu0 0
    %1558 = vmatprep.subr.bf16.mxu0 0
    %1559 = vmatpush1.bf16.xpose.msra.mxu0 0
    %1560 = vmatprep.subr.bf16.mxu0 0
    %1561 = vmatpush1.bf16.xpose.msra.mxu0 0
    %1562 = vmatprep.subr.bf16.mxu0 0
    %1563 = vmatpush1.bf16.xpose.msra.mxu0 0
    %1564 = vmatprep.mubr.bf16.mxu0 0
    %1565 = vmatmul.mubr.bf16.gmra.mrb[0].mxu0 %v1527
    %v1566 = vpop.f32.mrb[0].mxu0
    %v1567 = vadd.f32 0.0, %v1566
    %v1568 = vpop.f32.mrb[0].mxu0
    %v1569 = vpop.f32.mrb[0].mxu0
    %v1570 = vpop.f32.mrb[0].mxu0
    %1571 = vdwg.mxu0
    %v1572 = vsel %vm199, %v1567, -inf
    %1573 = vmax.xlane.f32.xlu0 %v1572
    %v1574 = vpop.xlane.xlu0 %1573
    %v1575 = vsub.f32 %v1567, %v1574
    %v1576 = vmul.f32 %v1575, 1.442695
    %v1577 = vpow.pop %v1576
    %v1578 = vsel %vm199, %v1577, 0.0
    %1579 = vadd.xlane.f32.xlu0 %v1578
    %v1580 = vpop.xlane.xlu0 %1579
    %v1581 = vrcp.pop %v1580
    %v1582 = vmul.f32 %v1577, %v1581
    %v1583 = vpack.c.bf16 %v1582, %v1582
    %v1584 = vpack.c.bf16 %v1519, %v1519
    %v1586 = vsel %vm199, %v1583, 0
    %v1589 = vsel %vm262, %v1584, 0
    %1591 = vmatprep.subr.bf16.mxu0 0
    %1592 = vmatpush1.bf16.msra.mxu0 %v1589
    %1593 = vmatprep.subr.bf16.mxu0 0
    %1594 = vmatpush1.bf16.msra.mxu0 0
    %1595 = vmatprep.subr.bf16.mxu0 0
    %1596 = vmatpush1.bf16.msra.mxu0 0
    %1597 = vmatprep.subr.bf16.mxu0 0
    %1598 = vmatpush1.bf16.msra.mxu0 0
    %1599 = vmatprep.subr.bf16.mxu0 0
    %1600 = vmatpush1.bf16.msra.mxu0 0
    %1601 = vmatprep.subr.bf16.mxu0 0
    %1602 = vmatpush1.bf16.msra.mxu0 0
    %1603 = vmatprep.subr.bf16.mxu0 0
    %1604 = vmatpush1.bf16.msra.mxu0 0
    %1605 = vmatprep.subr.bf16.mxu0 0
    %1606 = vmatpush1.bf16.msra.mxu0 0
    %1607 = vmatprep.subr.bf16.mxu0 0
    %1608 = vmatpush1.bf16.msra.mxu0 0
    %1609 = vmatprep.subr.bf16.mxu0 0
    %1610 = vmatpush1.bf16.msra.mxu0 0
    %1611 = vmatprep.subr.bf16.mxu0 0
    %1612 = vmatpush1.bf16.msra.mxu0 0
    %1613 = vmatprep.subr.bf16.mxu0 0
    %1614 = vmatpush1.bf16.msra.mxu0 0
    %1615 = vmatprep.subr.bf16.mxu0 0
    %1616 = vmatpush1.bf16.msra.mxu0 0
    %1617 = vmatprep.subr.bf16.mxu0 0
    %1618 = vmatpush1.bf16.msra.mxu0 0
    %1619 = vmatprep.subr.bf16.mxu0 0
    %1620 = vmatpush1.bf16.msra.mxu0 0
    %1621 = vmatprep.subr.bf16.mxu0 0
    %1622 = vmatpush1.bf16.msra.mxu0 0
    %1623 = vmatprep.mubr.bf16.mxu0 0
    %1624 = vmatmul.mubr.bf16.gmra.mrb[0].mxu0 %v1586
    %v1625 = vpop.f32.mrb[0].mxu0
    %v1626 = vadd.f32 0.0, %v1625
    %v1627 = vpop.f32.mrb[0].mxu0
    %v1628 = vpop.f32.mrb[0].mxu0
    %v1629 = vpop.f32.mrb[0].mxu0
    %1630 = vdwg.mxu0
    %v1631 = vld [vmem:[#allocation2] sm:$0xff]
    %v1632 = vpack.c.bf16 %v1626, %v1626
    %v1633 = vld [vmem:[%s4] sm:$0xf]
    %v1635 = vsel %vm199, %v1632, 0
    %v1638 = vsel %vm262, %v1633, 0
    %1640 = vmatprep.subr.bf16.mxu0 0
    %1641 = vmatpush1.bf16.msra.mxu0 %v1638
    %1642 = vmatprep.subr.bf16.mxu0 0
    %1643 = vmatpush1.bf16.msra.mxu0 0
    %1644 = vmatprep.subr.bf16.mxu0 0
    %1645 = vmatpush1.bf16.msra.mxu0 0
    %1646 = vmatprep.subr.bf16.mxu0 0
    %1647 = vmatpush1.bf16.msra.mxu0 0
    %1648 = vmatprep.subr.bf16.mxu0 0
    %1649 = vmatpush1.bf16.msra.mxu0 0
    %1650 = vmatprep.subr.bf16.mxu0 0
    %1651 = vmatpush1.bf16.msra.mxu0 0
    %1652 = vmatprep.subr.bf16.mxu0 0
    %1653 = vmatpush1.bf16.msra.mxu0 0
    %1654 = vmatprep.subr.bf16.mxu0 0
    %1655 = vmatpush1.bf16.msra.mxu0 0
    %1656 = vmatprep.subr.bf16.mxu0 0
    %1657 = vmatpush1.bf16.msra.mxu0 0
    %1658 = vmatprep.subr.bf16.mxu0 0
    %1659 = vmatpush1.bf16.msra.mxu0 0
    %1660 = vmatprep.subr.bf16.mxu0 0
    %1661 = vmatpush1.bf16.msra.mxu0 0
    %1662 = vmatprep.subr.bf16.mxu0 0
    %1663 = vmatpush1.bf16.msra.mxu0 0
    %1664 = vmatprep.subr.bf16.mxu0 0
    %1665 = vmatpush1.bf16.msra.mxu0 0
    %1666 = vmatprep.subr.bf16.mxu0 0
    %1667 = vmatpush1.bf16.msra.mxu0 0
    %1668 = vmatprep.subr.bf16.mxu0 0
    %1669 = vmatpush1.bf16.msra.mxu0 0
    %1670 = vmatprep.subr.bf16.mxu0 0
    %1671 = vmatpush1.bf16.msra.mxu0 0
    %1672 = vmatprep.mubr.bf16.mxu0 0
    %1673 = vmatmul.mubr.bf16.gmra.mrb[0].mxu0 %v1635
    %v1674 = vpop.f32.mrb[0].mxu0
    %v1675 = vadd.f32 0.0, %v1674
    %v1676 = vpop.f32.mrb[0].mxu0
    %v1677 = vpop.f32.mrb[0].mxu0
    %v1678 = vpop.f32.mrb[0].mxu0
    %1679 = vdwg.mxu0
    %v1680 = vadd.f32 %v1631, %v1675
    %1681 = vst.msk [vmem:[#allocation2] sm:$0xff] %vm24, %v1680
    %v1682 = vld [vmem:[%s357] sm:$0xf]
    %v1683 = vld [vmem:[%s357 + $0x4] sm:$0xf]
    %v1684 = vld [vmem:[%s357 + $0x8] sm:$0xf]
    %v1685 = vld [vmem:[%s357 + $0xc] sm:$0xf]
    %v1690 = vunpack.c.l.b16 %v1682
    %v1691 = vunpack.c.l.b16 %v1683
    %v1692 = vunpack.c.l.b16 %v1684
    %v1693 = vunpack.c.l.b16 %v1685
    %v1694 = vpack.c.b16 %v1691, %v1690
    %v1695 = vpack.c.b16 %v1693, %v1692
    %1698 = vmatprep.subr.bf16.mxu0 0
    %1699 = vmatpush1.bf16.msra.mxu0 %v1694
    %1700 = vmatprep.subr.bf16.mxu0 0
    %1701 = vmatpush1.bf16.msra.mxu0 %v1695
    %1702 = vmatprep.subr.bf16.mxu0 0
    %1703 = vmatpush1.bf16.msra.mxu0 0
    %1704 = vmatprep.subr.bf16.mxu0 0
    %1705 = vmatpush1.bf16.msra.mxu0 0
    %1706 = vmatprep.subr.bf16.mxu0 0
    %1707 = vmatpush1.bf16.msra.mxu0 0
    %1708 = vmatprep.subr.bf16.mxu0 0
    %1709 = vmatpush1.bf16.msra.mxu0 0
    %1710 = vmatprep.subr.bf16.mxu0 0
    %1711 = vmatpush1.bf16.msra.mxu0 0
    %1712 = vmatprep.subr.bf16.mxu0 0
    %1713 = vmatpush1.bf16.msra.mxu0 0
    %1714 = vmatprep.subr.bf16.mxu0 0
    %1715 = vmatpush1.bf16.msra.mxu0 0
    %1716 = vmatprep.subr.bf16.mxu0 0
    %1717 = vmatpush1.bf16.msra.mxu0 0
    %1718 = vmatprep.subr.bf16.mxu0 0
    %1719 = vmatpush1.bf16.msra.mxu0 0
    %1720 = vmatprep.subr.bf16.mxu0 0
    %1721 = vmatpush1.bf16.msra.mxu0 0
    %1722 = vmatprep.subr.bf16.mxu0 0
    %1723 = vmatpush1.bf16.msra.mxu0 0
    %1724 = vmatprep.subr.bf16.mxu0 0
    %1725 = vmatpush1.bf16.msra.mxu0 0
    %1726 = vmatprep.subr.bf16.mxu0 0
    %1727 = vmatpush1.bf16.msra.mxu0 0
    %1728 = vmatprep.subr.bf16.mxu0 0
    %1729 = vmatpush1.bf16.msra.mxu0 0
    %1730 = vmatprep.mubr.bf16.mxu0 0
    %1731 = vmatmul.mubr.bf16.gmra.mrb[0].mxu0 %v1370
    %v1732 = vpop.f32.mrb[0].mxu0
    %v1733 = vadd.f32 0.0, %v1732
    %v1734 = vpop.f32.mrb[0].mxu0
    %v1735 = vpop.f32.mrb[0].mxu0
    %v1736 = vpop.f32.mrb[0].mxu0
    %1737 = vdwg.mxu0
    %v1738 = vld [vmem:[%s414] sm:$0xf]
    %v1739 = vld [vmem:[%s414 + $0x4] sm:$0xf]
    %v1740 = vld [vmem:[%s414 + $0x8] sm:$0xf]
    %v1741 = vld [vmem:[%s414 + $0xc] sm:$0xf]
    %v1746 = vunpack.c.l.b16 %v1738
    %v1747 = vunpack.c.l.b16 %v1739
    %v1748 = vunpack.c.l.b16 %v1740
    %v1749 = vunpack.c.l.b16 %v1741
    %v1750 = vpack.c.b16 %v1747, %v1746
    %v1751 = vpack.c.b16 %v1749, %v1748
    %1754 = vmatprep.subr.bf16.mxu0 0
    %1755 = vmatpush1.bf16.msra.mxu0 %v1750
    %1756 = vmatprep.subr.bf16.mxu0 0
    %1757 = vmatpush1.bf16.msra.mxu0 %v1751
    %1758 = vmatprep.subr.bf16.mxu0 0
    %1759 = vmatpush1.bf16.msra.mxu0 0
    %1760 = vmatprep.subr.bf16.mxu0 0
    %1761 = vmatpush1.bf16.msra.mxu0 0
    %1762 = vmatprep.subr.bf16.mxu0 0
    %1763 = vmatpush1.bf16.msra.mxu0 0
    %1764 = vmatprep.subr.bf16.mxu0 0
    %1765 = vmatpush1.bf16.msra.mxu0 0
    %1766 = vmatprep.subr.bf16.mxu0 0
    %1767 = vmatpush1.bf16.msra.mxu0 0
    %1768 = vmatprep.subr.bf16.mxu0 0
    %1769 = vmatpush1.bf16.msra.mxu0 0
    %1770 = vmatprep.subr.bf16.mxu0 0
    %1771 = vmatpush1.bf16.msra.mxu0 0
    %1772 = vmatprep.subr.bf16.mxu0 0
    %1773 = vmatpush1.bf16.msra.mxu0 0
    %1774 = vmatprep.subr.bf16.mxu0 0
    %1775 = vmatpush1.bf16.msra.mxu0 0
    %1776 = vmatprep.subr.bf16.mxu0 0
    %1777 = vmatpush1.bf16.msra.mxu0 0
    %1778 = vmatprep.subr.bf16.mxu0 0
    %1779 = vmatpush1.bf16.msra.mxu0 0
    %1780 = vmatprep.subr.bf16.mxu0 0
    %1781 = vmatpush1.bf16.msra.mxu0 0
    %1782 = vmatprep.subr.bf16.mxu0 0
    %1783 = vmatpush1.bf16.msra.mxu0 0
    %1784 = vmatprep.subr.bf16.mxu0 0
    %1785 = vmatpush1.bf16.msra.mxu0 0
    %1786 = vmatprep.mubr.bf16.mxu0 0
    %1787 = vmatmul.mubr.bf16.gmra.mrb[0].mxu0 %v1370
    %v1788 = vpop.f32.mrb[0].mxu0
    %v1789 = vadd.f32 0.0, %v1788
    %v1790 = vpop.f32.mrb[0].mxu0
    %v1791 = vpop.f32.mrb[0].mxu0
    %v1792 = vpop.f32.mrb[0].mxu0
    %1793 = vdwg.mxu0
    %v1794 = vld [vmem:[%s471] sm:$0xf]
    %v1795 = vld [vmem:[%s471 + $0x4] sm:$0xf]
    %v1796 = vld [vmem:[%s471 + $0x8] sm:$0xf]
    %v1797 = vld [vmem:[%s471 + $0xc] sm:$0xf]
    %v1802 = vunpack.c.l.b16 %v1794
    %v1803 = vunpack.c.l.b16 %v1795
    %v1804 = vunpack.c.l.b16 %v1796
    %v1805 = vunpack.c.l.b16 %v1797
    %v1806 = vpack.c.b16 %v1803, %v1802
    %v1807 = vpack.c.b16 %v1805, %v1804
    %1810 = vmatprep.subr.bf16.mxu0 0
    %1811 = vmatpush1.bf16.msra.mxu0 %v1806
    %1812 = vmatprep.subr.bf16.mxu0 0
    %1813 = vmatpush1.bf16.msra.mxu0 %v1807
    %1814 = vmatprep.subr.bf16.mxu0 0
    %1815 = vmatpush1.bf16.msra.mxu0 0
    %1816 = vmatprep.subr.bf16.mxu0 0
    %1817 = vmatpush1.bf16.msra.mxu0 0
    %1818 = vmatprep.subr.bf16.mxu0 0
    %1819 = vmatpush1.bf16.msra.mxu0 0
    %1820 = vmatprep.subr.bf16.mxu0 0
    %1821 = vmatpush1.bf16.msra.mxu0 0
    %1822 = vmatprep.subr.bf16.mxu0 0
    %1823 = vmatpush1.bf16.msra.mxu0 0
    %1824 = vmatprep.subr.bf16.mxu0 0
    %1825 = vmatpush1.bf16.msra.mxu0 0
    %1826 = vmatprep.subr.bf16.mxu0 0
    %1827 = vmatpush1.bf16.msra.mxu0 0
    %1828 = vmatprep.subr.bf16.mxu0 0
    %1829 = vmatpush1.bf16.msra.mxu0 0
    %1830 = vmatprep.subr.bf16.mxu0 0
    %1831 = vmatpush1.bf16.msra.mxu0 0
    %1832 = vmatprep.subr.bf16.mxu0 0
    %1833 = vmatpush1.bf16.msra.mxu0 0
    %1834 = vmatprep.subr.bf16.mxu0 0
    %1835 = vmatpush1.bf16.msra.mxu0 0
    %1836 = vmatprep.subr.bf16.mxu0 0
    %1837 = vmatpush1.bf16.msra.mxu0 0
    %1838 = vmatprep.subr.bf16.mxu0 0
    %1839 = vmatpush1.bf16.msra.mxu0 0
    %1840 = vmatprep.subr.bf16.mxu0 0
    %1841 = vmatpush1.bf16.msra.mxu0 0
    %1842 = vmatprep.mubr.bf16.mxu0 0
    %1843 = vmatmul.mubr.bf16.gmra.mrb[0].mxu0 %v1370
    %v1844 = vpop.f32.mrb[0].mxu0
    %v1845 = vadd.f32 0.0, %v1844
    %v1846 = vpop.f32.mrb[0].mxu0
    %v1847 = vpop.f32.mrb[0].mxu0
    %v1848 = vpop.f32.mrb[0].mxu0
    %1849 = vdwg.mxu0
    %v1850 = vpack.c.bf16 %v1733, %v1733
    %v1851 = vpack.c.bf16 %v1789, %v1789
    %v1853 = vsel %vm199, %v1850, 0
    %v1856 = vsel %vm199, %v1851, 0
    %1858 = vmatprep.subr.bf16.mxu0 0
    %1859 = vmatpush1.bf16.xpose.msra.mxu0 %v1856
    %1860 = vmatprep.subr.bf16.mxu0 0
    %1861 = vmatpush1.bf16.xpose.msra.mxu0 0
    %1862 = vmatprep.subr.bf16.mxu0 0
    %1863 = vmatpush1.bf16.xpose.msra.mxu0 0
    %1864 = vmatprep.subr.bf16.mxu0 0
    %1865 = vmatpush1.bf16.xpose.msra.mxu0 0
    %1866 = vmatprep.subr.bf16.mxu0 0
    %1867 = vmatpush1.bf16.xpose.msra.mxu0 0
    %1868 = vmatprep.subr.bf16.mxu0 0
    %1869 = vmatpush1.bf16.xpose.msra.mxu0 0
    %1870 = vmatprep.subr.bf16.mxu0 0
    %1871 = vmatpush1.bf16.xpose.msra.mxu0 0
    %1872 = vmatprep.subr.bf16.mxu0 0
    %1873 = vmatpush1.bf16.xpose.msra.mxu0 0
    %1874 = vmatprep.subr.bf16.mxu0 0
    %1875 = vmatpush1.bf16.xpose.msra.mxu0 0
    %1876 = vmatprep.subr.bf16.mxu0 0
    %1877 = vmatpush1.bf16.xpose.msra.mxu0 0
    %1878 = vmatprep.subr.bf16.mxu0 0
    %1879 = vmatpush1.bf16.xpose.msra.mxu0 0
    %1880 = vmatprep.subr.bf16.mxu0 0
    %1881 = vmatpush1.bf16.xpose.msra.mxu0 0
    %1882 = vmatprep.subr.bf16.mxu0 0
    %1883 = vmatpush1.bf16.xpose.msra.mxu0 0
    %1884 = vmatprep.subr.bf16.mxu0 0
    %1885 = vmatpush1.bf16.xpose.msra.mxu0 0
    %1886 = vmatprep.subr.bf16.mxu0 0
    %1887 = vmatpush1.bf16.xpose.msra.mxu0 0
    %1888 = vmatprep.subr.bf16.mxu0 0
    %1889 = vmatpush1.bf16.xpose.msra.mxu0 0
    %1890 = vmatprep.mubr.bf16.mxu0 0
    %1891 = vmatmul.mubr.bf16.gmra.mrb[0].mxu0 %v1853
    %v1892 = vpop.f32.mrb[0].mxu0
    %v1893 = vadd.f32 0.0, %v1892
    %v1894 = vpop.f32.mrb[0].mxu0
    %v1895 = vpop.f32.mrb[0].mxu0
    %v1896 = vpop.f32.mrb[0].mxu0
    %1897 = vdwg.mxu0
    %v1898 = vsel %vm199, %v1893, -inf
    %1899 = vmax.xlane.f32.xlu0 %v1898
    %v1900 = vpop.xlane.xlu0 %1899
    %v1901 = vsub.f32 %v1893, %v1900
    %v1902 = vmul.f32 %v1901, 1.442695
    %v1903 = vpow.pop %v1902
    %v1904 = vsel %vm199, %v1903, 0.0
    %1905 = vadd.xlane.f32.xlu0 %v1904
    %v1906 = vpop.xlane.xlu0 %1905
    %v1907 = vrcp.pop %v1906
    %v1908 = vmul.f32 %v1903, %v1907
    %v1909 = vpack.c.bf16 %v1908, %v1908
    %v1910 = vpack.c.bf16 %v1845, %v1845
    %v1912 = vsel %vm199, %v1909, 0
    %v1915 = vsel %vm262, %v1910, 0
    %1917 = vmatprep.subr.bf16.mxu0 0
    %1918 = vmatpush1.bf16.msra.mxu0 %v1915
    %1919 = vmatprep.subr.bf16.mxu0 0
    %1920 = vmatpush1.bf16.msra.mxu0 0
    %1921 = vmatprep.subr.bf16.mxu0 0
    %1922 = vmatpush1.bf16.msra.mxu0 0
    %1923 = vmatprep.subr.bf16.mxu0 0
    %1924 = vmatpush1.bf16.msra.mxu0 0
    %1925 = vmatprep.subr.bf16.mxu0 0
    %1926 = vmatpush1.bf16.msra.mxu0 0
    %1927 = vmatprep.subr.bf16.mxu0 0
    %1928 = vmatpush1.bf16.msra.mxu0 0
    %1929 = vmatprep.subr.bf16.mxu0 0
    %1930 = vmatpush1.bf16.msra.mxu0 0
    %1931 = vmatprep.subr.bf16.mxu0 0
    %1932 = vmatpush1.bf16.msra.mxu0 0
    %1933 = vmatprep.subr.bf16.mxu0 0
    %1934 = vmatpush1.bf16.msra.mxu0 0
    %1935 = vmatprep.subr.bf16.mxu0 0
    %1936 = vmatpush1.bf16.msra.mxu0 0
    %1937 = vmatprep.subr.bf16.mxu0 0
    %1938 = vmatpush1.bf16.msra.mxu0 0
    %1939 = vmatprep.subr.bf16.mxu0 0
    %1940 = vmatpush1.bf16.msra.mxu0 0
    %1941 = vmatprep.subr.bf16.mxu0 0
    %1942 = vmatpush1.bf16.msra.mxu0 0
    %1943 = vmatprep.subr.bf16.mxu0 0
    %1944 = vmatpush1.bf16.msra.mxu0 0
    %1945 = vmatprep.subr.bf16.mxu0 0
    %1946 = vmatpush1.bf16.msra.mxu0 0
    %1947 = vmatprep.subr.bf16.mxu0 0
    %1948 = vmatpush1.bf16.msra.mxu0 0
    %1949 = vmatprep.mubr.bf16.mxu0 0
    %1950 = vmatmul.mubr.bf16.gmra.mrb[0].mxu0 %v1912
    %v1951 = vpop.f32.mrb[0].mxu0
    %v1952 = vadd.f32 0.0, %v1951
    %v1953 = vpop.f32.mrb[0].mxu0
    %v1954 = vpop.f32.mrb[0].mxu0
    %v1955 = vpop.f32.mrb[0].mxu0
    %1956 = vdwg.mxu0
    %v1957 = vld [vmem:[#allocation2] sm:$0xff]
    %v1958 = vpack.c.bf16 %v1952, %v1952
    %v1959 = vld [vmem:[%s637] sm:$0xf]
    %v1961 = vsel %vm199, %v1958, 0
    %v1964 = vsel %vm262, %v1959, 0
    %1966 = vmatprep.subr.bf16.mxu0 0
    %1967 = vmatpush1.bf16.msra.mxu0 %v1964
    %1968 = vmatprep.subr.bf16.mxu0 0
    %1969 = vmatpush1.bf16.msra.mxu0 0
    %1970 = vmatprep.subr.bf16.mxu0 0
    %1971 = vmatpush1.bf16.msra.mxu0 0
    %1972 = vmatprep.subr.bf16.mxu0 0
    %1973 = vmatpush1.bf16.msra.mxu0 0
    %1974 = vmatprep.subr.bf16.mxu0 0
    %1975 = vmatpush1.bf16.msra.mxu0 0
    %1976 = vmatprep.subr.bf16.mxu0 0
    %1977 = vmatpush1.bf16.msra.mxu0 0
    %1978 = vmatprep.subr.bf16.mxu0 0
    %1979 = vmatpush1.bf16.msra.mxu0 0
    %1980 = vmatprep.subr.bf16.mxu0 0
    %1981 = vmatpush1.bf16.msra.mxu0 0
    %1982 = vmatprep.subr.bf16.mxu0 0
    %1983 = vmatpush1.bf16.msra.mxu0 0
    %1984 = vmatprep.subr.bf16.mxu0 0
    %1985 = vmatpush1.bf16.msra.mxu0 0
    %1986 = vmatprep.subr.bf16.mxu0 0
    %1987 = vmatpush1.bf16.msra.mxu0 0
    %1988 = vmatprep.subr.bf16.mxu0 0
    %1989 = vmatpush1.bf16.msra.mxu0 0
    %1990 = vmatprep.subr.bf16.mxu0 0
    %1991 = vmatpush1.bf16.msra.mxu0 0
    %1992 = vmatprep.subr.bf16.mxu0 0
    %1993 = vmatpush1.bf16.msra.mxu0 0
    %1994 = vmatprep.subr.bf16.mxu0 0
    %1995 = vmatpush1.bf16.msra.mxu0 0
    %1996 = vmatprep.subr.bf16.mxu0 0
    %1997 = vmatpush1.bf16.msra.mxu0 0
    %1998 = vmatprep.mubr.bf16.mxu0 0
    %1999 = vmatmul.mubr.bf16.gmra.mrb[0].mxu0 %v1961
    %v2000 = vpop.f32.mrb[0].mxu0
    %v2001 = vadd.f32 0.0, %v2000
    %v2002 = vpop.f32.mrb[0].mxu0
    %v2003 = vpop.f32.mrb[0].mxu0
    %v2004 = vpop.f32.mrb[0].mxu0
    %2005 = vdwg.mxu0
    %v2006 = vadd.f32 %v1957, %v2001
    %2007 = vst.msk [vmem:[#allocation2] sm:$0xff] %vm24, %v2006
    %v2008 = vld [vmem:[%s687] sm:$0xf]
    %v2009 = vld [vmem:[%s687 + $0x4] sm:$0xf]
    %v2010 = vld [vmem:[%s687 + $0x8] sm:$0xf]
    %v2011 = vld [vmem:[%s687 + $0xc] sm:$0xf]
    %v2016 = vunpack.c.l.b16 %v2008
    %v2017 = vunpack.c.l.b16 %v2009
    %v2018 = vunpack.c.l.b16 %v2010
    %v2019 = vunpack.c.l.b16 %v2011
    %v2020 = vpack.c.b16 %v2017, %v2016
    %v2021 = vpack.c.b16 %v2019, %v2018
    %2024 = vmatprep.subr.bf16.mxu0 0
    %2025 = vmatpush1.bf16.msra.mxu0 %v2020
    %2026 = vmatprep.subr.bf16.mxu0 0
    %2027 = vmatpush1.bf16.msra.mxu0 %v2021
    %2028 = vmatprep.subr.bf16.mxu0 0
    %2029 = vmatpush1.bf16.msra.mxu0 0
    %2030 = vmatprep.subr.bf16.mxu0 0
    %2031 = vmatpush1.bf16.msra.mxu0 0
    %2032 = vmatprep.subr.bf16.mxu0 0
    %2033 = vmatpush1.bf16.msra.mxu0 0
    %2034 = vmatprep.subr.bf16.mxu0 0
    %2035 = vmatpush1.bf16.msra.mxu0 0
    %2036 = vmatprep.subr.bf16.mxu0 0
    %2037 = vmatpush1.bf16.msra.mxu0 0
    %2038 = vmatprep.subr.bf16.mxu0 0
    %2039 = vmatpush1.bf16.msra.mxu0 0
    %2040 = vmatprep.subr.bf16.mxu0 0
    %2041 = vmatpush1.bf16.msra.mxu0 0
    %2042 = vmatprep.subr.bf16.mxu0 0
    %2043 = vmatpush1.bf16.msra.mxu0 0
    %2044 = vmatprep.subr.bf16.mxu0 0
    %2045 = vmatpush1.bf16.msra.mxu0 0
    %2046 = vmatprep.subr.bf16.mxu0 0
    %2047 = vmatpush1.bf16.msra.mxu0 0
    %2048 = vmatprep.subr.bf16.mxu0 0
    %2049 = vmatpush1.bf16.msra.mxu0 0
    %2050 = vmatprep.subr.bf16.mxu0 0
    %2051 = vmatpush1.bf16.msra.mxu0 0
    %2052 = vmatprep.subr.bf16.mxu0 0
    %2053 = vmatpush1.bf16.msra.mxu0 0
    %2054 = vmatprep.subr.bf16.mxu0 0
    %2055 = vmatpush1.bf16.msra.mxu0 0
    %2056 = vmatprep.mubr.bf16.mxu0 0
    %2057 = vmatmul.mubr.bf16.gmra.mrb[0].mxu0 %v1370
    %v2058 = vpop.f32.mrb[0].mxu0
    %v2059 = vadd.f32 0.0, %v2058
    %v2060 = vpop.f32.mrb[0].mxu0
    %v2061 = vpop.f32.mrb[0].mxu0
    %v2062 = vpop.f32.mrb[0].mxu0
    %2063 = vdwg.mxu0
    %v2064 = vld [vmem:[%s744] sm:$0xf]
    %v2065 = vld [vmem:[%s744 + $0x4] sm:$0xf]
    %v2066 = vld [vmem:[%s744 + $0x8] sm:$0xf]
    %v2067 = vld [vmem:[%s744 + $0xc] sm:$0xf]
    %v2072 = vunpack.c.l.b16 %v2064
    %v2073 = vunpack.c.l.b16 %v2065
    %v2074 = vunpack.c.l.b16 %v2066
    %v2075 = vunpack.c.l.b16 %v2067
    %v2076 = vpack.c.b16 %v2073, %v2072
    %v2077 = vpack.c.b16 %v2075, %v2074
    %2080 = vmatprep.subr.bf16.mxu0 0
    %2081 = vmatpush1.bf16.msra.mxu0 %v2076
    %2082 = vmatprep.subr.bf16.mxu0 0
    %2083 = vmatpush1.bf16.msra.mxu0 %v2077
    %2084 = vmatprep.subr.bf16.mxu0 0
    %2085 = vmatpush1.bf16.msra.mxu0 0
    %2086 = vmatprep.subr.bf16.mxu0 0
    %2087 = vmatpush1.bf16.msra.mxu0 0
    %2088 = vmatprep.subr.bf16.mxu0 0
    %2089 = vmatpush1.bf16.msra.mxu0 0
    %2090 = vmatprep.subr.bf16.mxu0 0
    %2091 = vmatpush1.bf16.msra.mxu0 0
    %2092 = vmatprep.subr.bf16.mxu0 0
    %2093 = vmatpush1.bf16.msra.mxu0 0
    %2094 = vmatprep.subr.bf16.mxu0 0
    %2095 = vmatpush1.bf16.msra.mxu0 0
    %2096 = vmatprep.subr.bf16.mxu0 0
    %2097 = vmatpush1.bf16.msra.mxu0 0
    %2098 = vmatprep.subr.bf16.mxu0 0
    %2099 = vmatpush1.bf16.msra.mxu0 0
    %2100 = vmatprep.subr.bf16.mxu0 0
    %2101 = vmatpush1.bf16.msra.mxu0 0
    %2102 = vmatprep.subr.bf16.mxu0 0
    %2103 = vmatpush1.bf16.msra.mxu0 0
    %2104 = vmatprep.subr.bf16.mxu0 0
    %2105 = vmatpush1.bf16.msra.mxu0 0
    %2106 = vmatprep.subr.bf16.mxu0 0
    %2107 = vmatpush1.bf16.msra.mxu0 0
    %2108 = vmatprep.subr.bf16.mxu0 0
    %2109 = vmatpush1.bf16.msra.mxu0 0
    %2110 = vmatprep.subr.bf16.mxu0 0
    %2111 = vmatpush1.bf16.msra.mxu0 0
    %2112 = vmatprep.mubr.bf16.mxu0 0
    %2113 = vmatmul.mubr.bf16.gmra.mrb[0].mxu0 %v1370
    %v2114 = vpop.f32.mrb[0].mxu0
    %v2115 = vadd.f32 0.0, %v2114
    %v2116 = vpop.f32.mrb[0].mxu0
    %v2117 = vpop.f32.mrb[0].mxu0
    %v2118 = vpop.f32.mrb[0].mxu0
    %2119 = vdwg.mxu0
    %v2120 = vld [vmem:[%s801] sm:$0xf]
    %v2121 = vld [vmem:[%s801 + $0x4] sm:$0xf]
    %v2122 = vld [vmem:[%s801 + $0x8] sm:$0xf]
    %v2123 = vld [vmem:[%s801 + $0xc] sm:$0xf]
    %v2128 = vunpack.c.l.b16 %v2120
    %v2129 = vunpack.c.l.b16 %v2121
    %v2130 = vunpack.c.l.b16 %v2122
    %v2131 = vunpack.c.l.b16 %v2123
    %v2132 = vpack.c.b16 %v2129, %v2128
    %v2133 = vpack.c.b16 %v2131, %v2130
    %2136 = vmatprep.subr.bf16.mxu0 0
    %2137 = vmatpush1.bf16.msra.mxu0 %v2132
    %2138 = vmatprep.subr.bf16.mxu0 0
    %2139 = vmatpush1.bf16.msra.mxu0 %v2133
    %2140 = vmatprep.subr.bf16.mxu0 0
    %2141 = vmatpush1.bf16.msra.mxu0 0
    %2142 = vmatprep.subr.bf16.mxu0 0
    %2143 = vmatpush1.bf16.msra.mxu0 0
    %2144 = vmatprep.subr.bf16.mxu0 0
    %2145 = vmatpush1.bf16.msra.mxu0 0
    %2146 = vmatprep.subr.bf16.mxu0 0
    %2147 = vmatpush1.bf16.msra.mxu0 0
    %2148 = vmatprep.subr.bf16.mxu0 0
    %2149 = vmatpush1.bf16.msra.mxu0 0
    %2150 = vmatprep.subr.bf16.mxu0 0
    %2151 = vmatpush1.bf16.msra.mxu0 0
    %2152 = vmatprep.subr.bf16.mxu0 0
    %2153 = vmatpush1.bf16.msra.mxu0 0
    %2154 = vmatprep.subr.bf16.mxu0 0
    %2155 = vmatpush1.bf16.msra.mxu0 0
    %2156 = vmatprep.subr.bf16.mxu0 0
    %2157 = vmatpush1.bf16.msra.mxu0 0
    %2158 = vmatprep.subr.bf16.mxu0 0
    %2159 = vmatpush1.bf16.msra.mxu0 0
    %2160 = vmatprep.subr.bf16.mxu0 0
    %2161 = vmatpush1.bf16.msra.mxu0 0
    %2162 = vmatprep.subr.bf16.mxu0 0
    %2163 = vmatpush1.bf16.msra.mxu0 0
    %2164 = vmatprep.subr.bf16.mxu0 0
    %2165 = vmatpush1.bf16.msra.mxu0 0
    %2166 = vmatprep.subr.bf16.mxu0 0
    %2167 = vmatpush1.bf16.msra.mxu0 0
    %2168 = vmatprep.mubr.bf16.mxu0 0
    %2169 = vmatmul.mubr.bf16.gmra.mrb[0].mxu0 %v1370
    %v2170 = vpop.f32.mrb[0].mxu0
    %v2171 = vadd.f32 0.0, %v2170
    %v2172 = vpop.f32.mrb[0].mxu0
    %v2173 = vpop.f32.mrb[0].mxu0
    %v2174 = vpop.f32.mrb[0].mxu0
    %2175 = vdwg.mxu0
    %v2176 = vpack.c.bf16 %v2059, %v2059
    %v2177 = vpack.c.bf16 %v2115, %v2115
    %v2179 = vsel %vm199, %v2176, 0
    %v2182 = vsel %vm199, %v2177, 0
    %2184 = vmatprep.subr.bf16.mxu0 0
    %2185 = vmatpush1.bf16.xpose.msra.mxu0 %v2182
    %2186 = vmatprep.subr.bf16.mxu0 0
    %2187 = vmatpush1.bf16.xpose.msra.mxu0 0
    %2188 = vmatprep.subr.bf16.mxu0 0
    %2189 = vmatpush1.bf16.xpose.msra.mxu0 0
    %2190 = vmatprep.subr.bf16.mxu0 0
    %2191 = vmatpush1.bf16.xpose.msra.mxu0 0
    %2192 = vmatprep.subr.bf16.mxu0 0
    %2193 = vmatpush1.bf16.xpose.msra.mxu0 0
    %2194 = vmatprep.subr.bf16.mxu0 0
    %2195 = vmatpush1.bf16.xpose.msra.mxu0 0
    %2196 = vmatprep.subr.bf16.mxu0 0
    %2197 = vmatpush1.bf16.xpose.msra.mxu0 0
    %2198 = vmatprep.subr.bf16.mxu0 0
    %2199 = vmatpush1.bf16.xpose.msra.mxu0 0
    %2200 = vmatprep.subr.bf16.mxu0 0
    %2201 = vmatpush1.bf16.xpose.msra.mxu0 0
    %2202 = vmatprep.subr.bf16.mxu0 0
    %2203 = vmatpush1.bf16.xpose.msra.mxu0 0
    %2204 = vmatprep.subr.bf16.mxu0 0
    %2205 = vmatpush1.bf16.xpose.msra.mxu0 0
    %2206 = vmatprep.subr.bf16.mxu0 0
    %2207 = vmatpush1.bf16.xpose.msra.mxu0 0
    %2208 = vmatprep.subr.bf16.mxu0 0
    %2209 = vmatpush1.bf16.xpose.msra.mxu0 0
    %2210 = vmatprep.subr.bf16.mxu0 0
    %2211 = vmatpush1.bf16.xpose.msra.mxu0 0
    %2212 = vmatprep.subr.bf16.mxu0 0
    %2213 = vmatpush1.bf16.xpose.msra.mxu0 0
    %2214 = vmatprep.subr.bf16.mxu0 0
    %2215 = vmatpush1.bf16.xpose.msra.mxu0 0
    %2216 = vmatprep.mubr.bf16.mxu0 0
    %2217 = vmatmul.mubr.bf16.gmra.mrb[0].mxu0 %v2179
    %v2218 = vpop.f32.mrb[0].mxu0
    %v2219 = vadd.f32 0.0, %v2218
    %v2220 = vpop.f32.mrb[0].mxu0
    %v2221 = vpop.f32.mrb[0].mxu0
    %v2222 = vpop.f32.mrb[0].mxu0
    %2223 = vdwg.mxu0
    %v2224 = vsel %vm199, %v2219, -inf
    %2225 = vmax.xlane.f32.xlu0 %v2224
    %v2226 = vpop.xlane.xlu0 %2225
    %v2227 = vsub.f32 %v2219, %v2226
    %v2228 = vmul.f32 %v2227, 1.442695
    %v2229 = vpow.pop %v2228
    %v2230 = vsel %vm199, %v2229, 0.0
    %2231 = vadd.xlane.f32.xlu0 %v2230
    %v2232 = vpop.xlane.xlu0 %2231
    %v2233 = vrcp.pop %v2232
    %v2234 = vmul.f32 %v2229, %v2233
    %v2235 = vpack.c.bf16 %v2234, %v2234
    %v2236 = vpack.c.bf16 %v2171, %v2171
    %v2238 = vsel %vm199, %v2235, 0
    %v2241 = vsel %vm262, %v2236, 0
    %2243 = vmatprep.subr.bf16.mxu0 0
    %2244 = vmatpush1.bf16.msra.mxu0 %v2241
    %2245 = vmatprep.subr.bf16.mxu0 0
    %2246 = vmatpush1.bf16.msra.mxu0 0
    %2247 = vmatprep.subr.bf16.mxu0 0
    %2248 = vmatpush1.bf16.msra.mxu0 0
    %2249 = vmatprep.subr.bf16.mxu0 0
    %2250 = vmatpush1.bf16.msra.mxu0 0
    %2251 = vmatprep.subr.bf16.mxu0 0
    %2252 = vmatpush1.bf16.msra.mxu0 0
    %2253 = vmatprep.subr.bf16.mxu0 0
    %2254 = vmatpush1.bf16.msra.mxu0 0
    %2255 = vmatprep.subr.bf16.mxu0 0
    %2256 = vmatpush1.bf16.msra.mxu0 0
    %2257 = vmatprep.subr.bf16.mxu0 0
    %2258 = vmatpush1.bf16.msra.mxu0 0
    %2259 = vmatprep.subr.bf16.mxu0 0
    %2260 = vmatpush1.bf16.msra.mxu0 0
    %2261 = vmatprep.subr.bf16.mxu0 0
    %2262 = vmatpush1.bf16.msra.mxu0 0
    %2263 = vmatprep.subr.bf16.mxu0 0
    %2264 = vmatpush1.bf16.msra.mxu0 0
    %2265 = vmatprep.subr.bf16.mxu0 0
    %2266 = vmatpush1.bf16.msra.mxu0 0
    %2267 = vmatprep.subr.bf16.mxu0 0
    %2268 = vmatpush1.bf16.msra.mxu0 0
    %2269 = vmatprep.subr.bf16.mxu0 0
    %2270 = vmatpush1.bf16.msra.mxu0 0
    %2271 = vmatprep.subr.bf16.mxu0 0
    %2272 = vmatpush1.bf16.msra.mxu0 0
    %2273 = vmatprep.subr.bf16.mxu0 0
    %2274 = vmatpush1.bf16.msra.mxu0 0
    %2275 = vmatprep.mubr.bf16.mxu0 0
    %2276 = vmatmul.mubr.bf16.gmra.mrb[0].mxu0 %v2238
    %v2277 = vpop.f32.mrb[0].mxu0
    %v2278 = vadd.f32 0.0, %v2277
    %v2279 = vpop.f32.mrb[0].mxu0
    %v2280 = vpop.f32.mrb[0].mxu0
    %v2281 = vpop.f32.mrb[0].mxu0
    %2282 = vdwg.mxu0
    %v2283 = vld [vmem:[#allocation2] sm:$0xff]
    %v2284 = vpack.c.bf16 %v2278, %v2278
    %v2285 = vld [vmem:[%s967] sm:$0xf]
    %v2287 = vsel %vm199, %v2284, 0
    %v2290 = vsel %vm262, %v2285, 0
    %2292 = vmatprep.subr.bf16.mxu0 0
    %2293 = vmatpush1.bf16.msra.mxu0 %v2290
    %2294 = vmatprep.subr.bf16.mxu0 0
    %2295 = vmatpush1.bf16.msra.mxu0 0
    %2296 = vmatprep.subr.bf16.mxu0 0
    %2297 = vmatpush1.bf16.msra.mxu0 0
    %2298 = vmatprep.subr.bf16.mxu0 0
    %2299 = vmatpush1.bf16.msra.mxu0 0
    %2300 = vmatprep.subr.bf16.mxu0 0
    %2301 = vmatpush1.bf16.msra.mxu0 0
    %2302 = vmatprep.subr.bf16.mxu0 0
    %2303 = vmatpush1.bf16.msra.mxu0 0
    %2304 = vmatprep.subr.bf16.mxu0 0
    %2305 = vmatpush1.bf16.msra.mxu0 0
    %2306 = vmatprep.subr.bf16.mxu0 0
    %2307 = vmatpush1.bf16.msra.mxu0 0
    %2308 = vmatprep.subr.bf16.mxu0 0
    %2309 = vmatpush1.bf16.msra.mxu0 0
    %2310 = vmatprep.subr.bf16.mxu0 0
    %2311 = vmatpush1.bf16.msra.mxu0 0
    %2312 = vmatprep.subr.bf16.mxu0 0
    %2313 = vmatpush1.bf16.msra.mxu0 0
    %2314 = vmatprep.subr.bf16.mxu0 0
    %2315 = vmatpush1.bf16.msra.mxu0 0
    %2316 = vmatprep.subr.bf16.mxu0 0
    %2317 = vmatpush1.bf16.msra.mxu0 0
    %2318 = vmatprep.subr.bf16.mxu0 0
    %2319 = vmatpush1.bf16.msra.mxu0 0
    %2320 = vmatprep.subr.bf16.mxu0 0
    %2321 = vmatpush1.bf16.msra.mxu0 0
    %2322 = vmatprep.subr.bf16.mxu0 0
    %2323 = vmatpush1.bf16.msra.mxu0 0
    %2324 = vmatprep.mubr.bf16.mxu0 0
    %2325 = vmatmul.mubr.bf16.gmra.mrb[0].mxu0 %v2287
    %v2326 = vpop.f32.mrb[0].mxu0
    %v2327 = vadd.f32 0.0, %v2326
    %v2328 = vpop.f32.mrb[0].mxu0
    %v2329 = vpop.f32.mrb[0].mxu0
    %v2330 = vpop.f32.mrb[0].mxu0
    %2331 = vdwg.mxu0
    %v2332 = vadd.f32 %v2283, %v2327
    %2333 = vst.msk [vmem:[#allocation2] sm:$0xff] %vm24, %v2332
    %v2334 = vld [vmem:[%s1017] sm:$0xf]
    %v2335 = vld [vmem:[%s1017 + $0x4] sm:$0xf]
    %v2336 = vld [vmem:[%s1017 + $0x8] sm:$0xf]
    %v2337 = vld [vmem:[%s1017 + $0xc] sm:$0xf]
    %v2342 = vunpack.c.l.b16 %v2334
    %v2343 = vunpack.c.l.b16 %v2335
    %v2344 = vunpack.c.l.b16 %v2336
    %v2345 = vunpack.c.l.b16 %v2337
    %v2346 = vpack.c.b16 %v2343, %v2342
    %v2347 = vpack.c.b16 %v2345, %v2344
    %2350 = vmatprep.subr.bf16.mxu0 0
    %2351 = vmatpush1.bf16.msra.mxu0 %v2346
    %2352 = vmatprep.subr.bf16.mxu0 0
    %2353 = vmatpush1.bf16.msra.mxu0 %v2347
    %2354 = vmatprep.subr.bf16.mxu0 0
    %2355 = vmatpush1.bf16.msra.mxu0 0
    %2356 = vmatprep.subr.bf16.mxu0 0
    %2357 = vmatpush1.bf16.msra.mxu0 0
    %2358 = vmatprep.subr.bf16.mxu0 0
    %2359 = vmatpush1.bf16.msra.mxu0 0
    %2360 = vmatprep.subr.bf16.mxu0 0
    %2361 = vmatpush1.bf16.msra.mxu0 0
    %2362 = vmatprep.subr.bf16.mxu0 0
    %2363 = vmatpush1.bf16.msra.mxu0 0
    %2364 = vmatprep.subr.bf16.mxu0 0
    %2365 = vmatpush1.bf16.msra.mxu0 0
    %2366 = vmatprep.subr.bf16.mxu0 0
    %2367 = vmatpush1.bf16.msra.mxu0 0
    %2368 = vmatprep.subr.bf16.mxu0 0
    %2369 = vmatpush1.bf16.msra.mxu0 0
    %2370 = vmatprep.subr.bf16.mxu0 0
    %2371 = vmatpush1.bf16.msra.mxu0 0
    %2372 = vmatprep.subr.bf16.mxu0 0
    %2373 = vmatpush1.bf16.msra.mxu0 0
    %2374 = vmatprep.subr.bf16.mxu0 0
    %2375 = vmatpush1.bf16.msra.mxu0 0
    %2376 = vmatprep.subr.bf16.mxu0 0
    %2377 = vmatpush1.bf16.msra.mxu0 0
    %2378 = vmatprep.subr.bf16.mxu0 0
    %2379 = vmatpush1.bf16.msra.mxu0 0
    %2380 = vmatprep.subr.bf16.mxu0 0
    %2381 = vmatpush1.bf16.msra.mxu0 0
    %2382 = vmatprep.mubr.bf16.mxu0 0
    %2383 = vmatmul.mubr.bf16.gmra.mrb[0].mxu0 %v1370
    %v2384 = vpop.f32.mrb[0].mxu0
    %v2385 = vadd.f32 0.0, %v2384
    %v2386 = vpop.f32.mrb[0].mxu0
    %v2387 = vpop.f32.mrb[0].mxu0
    %v2388 = vpop.f32.mrb[0].mxu0
    %2389 = vdwg.mxu0
    %v2390 = vld [vmem:[%s1074] sm:$0xf]
    %v2391 = vld [vmem:[%s1074 + $0x4] sm:$0xf]
    %v2392 = vld [vmem:[%s1074 + $0x8] sm:$0xf]
    %v2393 = vld [vmem:[%s1074 + $0xc] sm:$0xf]
    %v2398 = vunpack.c.l.b16 %v2390
    %v2399 = vunpack.c.l.b16 %v2391
    %v2400 = vunpack.c.l.b16 %v2392
    %v2401 = vunpack.c.l.b16 %v2393
    %v2402 = vpack.c.b16 %v2399, %v2398
    %v2403 = vpack.c.b16 %v2401, %v2400
    %2406 = vmatprep.subr.bf16.mxu0 0
    %2407 = vmatpush1.bf16.msra.mxu0 %v2402
    %2408 = vmatprep.subr.bf16.mxu0 0
    %2409 = vmatpush1.bf16.msra.mxu0 %v2403
    %2410 = vmatprep.subr.bf16.mxu0 0
    %2411 = vmatpush1.bf16.msra.mxu0 0
    %2412 = vmatprep.subr.bf16.mxu0 0
    %2413 = vmatpush1.bf16.msra.mxu0 0
    %2414 = vmatprep.subr.bf16.mxu0 0
    %2415 = vmatpush1.bf16.msra.mxu0 0
    %2416 = vmatprep.subr.bf16.mxu0 0
    %2417 = vmatpush1.bf16.msra.mxu0 0
    %2418 = vmatprep.subr.bf16.mxu0 0
    %2419 = vmatpush1.bf16.msra.mxu0 0
    %2420 = vmatprep.subr.bf16.mxu0 0
    %2421 = vmatpush1.bf16.msra.mxu0 0
    %2422 = vmatprep.subr.bf16.mxu0 0
    %2423 = vmatpush1.bf16.msra.mxu0 0
    %2424 = vmatprep.subr.bf16.mxu0 0
    %2425 = vmatpush1.bf16.msra.mxu0 0
    %2426 = vmatprep.subr.bf16.mxu0 0
    %2427 = vmatpush1.bf16.msra.mxu0 0
    %2428 = vmatprep.subr.bf16.mxu0 0
    %2429 = vmatpush1.bf16.msra.mxu0 0
    %2430 = vmatprep.subr.bf16.mxu0 0
    %2431 = vmatpush1.bf16.msra.mxu0 0
    %2432 = vmatprep.subr.bf16.mxu0 0
    %2433 = vmatpush1.bf16.msra.mxu0 0
    %2434 = vmatprep.subr.bf16.mxu0 0
    %2435 = vmatpush1.bf16.msra.mxu0 0
    %2436 = vmatprep.subr.bf16.mxu0 0
    %2437 = vmatpush1.bf16.msra.mxu0 0
    %2438 = vmatprep.mubr.bf16.mxu0 0
    %2439 = vmatmul.mubr.bf16.gmra.mrb[0].mxu0 %v1370
    %v2440 = vpop.f32.mrb[0].mxu0
    %v2441 = vadd.f32 0.0, %v2440
    %v2442 = vpop.f32.mrb[0].mxu0
    %v2443 = vpop.f32.mrb[0].mxu0
    %v2444 = vpop.f32.mrb[0].mxu0
    %2445 = vdwg.mxu0
    %v2446 = vld [vmem:[%s1131] sm:$0xf]
    %v2447 = vld [vmem:[%s1131 + $0x4] sm:$0xf]
    %v2448 = vld [vmem:[%s1131 + $0x8] sm:$0xf]
    %v2449 = vld [vmem:[%s1131 + $0xc] sm:$0xf]
    %v2454 = vunpack.c.l.b16 %v2446
    %v2455 = vunpack.c.l.b16 %v2447
    %v2456 = vunpack.c.l.b16 %v2448
    %v2457 = vunpack.c.l.b16 %v2449
    %v2458 = vpack.c.b16 %v2455, %v2454
    %v2459 = vpack.c.b16 %v2457, %v2456
    %2462 = vmatprep.subr.bf16.mxu0 0
    %2463 = vmatpush1.bf16.msra.mxu0 %v2458
    %2464 = vmatprep.subr.bf16.mxu0 0
    %2465 = vmatpush1.bf16.msra.mxu0 %v2459
    %2466 = vmatprep.subr.bf16.mxu0 0
    %2467 = vmatpush1.bf16.msra.mxu0 0
    %2468 = vmatprep.subr.bf16.mxu0 0
    %2469 = vmatpush1.bf16.msra.mxu0 0
    %2470 = vmatprep.subr.bf16.mxu0 0
    %2471 = vmatpush1.bf16.msra.mxu0 0
    %2472 = vmatprep.subr.bf16.mxu0 0
    %2473 = vmatpush1.bf16.msra.mxu0 0
    %2474 = vmatprep.subr.bf16.mxu0 0
    %2475 = vmatpush1.bf16.msra.mxu0 0
    %2476 = vmatprep.subr.bf16.mxu0 0
    %2477 = vmatpush1.bf16.msra.mxu0 0
    %2478 = vmatprep.subr.bf16.mxu0 0
    %2479 = vmatpush1.bf16.msra.mxu0 0
    %2480 = vmatprep.subr.bf16.mxu0 0
    %2481 = vmatpush1.bf16.msra.mxu0 0
    %2482 = vmatprep.subr.bf16.mxu0 0
    %2483 = vmatpush1.bf16.msra.mxu0 0
    %2484 = vmatprep.subr.bf16.mxu0 0
    %2485 = vmatpush1.bf16.msra.mxu0 0
    %2486 = vmatprep.subr.bf16.mxu0 0
    %2487 = vmatpush1.bf16.msra.mxu0 0
    %2488 = vmatprep.subr.bf16.mxu0 0
    %2489 = vmatpush1.bf16.msra.mxu0 0
    %2490 = vmatprep.subr.bf16.mxu0 0
    %2491 = vmatpush1.bf16.msra.mxu0 0
    %2492 = vmatprep.subr.bf16.mxu0 0
    %2493 = vmatpush1.bf16.msra.mxu0 0
    %2494 = vmatprep.mubr.bf16.mxu0 0
    %2495 = vmatmul.mubr.bf16.gmra.mrb[0].mxu0 %v1370
    %v2496 = vpop.f32.mrb[0].mxu0
    %v2497 = vadd.f32 0.0, %v2496
    %v2498 = vpop.f32.mrb[0].mxu0
    %v2499 = vpop.f32.mrb[0].mxu0
    %v2500 = vpop.f32.mrb[0].mxu0
    %2501 = vdwg.mxu0
    %v2502 = vpack.c.bf16 %v2385, %v2385
    %v2503 = vpack.c.bf16 %v2441, %v2441
    %v2505 = vsel %vm199, %v2502, 0
    %v2508 = vsel %vm199, %v2503, 0
    %2510 = vmatprep.subr.bf16.mxu0 0
    %2511 = vmatpush1.bf16.xpose.msra.mxu0 %v2508
    %2512 = vmatprep.subr.bf16.mxu0 0
    %2513 = vmatpush1.bf16.xpose.msra.mxu0 0
    %2514 = vmatprep.subr.bf16.mxu0 0
    %2515 = vmatpush1.bf16.xpose.msra.mxu0 0
    %2516 = vmatprep.subr.bf16.mxu0 0
    %2517 = vmatpush1.bf16.xpose.msra.mxu0 0
    %2518 = vmatprep.subr.bf16.mxu0 0
    %2519 = vmatpush1.bf16.xpose.msra.mxu0 0
    %2520 = vmatprep.subr.bf16.mxu0 0
    %2521 = vmatpush1.bf16.xpose.msra.mxu0 0
    %2522 = vmatprep.subr.bf16.mxu0 0
    %2523 = vmatpush1.bf16.xpose.msra.mxu0 0
    %2524 = vmatprep.subr.bf16.mxu0 0
    %2525 = vmatpush1.bf16.xpose.msra.mxu0 0
    %2526 = vmatprep.subr.bf16.mxu0 0
    %2527 = vmatpush1.bf16.xpose.msra.mxu0 0
    %2528 = vmatprep.subr.bf16.mxu0 0
    %2529 = vmatpush1.bf16.xpose.msra.mxu0 0
    %2530 = vmatprep.subr.bf16.mxu0 0
    %2531 = vmatpush1.bf16.xpose.msra.mxu0 0
    %2532 = vmatprep.subr.bf16.mxu0 0
    %2533 = vmatpush1.bf16.xpose.msra.mxu0 0
    %2534 = vmatprep.subr.bf16.mxu0 0
    %2535 = vmatpush1.bf16.xpose.msra.mxu0 0
    %2536 = vmatprep.subr.bf16.mxu0 0
    %2537 = vmatpush1.bf16.xpose.msra.mxu0 0
    %2538 = vmatprep.subr.bf16.mxu0 0
    %2539 = vmatpush1.bf16.xpose.msra.mxu0 0
    %2540 = vmatprep.subr.bf16.mxu0 0
    %2541 = vmatpush1.bf16.xpose.msra.mxu0 0
    %2542 = vmatprep.mubr.bf16.mxu0 0
    %2543 = vmatmul.mubr.bf16.gmra.mrb[0].mxu0 %v2505
    %v2544 = vpop.f32.mrb[0].mxu0
    %v2545 = vadd.f32 0.0, %v2544
    %v2546 = vpop.f32.mrb[0].mxu0
    %v2547 = vpop.f32.mrb[0].mxu0
    %v2548 = vpop.f32.mrb[0].mxu0
    %2549 = vdwg.mxu0
    %v2550 = vsel %vm199, %v2545, -inf
    %2551 = vmax.xlane.f32.xlu0 %v2550
    %v2552 = vpop.xlane.xlu0 %2551
    %v2553 = vsub.f32 %v2545, %v2552
    %v2554 = vmul.f32 %v2553, 1.442695
    %v2555 = vpow.pop %v2554
    %v2556 = vsel %vm199, %v2555, 0.0
    %2557 = vadd.xlane.f32.xlu0 %v2556
    %v2558 = vpop.xlane.xlu0 %2557
    %v2559 = vrcp.pop %v2558
    %v2560 = vmul.f32 %v2555, %v2559
    %v2561 = vpack.c.bf16 %v2560, %v2560
    %v2562 = vpack.c.bf16 %v2497, %v2497
    %v2564 = vsel %vm199, %v2561, 0
    %v2567 = vsel %vm262, %v2562, 0
    %2569 = vmatprep.subr.bf16.mxu0 0
    %2570 = vmatpush1.bf16.msra.mxu0 %v2567
    %2571 = vmatprep.subr.bf16.mxu0 0
    %2572 = vmatpush1.bf16.msra.mxu0 0
    %2573 = vmatprep.subr.bf16.mxu0 0
    %2574 = vmatpush1.bf16.msra.mxu0 0
    %2575 = vmatprep.subr.bf16.mxu0 0
    %2576 = vmatpush1.bf16.msra.mxu0 0
    %2577 = vmatprep.subr.bf16.mxu0 0
    %2578 = vmatpush1.bf16.msra.mxu0 0
    %2579 = vmatprep.subr.bf16.mxu0 0
    %2580 = vmatpush1.bf16.msra.mxu0 0
    %2581 = vmatprep.subr.bf16.mxu0 0
    %2582 = vmatpush1.bf16.msra.mxu0 0
    %2583 = vmatprep.subr.bf16.mxu0 0
    %2584 = vmatpush1.bf16.msra.mxu0 0
    %2585 = vmatprep.subr.bf16.mxu0 0
    %2586 = vmatpush1.bf16.msra.mxu0 0
    %2587 = vmatprep.subr.bf16.mxu0 0
    %2588 = vmatpush1.bf16.msra.mxu0 0
    %2589 = vmatprep.subr.bf16.mxu0 0
    %2590 = vmatpush1.bf16.msra.mxu0 0
    %2591 = vmatprep.subr.bf16.mxu0 0
    %2592 = vmatpush1.bf16.msra.mxu0 0
    %2593 = vmatprep.subr.bf16.mxu0 0
    %2594 = vmatpush1.bf16.msra.mxu0 0
    %2595 = vmatprep.subr.bf16.mxu0 0
    %2596 = vmatpush1.bf16.msra.mxu0 0
    %2597 = vmatprep.subr.bf16.mxu0 0
    %2598 = vmatpush1.bf16.msra.mxu0 0
    %2599 = vmatprep.subr.bf16.mxu0 0
    %2600 = vmatpush1.bf16.msra.mxu0 0
    %2601 = vmatprep.mubr.bf16.mxu0 0
    %2602 = vmatmul.mubr.bf16.gmra.mrb[0].mxu0 %v2564
    %v2603 = vpop.f32.mrb[0].mxu0
    %v2604 = vadd.f32 0.0, %v2603
    %v2605 = vpop.f32.mrb[0].mxu0
    %v2606 = vpop.f32.mrb[0].mxu0
    %v2607 = vpop.f32.mrb[0].mxu0
    %2608 = vdwg.mxu0
    %v2609 = vld [vmem:[#allocation2] sm:$0xff]
    %v2610 = vpack.c.bf16 %v2604, %v2604
    %v2611 = vld [vmem:[%s1297] sm:$0xf]
    %v2613 = vsel %vm199, %v2610, 0
    %v2616 = vsel %vm262, %v2611, 0
    %2618 = vmatprep.subr.bf16.mxu0 0
    %2619 = vmatpush1.bf16.msra.mxu0 %v2616
    %2620 = vmatprep.subr.bf16.mxu0 0
    %2621 = vmatpush1.bf16.msra.mxu0 0
    %2622 = vmatprep.subr.bf16.mxu0 0
    %2623 = vmatpush1.bf16.msra.mxu0 0
    %2624 = vmatprep.subr.bf16.mxu0 0
    %2625 = vmatpush1.bf16.msra.mxu0 0
    %2626 = vmatprep.subr.bf16.mxu0 0
    %2627 = vmatpush1.bf16.msra.mxu0 0
    %2628 = vmatprep.subr.bf16.mxu0 0
    %2629 = vmatpush1.bf16.msra.mxu0 0
    %2630 = vmatprep.subr.bf16.mxu0 0
    %2631 = vmatpush1.bf16.msra.mxu0 0
    %2632 = vmatprep.subr.bf16.mxu0 0
    %2633 = vmatpush1.bf16.msra.mxu0 0
    %2634 = vmatprep.subr.bf16.mxu0 0
    %2635 = vmatpush1.bf16.msra.mxu0 0
    %2636 = vmatprep.subr.bf16.mxu0 0
    %2637 = vmatpush1.bf16.msra.mxu0 0
    %2638 = vmatprep.subr.bf16.mxu0 0
    %2639 = vmatpush1.bf16.msra.mxu0 0
    %2640 = vmatprep.subr.bf16.mxu0 0
    %2641 = vmatpush1.bf16.msra.mxu0 0
    %2642 = vmatprep.subr.bf16.mxu0 0
    %2643 = vmatpush1.bf16.msra.mxu0 0
    %2644 = vmatprep.subr.bf16.mxu0 0
    %2645 = vmatpush1.bf16.msra.mxu0 0
    %2646 = vmatprep.subr.bf16.mxu0 0
    %2647 = vmatpush1.bf16.msra.mxu0 0
    %2648 = vmatprep.subr.bf16.mxu0 0
    %2649 = vmatpush1.bf16.msra.mxu0 0
    %2650 = vmatprep.mubr.bf16.mxu0 0
    %2651 = vmatmul.mubr.bf16.gmra.mrb[0].mxu0 %v2613
    %v2652 = vpop.f32.mrb[0].mxu0
    %v2653 = vadd.f32 0.0, %v2652
    %v2654 = vpop.f32.mrb[0].mxu0
    %v2655 = vpop.f32.mrb[0].mxu0
    %v2656 = vpop.f32.mrb[0].mxu0
    %2657 = vdwg.mxu0
    %v2658 = vadd.f32 %v2609, %v2653
    %2659 = vst.msk [vmem:[#allocation2] sm:$0xff] %vm24, %v2658
    %v2660 = vld [vmem:[#allocation2] sm:$0xff]
    %s2661 = scalar_lea.vmem [#allocation3], 8
    %2662 = vst.msk [vmem:[%s2661] sm:$0xff] %vm24, %v2660
    // Predicated region
    $region22: #{tpu_custom_call.1} parent=1 // pred_check
      _
    $region23: #{tpu_custom_call.1} parent=1 // pred_check_branch
      %2664 = sbr.rel (0) target = $region25
    $region24: #{tpu_custom_call.1} parent=1 // pred_region
      %s2666 = ssub.s32 256, 256
      %2667 = vsyncadd [#allocation4], %s2666
      %s2668 = sshll.u32 [#allocation3], 4
      %s2669 = int_to_ptr.vmem [resolvable:$true] %s2668
      %2674 = dma.vmem_to_hbm [thread:$0]  %s2669, 256, %s5, [#allocation4], 128, 128, 8
    $region25: #{tpu_custom_call.1} parent=1 // pred_fallthru
      _
    // Predicated region
    $region26: #{tpu_custom_call.1} parent=1 // pred_check
      _
    $region27: #{tpu_custom_call.1} parent=1 // pred_check_branch
      %2676 = sbr.rel (0) target = $region29
    $region28: #{tpu_custom_call.1} parent=1 // pred_region
      %2677 = dma.done [#allocation4], 256
    $region29: #{tpu_custom_call.1} parent=1 // pred_fallthru
      _
    %2678 = vsyncpa [#allocation4], 1

</llo_original>
